<compile_context>
chip_gen: v6e
topology: v6e:2x2x1
jax: 0.10.0
libtpu: 0.0.40
codegen_flags: <defaults>
</compile_context>

<pallas_src>
import functools

import jax
import jax.numpy as jnp
from jax.experimental import pallas as pl
from jax.experimental.pallas import tpu as pltpu

F32 = jnp.float32
BF16 = jnp.bfloat16


def _round_up(x, m):
    return -(-x // m) * m


def _inception_kernel(H, W, S_pad, margin,
                      x_ref,      # (1, Cin, margin + S_pad + margin) f32 canvas
                      mask_ref,   # (1, S_pad) f32, 1.0 on real image pixels
                      wbig_ref,   # (72, 2*Cin) f32  block-diag [1x1 stems | pool 1x1 /9]
                      bbig_ref,   # (72, 1) f32
                      wmid_ref,   # (56, 544) bf16   block-diag [w5x5 | w3x3_first | 0]
                      bmid_ref,   # (56, 1) f32
                      w3c_ref,    # (24, 288) bf16   second 3x3, taps padded 24->32 rows
                      b3c_ref,    # (24, 1) f32
                      out_ref,    # (1, 88, S_pad) f32, channel-major, lane-dense
                      pin_ref,    # (2*Cin, S_pad) f32 scratch: [x ; pooled]
                      c32_ref,    # (32, margin+S_pad+margin) bf16: 5x5/3x3 stems
                      cp_ref,     # (32, margin+S_pad+margin) bf16: u3 (+8 zero ch)
                      im_ref):    # (544, S_pad) bf16 im2col scratch (reused)
    Wp = W + 4
    Cin = x_ref.shape[1]
    dot = functools.partial(jnp.dot, preferred_element_type=F32)
    mask = mask_ref[...]                                        # (1, S_pad)

    # Zero only the fixed lane margins of the canvas scratches (interiors are
    # fully overwritten below; spatial-halo zeros come from `mask`).
    zmargin = jnp.zeros((32, margin), BF16)
    c32_ref[:, 0:margin] = zmargin
    c32_ref[:, margin + S_pad:] = zmargin
    cp_ref[:, 0:margin] = zmargin
    cp_ref[:, margin + S_pad:] = zmargin

    # ----- 3x3 avg pool, separable (row-sum over an S_pad+2 window, then
    # col-sum).  The /9 is folded into the pool-branch 1x1 weights.
    base = margin - 1
    L = S_pad + 2
    rsum = (x_ref[0, :, base - Wp:base - Wp + L]
            + x_ref[0, :, base:base + L]
            + x_ref[0, :, base + Wp:base + Wp + L])             # (Cin, S_pad+2)
    pooled = rsum[:, 0:S_pad] + rsum[:, 1:S_pad + 1] + rsum[:, 2:S_pad + 2]

    # ----- all four 1x1 convs as ONE block-diagonal matmul over [x ; pooled].
    pin_ref[0:Cin, :] = x_ref[0, :, margin:margin + S_pad]
    pin_ref[Cin:2 * Cin, :] = pooled
    stem = dot(wbig_ref[...], pin_ref[...]) + bbig_ref[...]     # (72, S_pad)

    out_ref[0, 0:16, :] = stem[0:16, :]                         # branch1x1
    out_ref[0, 64:88, :] = stem[48:72, :]                       # branch_pool
    # 5x5-stem (rows 16:32) and 3x3-stem (rows 32:48): zero the halo so the
    # shifted conv windows below see conv-padding zeros, then go bf16.
    c32_ref[:, margin:margin + S_pad] = (stem[16:48, :] * mask).astype(BF16)

    # ----- fused im2col: 25 taps of channels 0:16 (5x5) followed by 9 taps of
    # channels 16:32 (first 3x3); each tap is a plain static lane slice.
    for ky in range(5):
        for kx in range(5):
            t = ky * 5 + kx
            off = margin + (ky - 2) * Wp + (kx - 2)
            im_ref[t * 16:(t + 1) * 16, :] = c32_ref[0:16, off:off + S_pad]
    for ky in range(3):
        for kx in range(3):
            t = ky * 3 + kx
            off = margin + (ky - 1) * Wp + (kx - 1)
            im_ref[400 + t * 16:400 + (t + 1) * 16, :] = \
                c32_ref[16:32, off:off + S_pad]

    # ----- one (56,544)@(544,S_pad) matmul: rows 0:24 = branch5x5,
    # rows 24:48 = u3 (first 3x3 of the double branch), rows 48:56 = zeros.
    mid = dot(wmid_ref[...], im_ref[...]) + bmid_ref[...]       # (56, S_pad)
    out_ref[0, 16:40, :] = mid[0:24, :]
    cp_ref[:, margin:margin + S_pad] = (mid[24:56, :] * mask).astype(BF16)

    # ----- second 3x3: im2col with a 32-row tap stride (rows 24:32 of each
    # tap are the structural zero channels; w3c has zero columns there too).
    for ky in range(3):
        for kx in range(3):
            t = ky * 3 + kx
            off = margin + (ky - 1) * Wp + (kx - 1)
            im_ref[t * 32:(t + 1) * 32, :] = cp_ref[:, off:off + S_pad]
    br3 = dot(w3c_ref[...], im_ref[0:288, :]) + b3c_ref[...]    # (24, S_pad)
    out_ref[0, 40:64, :] = br3


def inception_a_pallas(x_nchw, params):
    """InceptionA forward.  x_nchw: (N, Cin, H, W) float32 -> (N, 88, H, W)."""
    N, Cin, H, W = x_nchw.shape
    Hp, Wp = H + 4, W + 4
    S = Hp * Wp
    S_pad = _round_up(S, 128)                 # lane-dense, 128-aligned canvas
    margin = _round_up(2 * Wp + 2, 128)       # zero lane margin for shifted slices
    E = margin + S_pad + margin

    x = x_nchw.astype(F32)
    # Spatial pad=2 (covers 5x5 pad=2 and 3x3/pool pad=1), flatten row-major,
    # append (S_pad - S) zero lanes, add zero lane margins.  NCHW is already
    # channel-major: no transpose anywhere.
    xc = jnp.pad(x, ((0, 0), (0, 0), (2, 2), (2, 2))).reshape(N, Cin, S)
    x_ext = jnp.pad(xc, ((0, 0), (0, 0), (margin, margin + (S_pad - S))))

    mask = jnp.pad(jnp.ones((H, W), F32), ((2, 2), (2, 2))).reshape(1, S)
    mask = jnp.pad(mask, ((0, 0), (0, S_pad - S)))

    P = params
    # Block-diagonal 1x1 weights: [branch1x1 | 5x5 stem | 3x3 stem] act on x,
    # the pool-branch 1x1 (with the avg-pool /9 folded in) acts on pooled.
    wstem = jnp.concatenate([P["w1"], P["w5a"], P["w3a"]], axis=1).T       # (48, Cin)
    wbig = jnp.zeros((72, 2 * Cin), F32)
    wbig = wbig.at[0:48, 0:Cin].set(wstem)
    wbig = wbig.at[48:72, Cin:2 * Cin].set(P["wp"].T / 9.0)
    bbig = jnp.concatenate([P["b1"], P["b5a"], P["b3a"], P["bp"]], axis=1).T  # (72,1)

    # Block-diagonal [5x5 conv | first 3x3 conv] + 8 zero rows (channel pad
    # keeps the downstream bf16 canvas / im2col stores tile-aligned).
    w5b = P["w5b"].reshape(5 * 5 * 16, 24).T                               # (24, 400)
    w3b = P["w3b"].reshape(3 * 3 * 16, 24).T                               # (24, 144)
    wmid = jnp.zeros((56, 544), F32)
    wmid = wmid.at[0:24, 0:400].set(w5b)
    wmid = wmid.at[24:48, 400:544].set(w3b)
    wmid = wmid.astype(BF16)
    bmid = jnp.concatenate([P["b5b"].T, P["b3b"].T, jnp.zeros((8, 1), F32)], axis=0)

    # Second 3x3: pad each 24-channel tap to a 32-row stride (zero columns).
    w3c = P["w3c"].reshape(3 * 3 * 24, 24).T                               # (24, 216)
    w3c = jnp.pad(w3c.reshape(24, 9, 24), ((0, 0), (0, 0), (0, 8))).reshape(24, 288)
    w3c = w3c.astype(BF16)
    b3c = P["b3c"].T                                                       # (24, 1)

    inputs = [x_ext, mask, wbig, bbig, wmid, bmid, w3c, b3c]

    def _bcast_spec(p):
        nd = p.ndim
        return pl.BlockSpec(p.shape, lambda n, _nd=nd: (0,) * _nd)

    in_specs = [pl.BlockSpec((1, Cin, E), lambda n: (n, 0, 0))]
    in_specs += [_bcast_spec(p) for p in inputs[1:]]

    out = pl.pallas_call(
        functools.partial(_inception_kernel, H, W, S_pad, margin),
        out_shape=jax.ShapeDtypeStruct((N, 88, S_pad), F32),
        grid_spec=pltpu.PrefetchScalarGridSpec(
            num_scalar_prefetch=0,
            grid=(N,),
            in_specs=in_specs,
            out_specs=pl.BlockSpec((1, 88, S_pad), lambda n: (n, 0, 0)),
            scratch_shapes=[
                pltpu.VMEM((2 * Cin, S_pad), F32),   # [x ; pooled] stem input
                pltpu.VMEM((32, E), BF16),           # 5x5/3x3 stem canvas
                pltpu.VMEM((32, E), BF16),           # u3 canvas (+8 zero channels)
                pltpu.VMEM((544, S_pad), BF16),      # im2col matrix (reused)
            ],
        ),
        compiler_params=pltpu.CompilerParams(dimension_semantics=("parallel",)),
    )(*inputs)

    # Channel-major, lane-dense kernel output: drop the lane padding, crop the
    # width-padded canvas, reshape straight to NCHW (no transpose).
    return out[:, :, :S].reshape(N, 88, Hp, Wp)[:, :, 2:2 + H, 2:2 + W]


def make_params(key, in_channels):
    """Deterministic synthetic parameters matching InceptionA.__init__ shapes.

    Conv weights are stored HWIO (kh, kw, Cin, Cout); 1x1 convs as (Cin, Cout).
    """
    ks = jax.random.split(key, 14)

    def w(k, shape):
        return (jax.random.normal(k, shape, F32) * 0.1).astype(F32)

    return {
        "w1":  w(ks[0], (in_channels, 16)), "b1":  w(ks[1], (1, 16)),
        "w5a": w(ks[2], (in_channels, 16)), "b5a": w(ks[3], (1, 16)),
        "w5b": w(ks[4], (5, 5, 16, 24)),    "b5b": w(ks[5], (1, 24)),
        "w3a": w(ks[6], (in_channels, 16)), "b3a": w(ks[7], (1, 16)),
        "w3b": w(ks[8], (3, 3, 16, 24)),    "b3b": w(ks[9], (1, 24)),
        "w3c": w(ks[10], (3, 3, 24, 24)),   "b3c": w(ks[11], (1, 24)),
        "wp":  w(ks[12], (in_channels, 24)), "bp": w(ks[13], (1, 24)),
    }


def reference_forward(x_nchw, P):
    """Pure-JAX reference mirroring the PyTorch module (for correctness check)."""
    x = jnp.transpose(x_nchw, (0, 2, 3, 1)).astype(F32)

    def conv(inp, w, b, pad):
        if w.ndim == 2:
            w = w.reshape(1, 1, *w.shape)
        out = jax.lax.conv_general_dilated(
            inp, w, (1, 1), [(pad, pad), (pad, pad)],
            dimension_numbers=("NHWC", "HWIO", "NHWC"),
            precision=jax.lax.Precision.HIGHEST)
        return out + b.reshape(1, 1, 1, -1)

    br1 = conv(x, P["w1"], P["b1"], 0)
    br5 = conv(conv(x, P["w5a"], P["b5a"], 0), P["w5b"], P["b5b"], 2)
    br3 = conv(conv(conv(x, P["w3a"], P["b3a"], 0),
                    P["w3b"], P["b3b"], 1), P["w3c"], P["b3c"], 1)
    pooled = jax.lax.reduce_window(
        x, 0.0, jax.lax.add, (1, 3, 3, 1), (1, 1, 1, 1),
        [(0, 0), (1, 1), (1, 1), (0, 0)]) / 9.0   # count_include_pad=True -> /9
    brp = conv(pooled, P["wp"], P["bp"], 0)
    out = jnp.concatenate([br1, br5, br3, brp], axis=-1)
    return jnp.transpose(out, (0, 3, 1, 2))


if __name__ == "__main__":
    N, Cin, H, W = 2, 4, 16, 16
    key = jax.random.PRNGKey(0)
    kx, kp = jax.random.split(key)
    x = jax.random.normal(kx, (N, Cin, H, W), F32)
    params = make_params(kp, Cin)

    out = jax.block_until_ready(jax.jit(inception_a_pallas)(x, params))
    assert out.shape == (N, 88, H, W), out.shape

    ref = jax.block_until_ready(reference_forward(x, params))
    # Kernel uses bf16 MXU operands with f32 accumulation (default precision);
    # the reference is near-exact f32, hence the loosened tolerance.
    max_err = float(jnp.max(jnp.abs(out - ref)))
    assert jnp.allclose(out, ref, atol=2e-2, rtol=2e-2), max_err

    print("KERNEL_OK")
</pallas_src>

<mosaic_0001>
module attributes {stable_mosaic.version = 11 : i64} {
  func.func @_inception_kernel(%arg0: i32, %arg1: memref<1x4x768xf32, #tpu.memory_space<vmem>>, %arg2: memref<1x512xf32, #tpu.memory_space<vmem>>, %arg3: memref<72x8xf32, #tpu.memory_space<vmem>>, %arg4: memref<72x1xf32, #tpu.memory_space<vmem>>, %arg5: memref<56x544xbf16, #tpu.memory_space<vmem>>, %arg6: memref<56x1xf32, #tpu.memory_space<vmem>>, %arg7: memref<24x288xbf16, #tpu.memory_space<vmem>>, %arg8: memref<24x1xf32, #tpu.memory_space<vmem>>, %arg9: memref<1x88x512xf32, #tpu.memory_space<vmem>>, %arg10: memref<8x512xf32, #tpu.memory_space<vmem>>, %arg11: memref<32x768xbf16, #tpu.memory_space<vmem>>, %arg12: memref<32x768xbf16, #tpu.memory_space<vmem>>, %arg13: memref<544x512xbf16, #tpu.memory_space<vmem>>) attributes {dimension_semantics = [#tpu.dimension_semantics<parallel>], iteration_bounds = array<i64: 2>, scalar_prefetch = 0 : i64, scratch_operands = 4 : i64, tpu.core_type = #tpu.core_type<tc>, window_params = [{transform_indices = @transform_0, window_bounds = array<i64: 1, 4, 768>}, {pipeline_mode = #tpu.pipeline_mode<synchronous>, transform_indices = @transform_1, window_bounds = array<i64: 1, 512>}, {pipeline_mode = #tpu.pipeline_mode<synchronous>, transform_indices = @transform_2, window_bounds = array<i64: 72, 8>}, {pipeline_mode = #tpu.pipeline_mode<synchronous>, transform_indices = @transform_3, window_bounds = array<i64: 72, 1>}, {pipeline_mode = #tpu.pipeline_mode<synchronous>, transform_indices = @transform_4, window_bounds = array<i64: 56, 544>}, {pipeline_mode = #tpu.pipeline_mode<synchronous>, transform_indices = @transform_5, window_bounds = array<i64: 56, 1>}, {pipeline_mode = #tpu.pipeline_mode<synchronous>, transform_indices = @transform_6, window_bounds = array<i64: 24, 288>}, {pipeline_mode = #tpu.pipeline_mode<synchronous>, transform_indices = @transform_7, window_bounds = array<i64: 24, 1>}, {transform_indices = @transform_8, window_bounds = array<i64: 1, 88, 512>}]} {
    %c0 = arith.constant 0 : index
    %c0_0 = arith.constant 0 : index
    %0 = vector.load %arg2[%c0, %c0_0] : memref<1x512xf32, #tpu.memory_space<vmem>>, vector<1x512xf32>
    %cst = arith.constant 0.000000e+00 : bf16
    %1 = vector.broadcast %cst : bf16 to vector<32x128xbf16>
    %c0_1 = arith.constant 0 : index
    %c0_2 = arith.constant 0 : index
    %2 = vector.load %arg11[%c0_1, %c0_2] : memref<32x768xbf16, #tpu.memory_space<vmem>>, vector<32x128xbf16>
    tpu.vector_store %arg11[%c0_1, %c0_2], %1 {strides = array<i32>} : memref<32x768xbf16, #tpu.memory_space<vmem>>, vector<32x128xbf16>,
    %c0_3 = arith.constant 0 : index
    %c640 = arith.constant 640 : index
    %3 = vector.load %arg11[%c0_3, %c640] : memref<32x768xbf16, #tpu.memory_space<vmem>>, vector<32x128xbf16>
    tpu.vector_store %arg11[%c0_3, %c640], %1 {strides = array<i32>} : memref<32x768xbf16, #tpu.memory_space<vmem>>, vector<32x128xbf16>,
    %c0_4 = arith.constant 0 : index
    %c0_5 = arith.constant 0 : index
    %4 = vector.load %arg12[%c0_4, %c0_5] : memref<32x768xbf16, #tpu.memory_space<vmem>>, vector<32x128xbf16>
    tpu.vector_store %arg12[%c0_4, %c0_5], %1 {strides = array<i32>} : memref<32x768xbf16, #tpu.memory_space<vmem>>, vector<32x128xbf16>,
    %c0_6 = arith.constant 0 : index
    %c640_7 = arith.constant 640 : index
    %5 = vector.load %arg12[%c0_6, %c640_7] : memref<32x768xbf16, #tpu.memory_space<vmem>>, vector<32x128xbf16>
    tpu.vector_store %arg12[%c0_6, %c640_7], %1 {strides = array<i32>} : memref<32x768xbf16, #tpu.memory_space<vmem>>, vector<32x128xbf16>,
    %c0_8 = arith.constant 0 : index
    %c0_9 = arith.constant 0 : index
    %c107 = arith.constant 107 : index
    %6 = vector.load %arg1[%c0_8, %c0_9, %c107] : memref<1x4x768xf32, #tpu.memory_space<vmem>>, vector<1x4x514xf32>
    %7 = vector.shape_cast %6 : vector<1x4x514xf32> to vector<4x514xf32>
    %c0_10 = arith.constant 0 : index
    %c0_11 = arith.constant 0 : index
    %c127 = arith.constant 127 : index
    %8 = vector.load %arg1[%c0_10, %c0_11, %c127] : memref<1x4x768xf32, #tpu.memory_space<vmem>>, vector<1x4x514xf32>
    %9 = vector.shape_cast %8 : vector<1x4x514xf32> to vector<4x514xf32>
    %10 = arith.addf %7, %9 : vector<4x514xf32>
    %c0_12 = arith.constant 0 : index
    %c0_13 = arith.constant 0 : index
    %c147 = arith.constant 147 : index
    %11 = vector.load %arg1[%c0_12, %c0_13, %c147] : memref<1x4x768xf32, #tpu.memory_space<vmem>>, vector<1x4x514xf32>
    %12 = vector.shape_cast %11 : vector<1x4x514xf32> to vector<4x514xf32>
    %13 = arith.addf %10, %12 : vector<4x514xf32>
    %14 = vector.extract_strided_slice %13 {offsets = [0, 0], sizes = [4, 512], strides = [1, 1]} : vector<4x514xf32> to vector<4x512xf32>
    %15 = vector.extract_strided_slice %13 {offsets = [0, 1], sizes = [4, 512], strides = [1, 1]} : vector<4x514xf32> to vector<4x512xf32>
    %16 = arith.addf %14, %15 : vector<4x512xf32>
    %17 = vector.extract_strided_slice %13 {offsets = [0, 2], sizes = [4, 512], strides = [1, 1]} : vector<4x514xf32> to vector<4x512xf32>
    %18 = arith.addf %16, %17 : vector<4x512xf32>
    %c0_14 = arith.constant 0 : index
    %c0_15 = arith.constant 0 : index
    %c128 = arith.constant 128 : index
    %19 = vector.load %arg1[%c0_14, %c0_15, %c128] : memref<1x4x768xf32, #tpu.memory_space<vmem>>, vector<1x4x512xf32>
    %20 = vector.shape_cast %19 : vector<1x4x512xf32> to vector<4x512xf32>
    %c0_16 = arith.constant 0 : index
    %c0_17 = arith.constant 0 : index
    %21 = vector.load %arg10[%c0_16, %c0_17] : memref<8x512xf32, #tpu.memory_space<vmem>>, vector<4x512xf32>
    tpu.vector_store %arg10[%c0_16, %c0_17], %20 {strides = array<i32>} : memref<8x512xf32, #tpu.memory_space<vmem>>, vector<4x512xf32>,
    %c4 = arith.constant 4 : index
    %c0_18 = arith.constant 0 : index
    %22 = vector.load %arg10[%c4, %c0_18] : memref<8x512xf32, #tpu.memory_space<vmem>>, vector<4x512xf32>
    tpu.vector_store %arg10[%c4, %c0_18], %18 {strides = array<i32>} : memref<8x512xf32, #tpu.memory_space<vmem>>, vector<4x512xf32>,
    %c0_19 = arith.constant 0 : index
    %c0_20 = arith.constant 0 : index
    %23 = vector.load %arg3[%c0_19, %c0_20] : memref<72x8xf32, #tpu.memory_space<vmem>>, vector<72x8xf32>
    %c0_21 = arith.constant 0 : index
    %c0_22 = arith.constant 0 : index
    %24 = vector.load %arg10[%c0_21, %c0_22] : memref<8x512xf32, #tpu.memory_space<vmem>>, vector<8x512xf32>
    %cst_23 = arith.constant dense<0.000000e+00> : vector<72x512xf32>
    %25 = tpu.matmul %23, %24, %cst_23 {dimension_numbers = #tpu.dot_dimension_numbers<[1], [0], [0], [1], [0, 0, 1, 1], [], []>} : vector<72x8xf32>, vector<8x512xf32>, vector<72x512xf32> -> vector<72x512xf32>
    %c0_24 = arith.constant 0 : index
    %c0_25 = arith.constant 0 : index
    %26 = vector.load %arg4[%c0_24, %c0_25] : memref<72x1xf32, #tpu.memory_space<vmem>>, vector<72x1xf32>
    %27 = vector.broadcast %26 : vector<72x1xf32> to vector<72x512xf32>
    %28 = arith.addf %25, %27 : vector<72x512xf32>
    %29 = vector.extract_strided_slice %28 {offsets = [0, 0], sizes = [16, 512], strides = [1, 1]} : vector<72x512xf32> to vector<16x512xf32>
    %c0_26 = arith.constant 0 : index
    %c0_27 = arith.constant 0 : index
    %c0_28 = arith.constant 0 : index
    %30 = vector.load %arg9[%c0_26, %c0_27, %c0_28] : memref<1x88x512xf32, #tpu.memory_space<vmem>>, vector<1x16x512xf32>
    %31 = vector.shape_cast %30 : vector<1x16x512xf32> to vector<16x512xf32>
    %32 = vector.shape_cast %29 : vector<16x512xf32> to vector<1x16x512xf32>
    tpu.vector_store %arg9[%c0_26, %c0_27, %c0_28], %32 {strides = array<i32>} : memref<1x88x512xf32, #tpu.memory_space<vmem>>, vector<1x16x512xf32>,
    %33 = vector.extract_strided_slice %28 {offsets = [48, 0], sizes = [24, 512], strides = [1, 1]} : vector<72x512xf32> to vector<24x512xf32>
    %c0_29 = arith.constant 0 : index
    %c64 = arith.constant 64 : index
    %c0_30 = arith.constant 0 : index
    %34 = vector.load %arg9[%c0_29, %c64, %c0_30] : memref<1x88x512xf32, #tpu.memory_space<vmem>>, vector<1x24x512xf32>
    %35 = vector.shape_cast %34 : vector<1x24x512xf32> to vector<24x512xf32>
    %36 = vector.shape_cast %33 : vector<24x512xf32> to vector<1x24x512xf32>
    tpu.vector_store %arg9[%c0_29, %c64, %c0_30], %36 {strides = array<i32>} : memref<1x88x512xf32, #tpu.memory_space<vmem>>, vector<1x24x512xf32>,
    %37 = vector.extract_strided_slice %28 {offsets = [16, 0], sizes = [32, 512], strides = [1, 1]} : vector<72x512xf32> to vector<32x512xf32>
    %38 = vector.broadcast %0 : vector<1x512xf32> to vector<32x512xf32>
    %39 = arith.mulf %37, %38 : vector<32x512xf32>
    %40 = arith.truncf %39 : vector<32x512xf32> to vector<32x512xbf16>
    %c0_31 = arith.constant 0 : index
    %c128_32 = arith.constant 128 : index
    %41 = vector.load %arg11[%c0_31, %c128_32] : memref<32x768xbf16, #tpu.memory_space<vmem>>, vector<32x512xbf16>
    tpu.vector_store %arg11[%c0_31, %c128_32], %40 {strides = array<i32>} : memref<32x768xbf16, #tpu.memory_space<vmem>>, vector<32x512xbf16>,
    %c0_33 = arith.constant 0 : index
    %c86 = arith.constant 86 : index
    %42 = vector.load %arg11[%c0_33, %c86] : memref<32x768xbf16, #tpu.memory_space<vmem>>, vector<16x512xbf16>
    %c0_34 = arith.constant 0 : index
    %c0_35 = arith.constant 0 : index
    %43 = vector.load %arg13[%c0_34, %c0_35] : memref<544x512xbf16, #tpu.memory_space<vmem>>, vector<16x512xbf16>
    tpu.vector_store %arg13[%c0_34, %c0_35], %42 {strides = array<i32>} : memref<544x512xbf16, #tpu.memory_space<vmem>>, vector<16x512xbf16>,
    %c0_36 = arith.constant 0 : index
    %c87 = arith.constant 87 : index
    %44 = vector.load %arg11[%c0_36, %c87] : memref<32x768xbf16, #tpu.memory_space<vmem>>, vector<16x512xbf16>
    %c16 = arith.constant 16 : index
    %c0_37 = arith.constant 0 : index
    %45 = vector.load %arg13[%c16, %c0_37] : memref<544x512xbf16, #tpu.memory_space<vmem>>, vector<16x512xbf16>
    tpu.vector_store %arg13[%c16, %c0_37], %44 {strides = array<i32>} : memref<544x512xbf16, #tpu.memory_space<vmem>>, vector<16x512xbf16>,
    %c0_38 = arith.constant 0 : index
    %c88 = arith.constant 88 : index
    %46 = vector.load %arg11[%c0_38, %c88] : memref<32x768xbf16, #tpu.memory_space<vmem>>, vector<16x512xbf16>
    %c32 = arith.constant 32 : index
    %c0_39 = arith.constant 0 : index
    %47 = vector.load %arg13[%c32, %c0_39] : memref<544x512xbf16, #tpu.memory_space<vmem>>, vector<16x512xbf16>
    tpu.vector_store %arg13[%c32, %c0_39], %46 {strides = array<i32>} : memref<544x512xbf16, #tpu.memory_space<vmem>>, vector<16x512xbf16>,
    %c0_40 = arith.constant 0 : index
    %c89 = arith.constant 89 : index
    %48 = vector.load %arg11[%c0_40, %c89] : memref<32x768xbf16, #tpu.memory_space<vmem>>, vector<16x512xbf16>
    %c48 = arith.constant 48 : index
    %c0_41 = arith.constant 0 : index
    %49 = vector.load %arg13[%c48, %c0_41] : memref<544x512xbf16, #tpu.memory_space<vmem>>, vector<16x512xbf16>
    tpu.vector_store %arg13[%c48, %c0_41], %48 {strides = array<i32>} : memref<544x512xbf16, #tpu.memory_space<vmem>>, vector<16x512xbf16>,
    %c0_42 = arith.constant 0 : index
    %c90 = arith.constant 90 : index
    %50 = vector.load %arg11[%c0_42, %c90] : memref<32x768xbf16, #tpu.memory_space<vmem>>, vector<16x512xbf16>
    %c64_43 = arith.constant 64 : index
    %c0_44 = arith.constant 0 : index
    %51 = vector.load %arg13[%c64_43, %c0_44] : memref<544x512xbf16, #tpu.memory_space<vmem>>, vector<16x512xbf16>
    tpu.vector_store %arg13[%c64_43, %c0_44], %50 {strides = array<i32>} : memref<544x512xbf16, #tpu.memory_space<vmem>>, vector<16x512xbf16>,
    %c0_45 = arith.constant 0 : index
    %c106 = arith.constant 106 : index
    %52 = vector.load %arg11[%c0_45, %c106] : memref<32x768xbf16, #tpu.memory_space<vmem>>, vector<16x512xbf16>
    %c80 = arith.constant 80 : index
    %c0_46 = arith.constant 0 : index
    %53 = vector.load %arg13[%c80, %c0_46] : memref<544x512xbf16, #tpu.memory_space<vmem>>, vector<16x512xbf16>
    tpu.vector_store %arg13[%c80, %c0_46], %52 {strides = array<i32>} : memref<544x512xbf16, #tpu.memory_space<vmem>>, vector<16x512xbf16>,
    %c0_47 = arith.constant 0 : index
    %c107_48 = arith.constant 107 : index
    %54 = vector.load %arg11[%c0_47, %c107_48] : memref<32x768xbf16, #tpu.memory_space<vmem>>, vector<16x512xbf16>
    %c96 = arith.constant 96 : index
    %c0_49 = arith.constant 0 : index
    %55 = vector.load %arg13[%c96, %c0_49] : memref<544x512xbf16, #tpu.memory_space<vmem>>, vector<16x512xbf16>
    tpu.vector_store %arg13[%c96, %c0_49], %54 {strides = array<i32>} : memref<544x512xbf16, #tpu.memory_space<vmem>>, vector<16x512xbf16>,
    %c0_50 = arith.constant 0 : index
    %c108 = arith.constant 108 : index
    %56 = vector.load %arg11[%c0_50, %c108] : memref<32x768xbf16, #tpu.memory_space<vmem>>, vector<16x512xbf16>
    %c112 = arith.constant 112 : index
    %c0_51 = arith.constant 0 : index
    %57 = vector.load %arg13[%c112, %c0_51] : memref<544x512xbf16, #tpu.memory_space<vmem>>, vector<16x512xbf16>
    tpu.vector_store %arg13[%c112, %c0_51], %56 {strides = array<i32>} : memref<544x512xbf16, #tpu.memory_space<vmem>>, vector<16x512xbf16>,
    %c0_52 = arith.constant 0 : index
    %c109 = arith.constant 109 : index
    %58 = vector.load %arg11[%c0_52, %c109] : memref<32x768xbf16, #tpu.memory_space<vmem>>, vector<16x512xbf16>
    %c128_53 = arith.constant 128 : index
    %c0_54 = arith.constant 0 : index
    %59 = vector.load %arg13[%c128_53, %c0_54] : memref<544x512xbf16, #tpu.memory_space<vmem>>, vector<16x512xbf16>
    tpu.vector_store %arg13[%c128_53, %c0_54], %58 {strides = array<i32>} : memref<544x512xbf16, #tpu.memory_space<vmem>>, vector<16x512xbf16>,
    %c0_55 = arith.constant 0 : index
    %c110 = arith.constant 110 : index
    %60 = vector.load %arg11[%c0_55, %c110] : memref<32x768xbf16, #tpu.memory_space<vmem>>, vector<16x512xbf16>
    %c144 = arith.constant 144 : index
    %c0_56 = arith.constant 0 : index
    %61 = vector.load %arg13[%c144, %c0_56] : memref<544x512xbf16, #tpu.memory_space<vmem>>, vector<16x512xbf16>
    tpu.vector_store %arg13[%c144, %c0_56], %60 {strides = array<i32>} : memref<544x512xbf16, #tpu.memory_space<vmem>>, vector<16x512xbf16>,
    %c0_57 = arith.constant 0 : index
    %c126 = arith.constant 126 : index
    %62 = vector.load %arg11[%c0_57, %c126] : memref<32x768xbf16, #tpu.memory_space<vmem>>, vector<16x512xbf16>
    %c160 = arith.constant 160 : index
    %c0_58 = arith.constant 0 : index
    %63 = vector.load %arg13[%c160, %c0_58] : memref<544x512xbf16, #tpu.memory_space<vmem>>, vector<16x512xbf16>
    tpu.vector_store %arg13[%c160, %c0_58], %62 {strides = array<i32>} : memref<544x512xbf16, #tpu.memory_space<vmem>>, vector<16x512xbf16>,
    %c0_59 = arith.constant 0 : index
    %c127_60 = arith.constant 127 : index
    %64 = vector.load %arg11[%c0_59, %c127_60] : memref<32x768xbf16, #tpu.memory_space<vmem>>, vector<16x512xbf16>
    %c176 = arith.constant 176 : index
    %c0_61 = arith.constant 0 : index
    %65 = vector.load %arg13[%c176, %c0_61] : memref<544x512xbf16, #tpu.memory_space<vmem>>, vector<16x512xbf16>
    tpu.vector_store %arg13[%c176, %c0_61], %64 {strides = array<i32>} : memref<544x512xbf16, #tpu.memory_space<vmem>>, vector<16x512xbf16>,
    %c0_62 = arith.constant 0 : index
    %c128_63 = arith.constant 128 : index
    %66 = vector.load %arg11[%c0_62, %c128_63] : memref<32x768xbf16, #tpu.memory_space<vmem>>, vector<16x512xbf16>
    %c192 = arith.constant 192 : index
    %c0_64 = arith.constant 0 : index
    %67 = vector.load %arg13[%c192, %c0_64] : memref<544x512xbf16, #tpu.memory_space<vmem>>, vector<16x512xbf16>
    tpu.vector_store %arg13[%c192, %c0_64], %66 {strides = array<i32>} : memref<544x512xbf16, #tpu.memory_space<vmem>>, vector<16x512xbf16>,
    %c0_65 = arith.constant 0 : index
    %c129 = arith.constant 129 : index
    %68 = vector.load %arg11[%c0_65, %c129] : memref<32x768xbf16, #tpu.memory_space<vmem>>, vector<16x512xbf16>
    %c208 = arith.constant 208 : index
    %c0_66 = arith.constant 0 : index
    %69 = vector.load %arg13[%c208, %c0_66] : memref<544x512xbf16, #tpu.memory_space<vmem>>, vector<16x512xbf16>
    tpu.vector_store %arg13[%c208, %c0_66], %68 {strides = array<i32>} : memref<544x512xbf16, #tpu.memory_space<vmem>>, vector<16x512xbf16>,
    %c0_67 = arith.constant 0 : index
    %c130 = arith.constant 130 : index
    %70 = vector.load %arg11[%c0_67, %c130] : memref<32x768xbf16, #tpu.memory_space<vmem>>, vector<16x512xbf16>
    %c224 = arith.constant 224 : index
    %c0_68 = arith.constant 0 : index
    %71 = vector.load %arg13[%c224, %c0_68] : memref<544x512xbf16, #tpu.memory_space<vmem>>, vector<16x512xbf16>
    tpu.vector_store %arg13[%c224, %c0_68], %70 {strides = array<i32>} : memref<544x512xbf16, #tpu.memory_space<vmem>>, vector<16x512xbf16>,
    %c0_69 = arith.constant 0 : index
    %c146 = arith.constant 146 : index
    %72 = vector.load %arg11[%c0_69, %c146] : memref<32x768xbf16, #tpu.memory_space<vmem>>, vector<16x512xbf16>
    %c240 = arith.constant 240 : index
    %c0_70 = arith.constant 0 : index
    %73 = vector.load %arg13[%c240, %c0_70] : memref<544x512xbf16, #tpu.memory_space<vmem>>, vector<16x512xbf16>
    tpu.vector_store %arg13[%c240, %c0_70], %72 {strides = array<i32>} : memref<544x512xbf16, #tpu.memory_space<vmem>>, vector<16x512xbf16>,
    %c0_71 = arith.constant 0 : index
    %c147_72 = arith.constant 147 : index
    %74 = vector.load %arg11[%c0_71, %c147_72] : memref<32x768xbf16, #tpu.memory_space<vmem>>, vector<16x512xbf16>
    %c256 = arith.constant 256 : index
    %c0_73 = arith.constant 0 : index
    %75 = vector.load %arg13[%c256, %c0_73] : memref<544x512xbf16, #tpu.memory_space<vmem>>, vector<16x512xbf16>
    tpu.vector_store %arg13[%c256, %c0_73], %74 {strides = array<i32>} : memref<544x512xbf16, #tpu.memory_space<vmem>>, vector<16x512xbf16>,
    %c0_74 = arith.constant 0 : index
    %c148 = arith.constant 148 : index
    %76 = vector.load %arg11[%c0_74, %c148] : memref<32x768xbf16, #tpu.memory_space<vmem>>, vector<16x512xbf16>
    %c272 = arith.constant 272 : index
    %c0_75 = arith.constant 0 : index
    %77 = vector.load %arg13[%c272, %c0_75] : memref<544x512xbf16, #tpu.memory_space<vmem>>, vector<16x512xbf16>
    tpu.vector_store %arg13[%c272, %c0_75], %76 {strides = array<i32>} : memref<544x512xbf16, #tpu.memory_space<vmem>>, vector<16x512xbf16>,
    %c0_76 = arith.constant 0 : index
    %c149 = arith.constant 149 : index
    %78 = vector.load %arg11[%c0_76, %c149] : memref<32x768xbf16, #tpu.memory_space<vmem>>, vector<16x512xbf16>
    %c288 = arith.constant 288 : index
    %c0_77 = arith.constant 0 : index
    %79 = vector.load %arg13[%c288, %c0_77] : memref<544x512xbf16, #tpu.memory_space<vmem>>, vector<16x512xbf16>
    tpu.vector_store %arg13[%c288, %c0_77], %78 {strides = array<i32>} : memref<544x512xbf16, #tpu.memory_space<vmem>>, vector<16x512xbf16>,
    %c0_78 = arith.constant 0 : index
    %c150 = arith.constant 150 : index
    %80 = vector.load %arg11[%c0_78, %c150] : memref<32x768xbf16, #tpu.memory_space<vmem>>, vector<16x512xbf16>
    %c304 = arith.constant 304 : index
    %c0_79 = arith.constant 0 : index
    %81 = vector.load %arg13[%c304, %c0_79] : memref<544x512xbf16, #tpu.memory_space<vmem>>, vector<16x512xbf16>
    tpu.vector_store %arg13[%c304, %c0_79], %80 {strides = array<i32>} : memref<544x512xbf16, #tpu.memory_space<vmem>>, vector<16x512xbf16>,
    %c0_80 = arith.constant 0 : index
    %c166 = arith.constant 166 : index
    %82 = vector.load %arg11[%c0_80, %c166] : memref<32x768xbf16, #tpu.memory_space<vmem>>, vector<16x512xbf16>
    %c320 = arith.constant 320 : index
    %c0_81 = arith.constant 0 : index
    %83 = vector.load %arg13[%c320, %c0_81] : memref<544x512xbf16, #tpu.memory_space<vmem>>, vector<16x512xbf16>
    tpu.vector_store %arg13[%c320, %c0_81], %82 {strides = array<i32>} : memref<544x512xbf16, #tpu.memory_space<vmem>>, vector<16x512xbf16>,
    %c0_82 = arith.constant 0 : index
    %c167 = arith.constant 167 : index
    %84 = vector.load %arg11[%c0_82, %c167] : memref<32x768xbf16, #tpu.memory_space<vmem>>, vector<16x512xbf16>
    %c336 = arith.constant 336 : index
    %c0_83 = arith.constant 0 : index
    %85 = vector.load %arg13[%c336, %c0_83] : memref<544x512xbf16, #tpu.memory_space<vmem>>, vector<16x512xbf16>
    tpu.vector_store %arg13[%c336, %c0_83], %84 {strides = array<i32>} : memref<544x512xbf16, #tpu.memory_space<vmem>>, vector<16x512xbf16>,
    %c0_84 = arith.constant 0 : index
    %c168 = arith.constant 168 : index
    %86 = vector.load %arg11[%c0_84, %c168] : memref<32x768xbf16, #tpu.memory_space<vmem>>, vector<16x512xbf16>
    %c352 = arith.constant 352 : index
    %c0_85 = arith.constant 0 : index
    %87 = vector.load %arg13[%c352, %c0_85] : memref<544x512xbf16, #tpu.memory_space<vmem>>, vector<16x512xbf16>
    tpu.vector_store %arg13[%c352, %c0_85], %86 {strides = array<i32>} : memref<544x512xbf16, #tpu.memory_space<vmem>>, vector<16x512xbf16>,
    %c0_86 = arith.constant 0 : index
    %c169 = arith.constant 169 : index
    %88 = vector.load %arg11[%c0_86, %c169] : memref<32x768xbf16, #tpu.memory_space<vmem>>, vector<16x512xbf16>
    %c368 = arith.constant 368 : index
    %c0_87 = arith.constant 0 : index
    %89 = vector.load %arg13[%c368, %c0_87] : memref<544x512xbf16, #tpu.memory_space<vmem>>, vector<16x512xbf16>
    tpu.vector_store %arg13[%c368, %c0_87], %88 {strides = array<i32>} : memref<544x512xbf16, #tpu.memory_space<vmem>>, vector<16x512xbf16>,
    %c0_88 = arith.constant 0 : index
    %c170 = arith.constant 170 : index
    %90 = vector.load %arg11[%c0_88, %c170] : memref<32x768xbf16, #tpu.memory_space<vmem>>, vector<16x512xbf16>
    %c384 = arith.constant 384 : index
    %c0_89 = arith.constant 0 : index
    %91 = vector.load %arg13[%c384, %c0_89] : memref<544x512xbf16, #tpu.memory_space<vmem>>, vector<16x512xbf16>
    tpu.vector_store %arg13[%c384, %c0_89], %90 {strides = array<i32>} : memref<544x512xbf16, #tpu.memory_space<vmem>>, vector<16x512xbf16>,
    %c16_90 = arith.constant 16 : index
    %c107_91 = arith.constant 107 : index
    %92 = vector.load %arg11[%c16_90, %c107_91] : memref<32x768xbf16, #tpu.memory_space<vmem>>, vector<16x512xbf16>
    %c400 = arith.constant 400 : index
    %c0_92 = arith.constant 0 : index
    %93 = vector.load %arg13[%c400, %c0_92] : memref<544x512xbf16, #tpu.memory_space<vmem>>, vector<16x512xbf16>
    tpu.vector_store %arg13[%c400, %c0_92], %92 {strides = array<i32>} : memref<544x512xbf16, #tpu.memory_space<vmem>>, vector<16x512xbf16>,
    %c16_93 = arith.constant 16 : index
    %c108_94 = arith.constant 108 : index
    %94 = vector.load %arg11[%c16_93, %c108_94] : memref<32x768xbf16, #tpu.memory_space<vmem>>, vector<16x512xbf16>
    %c416 = arith.constant 416 : index
    %c0_95 = arith.constant 0 : index
    %95 = vector.load %arg13[%c416, %c0_95] : memref<544x512xbf16, #tpu.memory_space<vmem>>, vector<16x512xbf16>
    tpu.vector_store %arg13[%c416, %c0_95], %94 {strides = array<i32>} : memref<544x512xbf16, #tpu.memory_space<vmem>>, vector<16x512xbf16>,
    %c16_96 = arith.constant 16 : index
    %c109_97 = arith.constant 109 : index
    %96 = vector.load %arg11[%c16_96, %c109_97] : memref<32x768xbf16, #tpu.memory_space<vmem>>, vector<16x512xbf16>
    %c432 = arith.constant 432 : index
    %c0_98 = arith.constant 0 : index
    %97 = vector.load %arg13[%c432, %c0_98] : memref<544x512xbf16, #tpu.memory_space<vmem>>, vector<16x512xbf16>
    tpu.vector_store %arg13[%c432, %c0_98], %96 {strides = array<i32>} : memref<544x512xbf16, #tpu.memory_space<vmem>>, vector<16x512xbf16>,
    %c16_99 = arith.constant 16 : index
    %c127_100 = arith.constant 127 : index
    %98 = vector.load %arg11[%c16_99, %c127_100] : memref<32x768xbf16, #tpu.memory_space<vmem>>, vector<16x512xbf16>
    %c448 = arith.constant 448 : index
    %c0_101 = arith.constant 0 : index
    %99 = vector.load %arg13[%c448, %c0_101] : memref<544x512xbf16, #tpu.memory_space<vmem>>, vector<16x512xbf16>
    tpu.vector_store %arg13[%c448, %c0_101], %98 {strides = array<i32>} : memref<544x512xbf16, #tpu.memory_space<vmem>>, vector<16x512xbf16>,
    %c16_102 = arith.constant 16 : index
    %c128_103 = arith.constant 128 : index
    %100 = vector.load %arg11[%c16_102, %c128_103] : memref<32x768xbf16, #tpu.memory_space<vmem>>, vector<16x512xbf16>
    %c464 = arith.constant 464 : index
    %c0_104 = arith.constant 0 : index
    %101 = vector.load %arg13[%c464, %c0_104] : memref<544x512xbf16, #tpu.memory_space<vmem>>, vector<16x512xbf16>
    tpu.vector_store %arg13[%c464, %c0_104], %100 {strides = array<i32>} : memref<544x512xbf16, #tpu.memory_space<vmem>>, vector<16x512xbf16>,
    %c16_105 = arith.constant 16 : index
    %c129_106 = arith.constant 129 : index
    %102 = vector.load %arg11[%c16_105, %c129_106] : memref<32x768xbf16, #tpu.memory_space<vmem>>, vector<16x512xbf16>
    %c480 = arith.constant 480 : index
    %c0_107 = arith.constant 0 : index
    %103 = vector.load %arg13[%c480, %c0_107] : memref<544x512xbf16, #tpu.memory_space<vmem>>, vector<16x512xbf16>
    tpu.vector_store %arg13[%c480, %c0_107], %102 {strides = array<i32>} : memref<544x512xbf16, #tpu.memory_space<vmem>>, vector<16x512xbf16>,
    %c16_108 = arith.constant 16 : index
    %c147_109 = arith.constant 147 : index
    %104 = vector.load %arg11[%c16_108, %c147_109] : memref<32x768xbf16, #tpu.memory_space<vmem>>, vector<16x512xbf16>
    %c496 = arith.constant 496 : index
    %c0_110 = arith.constant 0 : index
    %105 = vector.load %arg13[%c496, %c0_110] : memref<544x512xbf16, #tpu.memory_space<vmem>>, vector<16x512xbf16>
    tpu.vector_store %arg13[%c496, %c0_110], %104 {strides = array<i32>} : memref<544x512xbf16, #tpu.memory_space<vmem>>, vector<16x512xbf16>,
    %c16_111 = arith.constant 16 : index
    %c148_112 = arith.constant 148 : index
    %106 = vector.load %arg11[%c16_111, %c148_112] : memref<32x768xbf16, #tpu.memory_space<vmem>>, vector<16x512xbf16>
    %c512 = arith.constant 512 : index
    %c0_113 = arith.constant 0 : index
    %107 = vector.load %arg13[%c512, %c0_113] : memref<544x512xbf16, #tpu.memory_space<vmem>>, vector<16x512xbf16>
    tpu.vector_store %arg13[%c512, %c0_113], %106 {strides = array<i32>} : memref<544x512xbf16, #tpu.memory_space<vmem>>, vector<16x512xbf16>,
    %c16_114 = arith.constant 16 : index
    %c149_115 = arith.constant 149 : index
    %108 = vector.load %arg11[%c16_114, %c149_115] : memref<32x768xbf16, #tpu.memory_space<vmem>>, vector<16x512xbf16>
    %c528 = arith.constant 528 : index
    %c0_116 = arith.constant 0 : index
    %109 = vector.load %arg13[%c528, %c0_116] : memref<544x512xbf16, #tpu.memory_space<vmem>>, vector<16x512xbf16>
    tpu.vector_store %arg13[%c528, %c0_116], %108 {strides = array<i32>} : memref<544x512xbf16, #tpu.memory_space<vmem>>, vector<16x512xbf16>,
    %c0_117 = arith.constant 0 : index
    %c0_118 = arith.constant 0 : index
    %110 = vector.load %arg5[%c0_117, %c0_118] : memref<56x544xbf16, #tpu.memory_space<vmem>>, vector<56x544xbf16>
    %c0_119 = arith.constant 0 : index
    %c0_120 = arith.constant 0 : index
    %111 = vector.load %arg13[%c0_119, %c0_120] : memref<544x512xbf16, #tpu.memory_space<vmem>>, vector<544x512xbf16>
    %cst_121 = arith.constant dense<0.000000e+00> : vector<56x512xf32>
    %112 = tpu.matmul %110, %111, %cst_121 {dimension_numbers = #tpu.dot_dimension_numbers<[1], [0], [0], [1], [0, 0, 1, 1], [], []>} : vector<56x544xbf16>, vector<544x512xbf16>, vector<56x512xf32> -> vector<56x512xf32>
    %c0_122 = arith.constant 0 : index
    %c0_123 = arith.constant 0 : index
    %113 = vector.load %arg6[%c0_122, %c0_123] : memref<56x1xf32, #tpu.memory_space<vmem>>, vector<56x1xf32>
    %114 = vector.broadcast %113 : vector<56x1xf32> to vector<56x512xf32>
    %115 = arith.addf %112, %114 : vector<56x512xf32>
    %116 = vector.extract_strided_slice %115 {offsets = [0, 0], sizes = [24, 512], strides = [1, 1]} : vector<56x512xf32> to vector<24x512xf32>
    %c0_124 = arith.constant 0 : index
    %c16_125 = arith.constant 16 : index
    %c0_126 = arith.constant 0 : index
    %117 = vector.load %arg9[%c0_124, %c16_125, %c0_126] : memref<1x88x512xf32, #tpu.memory_space<vmem>>, vector<1x24x512xf32>
    %118 = vector.shape_cast %117 : vector<1x24x512xf32> to vector<24x512xf32>
    %119 = vector.shape_cast %116 : vector<24x512xf32> to vector<1x24x512xf32>
    tpu.vector_store %arg9[%c0_124, %c16_125, %c0_126], %119 {strides = array<i32>} : memref<1x88x512xf32, #tpu.memory_space<vmem>>, vector<1x24x512xf32>,
    %120 = vector.extract_strided_slice %115 {offsets = [24, 0], sizes = [32, 512], strides = [1, 1]} : vector<56x512xf32> to vector<32x512xf32>
    %121 = vector.broadcast %0 : vector<1x512xf32> to vector<32x512xf32>
    %122 = arith.mulf %120, %121 : vector<32x512xf32>
    %123 = arith.truncf %122 : vector<32x512xf32> to vector<32x512xbf16>
    %c0_127 = arith.constant 0 : index
    %c128_128 = arith.constant 128 : index
    %124 = vector.load %arg12[%c0_127, %c128_128] : memref<32x768xbf16, #tpu.memory_space<vmem>>, vector<32x512xbf16>
    tpu.vector_store %arg12[%c0_127, %c128_128], %123 {strides = array<i32>} : memref<32x768xbf16, #tpu.memory_space<vmem>>, vector<32x512xbf16>,
    %c0_129 = arith.constant 0 : index
    %c107_130 = arith.constant 107 : index
    %125 = vector.load %arg12[%c0_129, %c107_130] : memref<32x768xbf16, #tpu.memory_space<vmem>>, vector<32x512xbf16>
    %c0_131 = arith.constant 0 : index
    %c0_132 = arith.constant 0 : index
    %126 = vector.load %arg13[%c0_131, %c0_132] : memref<544x512xbf16, #tpu.memory_space<vmem>>, vector<32x512xbf16>
    tpu.vector_store %arg13[%c0_131, %c0_132], %125 {strides = array<i32>} : memref<544x512xbf16, #tpu.memory_space<vmem>>, vector<32x512xbf16>,
    %c0_133 = arith.constant 0 : index
    %c108_134 = arith.constant 108 : index
    %127 = vector.load %arg12[%c0_133, %c108_134] : memref<32x768xbf16, #tpu.memory_space<vmem>>, vector<32x512xbf16>
    %c32_135 = arith.constant 32 : index
    %c0_136 = arith.constant 0 : index
    %128 = vector.load %arg13[%c32_135, %c0_136] : memref<544x512xbf16, #tpu.memory_space<vmem>>, vector<32x512xbf16>
    tpu.vector_store %arg13[%c32_135, %c0_136], %127 {strides = array<i32>} : memref<544x512xbf16, #tpu.memory_space<vmem>>, vector<32x512xbf16>,
    %c0_137 = arith.constant 0 : index
    %c109_138 = arith.constant 109 : index
    %129 = vector.load %arg12[%c0_137, %c109_138] : memref<32x768xbf16, #tpu.memory_space<vmem>>, vector<32x512xbf16>
    %c64_139 = arith.constant 64 : index
    %c0_140 = arith.constant 0 : index
    %130 = vector.load %arg13[%c64_139, %c0_140] : memref<544x512xbf16, #tpu.memory_space<vmem>>, vector<32x512xbf16>
    tpu.vector_store %arg13[%c64_139, %c0_140], %129 {strides = array<i32>} : memref<544x512xbf16, #tpu.memory_space<vmem>>, vector<32x512xbf16>,
    %c0_141 = arith.constant 0 : index
    %c127_142 = arith.constant 127 : index
    %131 = vector.load %arg12[%c0_141, %c127_142] : memref<32x768xbf16, #tpu.memory_space<vmem>>, vector<32x512xbf16>
    %c96_143 = arith.constant 96 : index
    %c0_144 = arith.constant 0 : index
    %132 = vector.load %arg13[%c96_143, %c0_144] : memref<544x512xbf16, #tpu.memory_space<vmem>>, vector<32x512xbf16>
    tpu.vector_store %arg13[%c96_143, %c0_144], %131 {strides = array<i32>} : memref<544x512xbf16, #tpu.memory_space<vmem>>, vector<32x512xbf16>,
    %c0_145 = arith.constant 0 : index
    %c128_146 = arith.constant 128 : index
    %133 = vector.load %arg12[%c0_145, %c128_146] : memref<32x768xbf16, #tpu.memory_space<vmem>>, vector<32x512xbf16>
    %c128_147 = arith.constant 128 : index
    %c0_148 = arith.constant 0 : index
    %134 = vector.load %arg13[%c128_147, %c0_148] : memref<544x512xbf16, #tpu.memory_space<vmem>>, vector<32x512xbf16>
    tpu.vector_store %arg13[%c128_147, %c0_148], %133 {strides = array<i32>} : memref<544x512xbf16, #tpu.memory_space<vmem>>, vector<32x512xbf16>,
    %c0_149 = arith.constant 0 : index
    %c129_150 = arith.constant 129 : index
    %135 = vector.load %arg12[%c0_149, %c129_150] : memref<32x768xbf16, #tpu.memory_space<vmem>>, vector<32x512xbf16>
    %c160_151 = arith.constant 160 : index
    %c0_152 = arith.constant 0 : index
    %136 = vector.load %arg13[%c160_151, %c0_152] : memref<544x512xbf16, #tpu.memory_space<vmem>>, vector<32x512xbf16>
    tpu.vector_store %arg13[%c160_151, %c0_152], %135 {strides = array<i32>} : memref<544x512xbf16, #tpu.memory_space<vmem>>, vector<32x512xbf16>,
    %c0_153 = arith.constant 0 : index
    %c147_154 = arith.constant 147 : index
    %137 = vector.load %arg12[%c0_153, %c147_154] : memref<32x768xbf16, #tpu.memory_space<vmem>>, vector<32x512xbf16>
    %c192_155 = arith.constant 192 : index
    %c0_156 = arith.constant 0 : index
    %138 = vector.load %arg13[%c192_155, %c0_156] : memref<544x512xbf16, #tpu.memory_space<vmem>>, vector<32x512xbf16>
    tpu.vector_store %arg13[%c192_155, %c0_156], %137 {strides = array<i32>} : memref<544x512xbf16, #tpu.memory_space<vmem>>, vector<32x512xbf16>,
    %c0_157 = arith.constant 0 : index
    %c148_158 = arith.constant 148 : index
    %139 = vector.load %arg12[%c0_157, %c148_158] : memref<32x768xbf16, #tpu.memory_space<vmem>>, vector<32x512xbf16>
    %c224_159 = arith.constant 224 : index
    %c0_160 = arith.constant 0 : index
    %140 = vector.load %arg13[%c224_159, %c0_160] : memref<544x512xbf16, #tpu.memory_space<vmem>>, vector<32x512xbf16>
    tpu.vector_store %arg13[%c224_159, %c0_160], %139 {strides = array<i32>} : memref<544x512xbf16, #tpu.memory_space<vmem>>, vector<32x512xbf16>,
    %c0_161 = arith.constant 0 : index
    %c149_162 = arith.constant 149 : index
    %141 = vector.load %arg12[%c0_161, %c149_162] : memref<32x768xbf16, #tpu.memory_space<vmem>>, vector<32x512xbf16>
    %c256_163 = arith.constant 256 : index
    %c0_164 = arith.constant 0 : index
    %142 = vector.load %arg13[%c256_163, %c0_164] : memref<544x512xbf16, #tpu.memory_space<vmem>>, vector<32x512xbf16>
    tpu.vector_store %arg13[%c256_163, %c0_164], %141 {strides = array<i32>} : memref<544x512xbf16, #tpu.memory_space<vmem>>, vector<32x512xbf16>,
    %c0_165 = arith.constant 0 : index
    %c0_166 = arith.constant 0 : index
    %143 = vector.load %arg7[%c0_165, %c0_166] : memref<24x288xbf16, #tpu.memory_space<vmem>>, vector<24x288xbf16>
    %c0_167 = arith.constant 0 : index
    %c0_168 = arith.constant 0 : index
    %144 = vector.load %arg13[%c0_167, %c0_168] : memref<544x512xbf16, #tpu.memory_space<vmem>>, vector<288x512xbf16>
    %cst_169 = arith.constant dense<0.000000e+00> : vector<24x512xf32>
    %145 = tpu.matmul %143, %144, %cst_169 {dimension_numbers = #tpu.dot_dimension_numbers<[1], [0], [0], [1], [0, 0, 1, 1], [], []>} : vector<24x288xbf16>, vector<288x512xbf16>, vector<24x512xf32> -> vector<24x512xf32>
    %c0_170 = arith.constant 0 : index
    %c0_171 = arith.constant 0 : index
    %146 = vector.load %arg8[%c0_170, %c0_171] : memref<24x1xf32, #tpu.memory_space<vmem>>, vector<24x1xf32>
    %147 = vector.broadcast %146 : vector<24x1xf32> to vector<24x512xf32>
    %148 = arith.addf %145, %147 : vector<24x512xf32>
    %c0_172 = arith.constant 0 : index
    %c40 = arith.constant 40 : index
    %c0_173 = arith.constant 0 : index
    %149 = vector.load %arg9[%c0_172, %c40, %c0_173] : memref<1x88x512xf32, #tpu.memory_space<vmem>>, vector<1x24x512xf32>
    %150 = vector.shape_cast %149 : vector<1x24x512xf32> to vector<24x512xf32>
    %151 = vector.shape_cast %148 : vector<24x512xf32> to vector<1x24x512xf32>
    tpu.vector_store %arg9[%c0_172, %c40, %c0_173], %151 {strides = array<i32>} : memref<1x88x512xf32, #tpu.memory_space<vmem>>, vector<1x24x512xf32>,
    return
  }
  func.func @transform_0(%arg0: i32) -> (i32, i32, i32) {
    %c0_i32 = arith.constant 0 : i32
    %c0_i32_0 = arith.constant 0 : i32
    %c0_i32_1 = arith.constant 0 : i32
    return %arg0, %c0_i32, %c0_i32_0 : i32, i32, i32
  }
  func.func @transform_1(%arg0: i32) -> (i32, i32) {
    %c0_i32 = arith.constant 0 : i32
    %c0_i32_0 = arith.constant 0 : i32
    %c0_i32_1 = arith.constant 0 : i32
    return %c0_i32, %c0_i32_0 : i32, i32
  }
  func.func @transform_2(%arg0: i32) -> (i32, i32) {
    %c0_i32 = arith.constant 0 : i32
    %c0_i32_0 = arith.constant 0 : i32
    %c0_i32_1 = arith.constant 0 : i32
    return %c0_i32, %c0_i32_0 : i32, i32
  }
  func.func @transform_3(%arg0: i32) -> (i32, i32) {
    %c0_i32 = arith.constant 0 : i32
    %c0_i32_0 = arith.constant 0 : i32
    %c0_i32_1 = arith.constant 0 : i32
    return %c0_i32, %c0_i32_0 : i32, i32
  }
  func.func @transform_4(%arg0: i32) -> (i32, i32) {
    %c0_i32 = arith.constant 0 : i32
    %c0_i32_0 = arith.constant 0 : i32
    %c0_i32_1 = arith.constant 0 : i32
    return %c0_i32, %c0_i32_0 : i32, i32
  }
  func.func @transform_5(%arg0: i32) -> (i32, i32) {
    %c0_i32 = arith.constant 0 : i32
    %c0_i32_0 = arith.constant 0 : i32
    %c0_i32_1 = arith.constant 0 : i32
    return %c0_i32, %c0_i32_0 : i32, i32
  }
  func.func @transform_6(%arg0: i32) -> (i32, i32) {
    %c0_i32 = arith.constant 0 : i32
    %c0_i32_0 = arith.constant 0 : i32
    %c0_i32_1 = arith.constant 0 : i32
    return %c0_i32, %c0_i32_0 : i32, i32
  }
  func.func @transform_7(%arg0: i32) -> (i32, i32) {
    %c0_i32 = arith.constant 0 : i32
    %c0_i32_0 = arith.constant 0 : i32
    %c0_i32_1 = arith.constant 0 : i32
    return %c0_i32, %c0_i32_0 : i32, i32
  }
  func.func @transform_8(%arg0: i32) -> (i32, i32, i32) {
    %c0_i32 = arith.constant 0 : i32
    %c0_i32_0 = arith.constant 0 : i32
    %c0_i32_1 = arith.constant 0 : i32
    return %arg0, %c0_i32, %c0_i32_0 : i32, i32, i32
  }
}

</mosaic_0001>

<llo_original>
// kernel: inception_a_pallas.1
$region0: #{inception_a_pallas.1}
  #allocation0 [shape = 'u32[]', space=smem, size = 0x4, offset = 0x4, fixed_abs, tag = 'smem constant byte address 0x4 - core index']
  #allocation1 [shape = 'u32[144,128]{1,0:T(1,128)}', space=vmem, size = 0x12000, scoped, tag = 'internal scratch']
  #allocation2 [shape = 'f32[8,512]{1,0:T(8,128)}', space=vmem, size = 0x4000, scoped, tag = 'scratch operand']
  #allocation3 [shape = 'bf16[32,768]{1,0:T(8,128)(2,1)}', space=vmem, size = 0xc000, scoped, tag = 'scratch operand']
  #allocation4 [shape = 'bf16[32,768]{1,0:T(8,128)(2,1)}', space=vmem, size = 0xc000, scoped, tag = 'scratch operand']
  #allocation5 [shape = 'bf16[544,512]{1,0:T(8,128)(2,1)}', space=vmem, size = 0x88000, scoped, tag = 'scratch operand']
  %s0 = inlined_call_operand.vmem [shape: f32[2,4,768], index: 0, kind: input, shape index: {}]
  %s1 = inlined_call_operand.vmem [shape: f32[1,512], index: 1, kind: input, shape index: {}]
  %s2 = inlined_call_operand.vmem [shape: f32[72,8], index: 2, kind: input, shape index: {}]
  %s3 = inlined_call_operand.vmem [shape: f32[72,1], index: 3, kind: input, shape index: {}]
  %s4 = inlined_call_operand.vmem [shape: bf16[56,544], index: 4, kind: input, shape index: {}]
  %s5 = inlined_call_operand.vmem [shape: f32[56,1], index: 5, kind: input, shape index: {}]
  %s6 = inlined_call_operand.vmem [shape: bf16[24,288], index: 6, kind: input, shape index: {}]
  %s7 = inlined_call_operand.vmem [shape: f32[24,1], index: 7, kind: input, shape index: {}]
  %s8 = inlined_call_operand.vmem [shape: f32[2,88,512], index: 8, kind: output, shape index: {}]
  %s9 = sld [smem:[#allocation0]]
  $region65: #{inception_a_pallas.1} parent=0
    _
  %s11 = ssub.s32 1, %s9
  %s12 = scalar_select 0, %s11, %s9
  loop: start=0, step=1, limit=4
  $region2: #{inception_a_pallas.1} parent=0 // loop_pre_header
    _
  $region3: #{inception_a_pallas.1} parent=0 // loop_header
    %s14 = sphi 0, %s18
    %p15 = scmp.ge.s32.totalorder %s14, 4
    %s24 = sphi 0, %s26
    %s27 = sphi 0, %s24
    %s28 = sphi 0, %s27
    %s44 = sphi 0, %s28
    %s48 = sphi 0, %s48
    %s50 = sphi 0, %s48
    %s51 = sphi 0, %s50
    %s65 = sphi 0, %s51
    %s69 = sphi 0, %s69
    %s71 = sphi 0, %s69
    %s72 = sphi 0, %s71
    %s86 = sphi 0, %s72
    %s90 = sphi 0, %s90
    %s92 = sphi 0, %s90
    %s93 = sphi 0, %s92
    %s107 = sphi 0, %s93
    %s111 = sphi 0, %s111
    %s113 = sphi 0, %s111
    %s114 = sphi 0, %s113
    %s128 = sphi 0, %s114
    %s132 = sphi 0, %s132
    %s134 = sphi 0, %s132
    %s135 = sphi 0, %s134
    %s149 = sphi 0, %s135
    %s153 = sphi 0, %s153
    %s155 = sphi 0, %s153
    %s156 = sphi 0, %s155
    %s170 = sphi 0, %s156
    %s174 = sphi 0, %s174
    %s176 = sphi 0, %s174
    %s177 = sphi 0, %s176
    %s191 = sphi 0, %s177
    %s197 = sphi 0, %s199
    %s200 = sphi 0, %s197
    %s201 = sphi 0, %s200
    %s217 = sphi 0, %s201
  $region4: #{inception_a_pallas.1} parent=0 // loop_header_branch
    %17 = sbr.rel (%p15) target = $region8
  $region5: #{inception_a_pallas.1} parent=0 // loop_body
    %s19 = ssub.s32 %s14, 1
    %s20 = ssub.s32 %s14, 2
    %s21 = sadd.s32 %s14, 1
    %s22 = ssub.s32 %s14, %s21
    %p23 = scmp.eq.s32.totalorder %s22, 0
    %s25 = sadd.s32 %s24, 1
    %s26 = scalar_select %p23, %s24, %s25
    %p29 = pneg %p23
    %p30 = scmp.eq.s32.totalorder %s14, 1
    %p31 = por %p29, %p30
    %p32 = scmp.ne.s32.totalorder %s24, %s27
    %p33 = scmp.eq.s32.totalorder %s14, 0
    %p34 = por %p32, %p33
    %p35 = scmp.ne.s32.totalorder %s24, %s27
    %p36 = scmp.eq.s32.totalorder %s19, 1
    %p37 = por %p35, %p36
    %p38 = scmp.ne.s32.totalorder %s27, %s28
    %p39 = scmp.eq.s32.totalorder %s19, 0
    %p40 = por %p38, %p39
    %p41 = scmp.ne.s32.totalorder %s27, %s28
    %p42 = scmp.eq.s32.totalorder %s20, 1
    %p43 = por %p41, %p42
    %p45 = scmp.ne.s32.totalorder %s28, %s44
    %p46 = scmp.eq.s32.totalorder %s20, 0
    %p47 = por %p45, %p46
    %s49 = sadd.s32 %s48, 1
    %p52 = scmp.eq.s32.totalorder %s14, 1
    %p53 = scmp.ne.s32.totalorder %s48, %s50
    %p54 = scmp.eq.s32.totalorder %s14, 0
    %p55 = por %p53, %p54
    %p56 = scmp.ne.s32.totalorder %s48, %s50
    %p57 = scmp.eq.s32.totalorder %s19, 1
    %p58 = por %p56, %p57
    %p59 = scmp.ne.s32.totalorder %s50, %s51
    %p60 = scmp.eq.s32.totalorder %s19, 0
    %p61 = por %p59, %p60
    %p62 = scmp.ne.s32.totalorder %s50, %s51
    %p63 = scmp.eq.s32.totalorder %s20, 1
    %p64 = por %p62, %p63
    %p66 = scmp.ne.s32.totalorder %s51, %s65
    %p67 = scmp.eq.s32.totalorder %s20, 0
    %p68 = por %p66, %p67
    %s70 = sadd.s32 %s69, 1
    %p73 = scmp.eq.s32.totalorder %s14, 1
    %p74 = scmp.ne.s32.totalorder %s69, %s71
    %p75 = scmp.eq.s32.totalorder %s14, 0
    %p76 = por %p74, %p75
    %p77 = scmp.ne.s32.totalorder %s69, %s71
    %p78 = scmp.eq.s32.totalorder %s19, 1
    %p79 = por %p77, %p78
    %p80 = scmp.ne.s32.totalorder %s71, %s72
    %p81 = scmp.eq.s32.totalorder %s19, 0
    %p82 = por %p80, %p81
    %p83 = scmp.ne.s32.totalorder %s71, %s72
    %p84 = scmp.eq.s32.totalorder %s20, 1
    %p85 = por %p83, %p84
    %p87 = scmp.ne.s32.totalorder %s72, %s86
    %p88 = scmp.eq.s32.totalorder %s20, 0
    %p89 = por %p87, %p88
    %s91 = sadd.s32 %s90, 1
    %p94 = scmp.eq.s32.totalorder %s14, 1
    %p95 = scmp.ne.s32.totalorder %s90, %s92
    %p96 = scmp.eq.s32.totalorder %s14, 0
    %p97 = por %p95, %p96
    %p98 = scmp.ne.s32.totalorder %s90, %s92
    %p99 = scmp.eq.s32.totalorder %s19, 1
    %p100 = por %p98, %p99
    %p101 = scmp.ne.s32.totalorder %s92, %s93
    %p102 = scmp.eq.s32.totalorder %s19, 0
    %p103 = por %p101, %p102
    %p104 = scmp.ne.s32.totalorder %s92, %s93
    %p105 = scmp.eq.s32.totalorder %s20, 1
    %p106 = por %p104, %p105
    %p108 = scmp.ne.s32.totalorder %s93, %s107
    %p109 = scmp.eq.s32.totalorder %s20, 0
    %p110 = por %p108, %p109
    %s112 = sadd.s32 %s111, 1
    %p115 = scmp.eq.s32.totalorder %s14, 1
    %p116 = scmp.ne.s32.totalorder %s111, %s113
    %p117 = scmp.eq.s32.totalorder %s14, 0
    %p118 = por %p116, %p117
    %p119 = scmp.ne.s32.totalorder %s111, %s113
    %p120 = scmp.eq.s32.totalorder %s19, 1
    %p121 = por %p119, %p120
    %p122 = scmp.ne.s32.totalorder %s113, %s114
    %p123 = scmp.eq.s32.totalorder %s19, 0
    %p124 = por %p122, %p123
    %p125 = scmp.ne.s32.totalorder %s113, %s114
    %p126 = scmp.eq.s32.totalorder %s20, 1
    %p127 = por %p125, %p126
    %p129 = scmp.ne.s32.totalorder %s114, %s128
    %p130 = scmp.eq.s32.totalorder %s20, 0
    %p131 = por %p129, %p130
    %s133 = sadd.s32 %s132, 1
    %p136 = scmp.eq.s32.totalorder %s14, 1
    %p137 = scmp.ne.s32.totalorder %s132, %s134
    %p138 = scmp.eq.s32.totalorder %s14, 0
    %p139 = por %p137, %p138
    %p140 = scmp.ne.s32.totalorder %s132, %s134
    %p141 = scmp.eq.s32.totalorder %s19, 1
    %p142 = por %p140, %p141
    %p143 = scmp.ne.s32.totalorder %s134, %s135
    %p144 = scmp.eq.s32.totalorder %s19, 0
    %p145 = por %p143, %p144
    %p146 = scmp.ne.s32.totalorder %s134, %s135
    %p147 = scmp.eq.s32.totalorder %s20, 1
    %p148 = por %p146, %p147
    %p150 = scmp.ne.s32.totalorder %s135, %s149
    %p151 = scmp.eq.s32.totalorder %s20, 0
    %p152 = por %p150, %p151
    %s154 = sadd.s32 %s153, 1
    %p157 = scmp.eq.s32.totalorder %s14, 1
    %p158 = scmp.ne.s32.totalorder %s153, %s155
    %p159 = scmp.eq.s32.totalorder %s14, 0
    %p160 = por %p158, %p159
    %p161 = scmp.ne.s32.totalorder %s153, %s155
    %p162 = scmp.eq.s32.totalorder %s19, 1
    %p163 = por %p161, %p162
    %p164 = scmp.ne.s32.totalorder %s155, %s156
    %p165 = scmp.eq.s32.totalorder %s19, 0
    %p166 = por %p164, %p165
    %p167 = scmp.ne.s32.totalorder %s155, %s156
    %p168 = scmp.eq.s32.totalorder %s20, 1
    %p169 = por %p167, %p168
    %p171 = scmp.ne.s32.totalorder %s156, %s170
    %p172 = scmp.eq.s32.totalorder %s20, 0
    %p173 = por %p171, %p172
    %s175 = sadd.s32 %s174, 1
    %p178 = scmp.eq.s32.totalorder %s14, 1
    %p179 = scmp.ne.s32.totalorder %s174, %s176
    %p180 = scmp.eq.s32.totalorder %s14, 0
    %p181 = por %p179, %p180
    %p182 = scmp.ne.s32.totalorder %s174, %s176
    %p183 = scmp.eq.s32.totalorder %s19, 1
    %p184 = por %p182, %p183
    %p185 = scmp.ne.s32.totalorder %s176, %s177
    %p186 = scmp.eq.s32.totalorder %s19, 0
    %p187 = por %p185, %p186
    %p188 = scmp.ne.s32.totalorder %s176, %s177
    %p189 = scmp.eq.s32.totalorder %s20, 1
    %p190 = por %p188, %p189
    %p192 = scmp.ne.s32.totalorder %s177, %s191
    %p193 = scmp.eq.s32.totalorder %s20, 0
    %p194 = por %p192, %p193
    %s195 = ssub.s32 %s14, %s21
    %p196 = scmp.eq.s32.totalorder %s195, 0
    %s198 = sadd.s32 %s197, 1
    %s199 = scalar_select %p196, %s197, %s198
    %p202 = pneg %p196
    %p203 = scmp.eq.s32.totalorder %s14, 1
    %p204 = por %p202, %p203
    %p205 = scmp.ne.s32.totalorder %s197, %s200
    %p206 = scmp.eq.s32.totalorder %s14, 0
    %p207 = por %p205, %p206
    %p208 = scmp.ne.s32.totalorder %s197, %s200
    %p209 = scmp.eq.s32.totalorder %s19, 1
    %p210 = por %p208, %p209
    %p211 = scmp.ne.s32.totalorder %s200, %s201
    %p212 = scmp.eq.s32.totalorder %s19, 0
    %p213 = por %p211, %p212
    %p214 = scmp.ne.s32.totalorder %s200, %s201
    %p215 = scmp.eq.s32.totalorder %s20, 1
    %p216 = por %p214, %p215
    %p218 = scmp.ne.s32.totalorder %s201, %s217
    %p219 = scmp.eq.s32.totalorder %s20, 0
    %p220 = por %p218, %p219
    %p221 = scmp.le.s32.totalorder 1, %s14
    %p222 = scmp.lt.s32.totalorder %s14, 3
    %p223 = pnand %p221, %p222
    %p224 = pneg %p223
    // Predicated region
    $region9: #{inception_a_pallas.1} parent=5 // pred_check
      _
    $region10: #{inception_a_pallas.1} parent=5 // pred_check_branch
      %226 = sbr.rel (%p223) target = $region12
    $region11: #{inception_a_pallas.1} parent=5 // pred_region
      %s227 = ssub.s32 %s14, 1
      // Predicated region
      $region13: #{inception_a_pallas.1} parent=11 // pred_check
        %p228 = pneg %p61
      $region14: #{inception_a_pallas.1} parent=11 // pred_check_branch
        %230 = sbr.rel (%p228) target = $region16
      $region15: #{inception_a_pallas.1} parent=11 // pred_region
        _
      $region16: #{inception_a_pallas.1} parent=11 // pred_fallthru
        _
      // Predicated region
      $region17: #{inception_a_pallas.1} parent=11 // pred_check
        %p231 = pneg %p82
      $region18: #{inception_a_pallas.1} parent=11 // pred_check_branch
        %233 = sbr.rel (%p231) target = $region20
      $region19: #{inception_a_pallas.1} parent=11 // pred_region
        _
      $region20: #{inception_a_pallas.1} parent=11 // pred_fallthru
        _
      // Predicated region
      $region21: #{inception_a_pallas.1} parent=11 // pred_check
        %p234 = pneg %p103
      $region22: #{inception_a_pallas.1} parent=11 // pred_check_branch
        %236 = sbr.rel (%p234) target = $region24
      $region23: #{inception_a_pallas.1} parent=11 // pred_region
        _
      $region24: #{inception_a_pallas.1} parent=11 // pred_fallthru
        _
      // Predicated region
      $region25: #{inception_a_pallas.1} parent=11 // pred_check
        %p237 = pneg %p124
      $region26: #{inception_a_pallas.1} parent=11 // pred_check_branch
        %239 = sbr.rel (%p237) target = $region28
      $region27: #{inception_a_pallas.1} parent=11 // pred_region
        _
      $region28: #{inception_a_pallas.1} parent=11 // pred_fallthru
        _
      // Predicated region
      $region29: #{inception_a_pallas.1} parent=11 // pred_check
        %p240 = pneg %p145
      $region30: #{inception_a_pallas.1} parent=11 // pred_check_branch
        %242 = sbr.rel (%p240) target = $region32
      $region31: #{inception_a_pallas.1} parent=11 // pred_region
        _
      $region32: #{inception_a_pallas.1} parent=11 // pred_fallthru
        _
      // Predicated region
      $region33: #{inception_a_pallas.1} parent=11 // pred_check
        %p243 = pneg %p166
      $region34: #{inception_a_pallas.1} parent=11 // pred_check_branch
        %245 = sbr.rel (%p243) target = $region36
      $region35: #{inception_a_pallas.1} parent=11 // pred_region
        _
      $region36: #{inception_a_pallas.1} parent=11 // pred_fallthru
        _
      // Predicated region
      $region37: #{inception_a_pallas.1} parent=11 // pred_check
        %p246 = pneg %p187
      $region38: #{inception_a_pallas.1} parent=11 // pred_check_branch
        %248 = sbr.rel (%p246) target = $region40
      $region39: #{inception_a_pallas.1} parent=11 // pred_region
        _
      $region40: #{inception_a_pallas.1} parent=11 // pred_fallthru
        _
    $region12: #{inception_a_pallas.1} parent=5 // pred_fallthru
      _
    %p249 = scmp.lt.s32.totalorder %s14, 2
    // Predicated region
    $region41: #{inception_a_pallas.1} parent=5 // pred_check
      %p250 = pneg %p249
    $region42: #{inception_a_pallas.1} parent=5 // pred_check_branch
      %252 = sbr.rel (%p250) target = $region44
    $region43: #{inception_a_pallas.1} parent=5 // pred_region
      // Predicated region
      $region45: #{inception_a_pallas.1} parent=43 // pred_check
        %p253 = pneg %p34
      $region46: #{inception_a_pallas.1} parent=43 // pred_check_branch
        %255 = sbr.rel (%p253) target = $region48
      $region47: #{inception_a_pallas.1} parent=43 // pred_region
        %p256 = scmp.lt.s32.totalorder %s14, 1
        %s257 = scalar_select %p256, %s14, 1
        %s258 = smul.addr %s257, 6
        %s259 = smul.addr %s258, 4
        %s260 = scalar_lea.vmem %s0, %s259
      $region48: #{inception_a_pallas.1} parent=43 // pred_fallthru
        _
    $region44: #{inception_a_pallas.1} parent=5 // pred_fallthru
      _
    %p261 = scmp.le.s32.totalorder 1, %s14
    %p262 = scmp.lt.s32.totalorder %s14, 3
    %p263 = pnand %p261, %p262
    %p264 = pneg %p263
    // Predicated region
    $region49: #{inception_a_pallas.1} parent=5 // pred_check
      _
    $region50: #{inception_a_pallas.1} parent=5 // pred_check_branch
      %266 = sbr.rel (%p263) target = $region52
    $region51: #{inception_a_pallas.1} parent=5 // pred_region
      %s267 = ssub.s32 %s14, 1
      %p268 = scmp.lt.s32.totalorder %s19, 1
      %s269 = scalar_select %p268, %s19, 1
      %s270 = smul.addr %s269, 6
      %s271 = smul.addr %s270, 4
      %s272 = scalar_lea.vmem %s0, %s271
      %p273 = pneg %p40
      %p274 = pneg %p37
      %p275 = pneg %p61
      %p276 = pneg %p58
      %p277 = pneg %p82
      %p278 = pneg %p79
      %p279 = pneg %p103
      %p280 = pneg %p100
      %p281 = pneg %p124
      %p282 = pneg %p121
      %p283 = pneg %p145
      %p284 = pneg %p142
      %p285 = pneg %p166
      %p286 = pneg %p163
      %p287 = pneg %p187
      %p288 = pneg %p184
      %p289 = pneg %p213
      %p290 = pneg %p210
      %p291 = scmp.lt.s32.totalorder %s19, 1
      %s292 = scalar_select %p291, %s19, 1
      %s293 = smul.addr %s292, 44
      %s294 = smul.addr %s293, 8
      %s295 = scalar_lea.vmem %s8, %s294
      %p296 = scmp.lt.s32.totalorder %s19, 1
      %s297 = scalar_select %p296, %s19, 1
      %s298 = smul.addr %s297, 6
      %s299 = smul.addr %s298, 4
      %s300 = scalar_lea.vmem %s0, %s299
      %p301 = scmp.lt.s32.totalorder %s19, 1
      %s302 = scalar_select %p301, %s19, 1
      %s303 = smul.addr %s302, 44
      %s304 = smul.addr %s303, 8
      %s305 = scalar_lea.vmem %s8, %s304
      %v307 = vld [vmem:[%s1] sm:$0xf]
      %308 = vst [vmem:[#allocation3] sm:$0xf] 0
      %309 = vst [vmem:[#allocation3 + $0x18] sm:$0xf] 0
      %310 = vst [vmem:[#allocation3 + $0x30] sm:$0xf] 0
      %311 = vst [vmem:[#allocation3 + $0x48] sm:$0xf] 0
      %312 = vst [vmem:[#allocation3 + $0x14] sm:$0xf] 0
      %313 = vst [vmem:[#allocation3 + $0x2c] sm:$0xf] 0
      %314 = vst [vmem:[#allocation3 + $0x44] sm:$0xf] 0
      %315 = vst [vmem:[#allocation3 + $0x5c] sm:$0xf] 0
      %316 = vst [vmem:[#allocation4] sm:$0xf] 0
      %317 = vst [vmem:[#allocation4 + $0x18] sm:$0xf] 0
      %318 = vst [vmem:[#allocation4 + $0x30] sm:$0xf] 0
      %319 = vst [vmem:[#allocation4 + $0x48] sm:$0xf] 0
      %320 = vst [vmem:[#allocation4 + $0x14] sm:$0xf] 0
      %321 = vst [vmem:[#allocation4 + $0x2c] sm:$0xf] 0
      %322 = vst [vmem:[#allocation4 + $0x44] sm:$0xf] 0
      %323 = vst [vmem:[#allocation4 + $0x5c] sm:$0xf] 0
      %v324 = vld [vmem:[%s300] sm:$0xff]
      %v325 = vld [vmem:[%s300 + $0x8] sm:$0xff]
      %v326 = vld [vmem:[%s300 + $0x10] sm:$0xf]
      %v327 = vld [vmem:[%s300] sm:$0xff]
      %v328 = vld [vmem:[%s300 + $0x8] sm:$0xff]
      %v329 = vld [vmem:[%s300 + $0x10] sm:$0xff]
      %333 = vrot.lane.b32.xlu0 %v327, 108
      %v334 = vpop.permute.xlu0 %333
      %335 = vrot.lane.b32.xlu0 %v328, 108
      %v336 = vpop.permute.xlu0 %335
      %337 = vrot.lane.b32.xlu0 %v329, 108
      %v338 = vpop.permute.xlu0 %337
      %v339 = vrot.slane %v334, 4
      %v340 = vrot.slane %v336, 4
      %v341 = vrot.slane %v338, 4
      %vm342 = vcmask 1043456
      %v343 = vsel %vm342, %v339, %v340
      %vm344 = vcmask 883712
      %v345 = vsel %vm344, %v334, %v343
      %v346 = vsel %vm342, %v340, %v341
      %v347 = vsel %vm344, %v336, %v346
      %v348 = vsel %vm344, %v338, %v341
      %v352 = vadd.f32 %v324, %v345
      %v353 = vadd.f32 %v325, %v347
      %v354 = vadd.f32 %v326, %v348
      %v355 = vld [vmem:[%s300 + $0x4] sm:$0xff]
      %v356 = vld [vmem:[%s300 + $0xc] sm:$0xff]
      %v357 = vld [vmem:[%s300 + $0x14] sm:$0xf]
      %361 = vrot.lane.b32.xlu0 %v355, 88
      %v362 = vpop.permute.xlu0 %361
      %363 = vrot.lane.b32.xlu0 %v356, 88
      %v364 = vpop.permute.xlu0 %363
      %365 = vrot.lane.b32.xlu0 %v357, 88
      %v366 = vpop.permute.xlu0 %365
      %v367 = vrot.slane %v362, 4
      %v368 = vrot.slane %v364, 4
      %vm369 = vcmask 719872
      %v370 = vsel %vm369, %v367, %v362
      %v371 = vsel %vm342, %v367, %v368
      %v372 = vsel %vm369, %v371, %v364
      %v373 = vsel %vm369, %v368, %v366
      %v377 = vadd.f32 %v352, %v370
      %v378 = vadd.f32 %v353, %v372
      %v379 = vadd.f32 %v354, %v373
      %383 = vrot.lane.b32.xlu0 %v377, 127
      %v384 = vpop.permute.xlu0 %383
      %385 = vrot.lane.b32.xlu0 %v378, 127
      %v386 = vpop.permute.xlu0 %385
      %387 = vrot.lane.b32.xlu0 %v379, 127
      %v388 = vpop.permute.xlu0 %387
      %v389 = vrot.slane %v384, 4
      %v390 = vrot.slane %v386, 4
      %v391 = vrot.slane %v388, 4
      %v392 = vsel %vm342, %v389, %v390
      %vm393 = vcmask 1039360
      %v394 = vsel %vm393, %v384, %v392
      %v395 = vsel %vm342, %v390, %v391
      %v396 = vsel %vm393, %v386, %v395
      %v400 = vadd.f32 %v377, %v394
      %v401 = vadd.f32 %v378, %v396
      %v402 = vadd.f32 %v379, %v388
      %403 = vrot.lane.b32.xlu0 %v377, 126
      %v404 = vpop.permute.xlu0 %403
      %405 = vrot.lane.b32.xlu0 %v378, 126
      %v406 = vpop.permute.xlu0 %405
      %407 = vrot.lane.b32.xlu0 %v379, 126
      %v408 = vpop.permute.xlu0 %407
      %v409 = vrot.slane %v404, 4
      %v410 = vrot.slane %v406, 4
      %v411 = vrot.slane %v408, 4
      %v412 = vsel %vm342, %v409, %v410
      %vm413 = vcmask 1031168
      %v414 = vsel %vm413, %v404, %v412
      %v415 = vsel %vm342, %v410, %v411
      %v416 = vsel %vm413, %v406, %v415
      %v420 = vadd.f32 %v400, %v414
      %v421 = vadd.f32 %v401, %v416
      %v422 = vadd.f32 %v402, %v408
      %v423 = vld [vmem:[%s300 + $0x4] sm:$0xff]
      %v424 = vld [vmem:[%s300 + $0xc] sm:$0xff]
      %v427 = vcombine.high %v423, %v423
      %v428 = vcombine.high %v424, %v424
      %431 = vst [vmem:[#allocation2] sm:$0xf] %v423
      %432 = vst [vmem:[#allocation2 + $0x8] sm:$0xf] %v427
      %433 = vst [vmem:[#allocation2 + $0x10] sm:$0xf] %v424
      %434 = vst [vmem:[#allocation2 + $0x18] sm:$0xf] %v428
      %v438 = vcombine.low %v420, %v420
      %v439 = vcombine.low %v421, %v421
      %v440 = vcombine.low %v422, %v422
      %441 = vrot.lane.b32.xlu0 %v438, 21
      %v442 = vpop.permute.xlu0 %441
      %443 = vrot.lane.b32.xlu0 %v420, 21
      %v444 = vpop.permute.xlu0 %443
      %445 = vrot.lane.b32.xlu0 %v439, 21
      %v446 = vpop.permute.xlu0 %445
      %447 = vrot.lane.b32.xlu0 %v421, 21
      %v448 = vpop.permute.xlu0 %447
      %449 = vrot.lane.b32.xlu0 %v440, 21
      %v450 = vpop.permute.xlu0 %449
      %vm451 = vcmask 171008
      %v452 = vsel %vm451, %v442, %v444
      %v453 = vsel %vm451, %v444, %v446
      %v454 = vsel %vm451, %v446, %v448
      %v455 = vsel %vm451, %v448, %v450
      %460 = vst [vmem:[#allocation2] sm:$0xf0] %v452
      %461 = vst [vmem:[#allocation2 + $0x8] sm:$0xf0] %v453
      %462 = vst [vmem:[#allocation2 + $0x10] sm:$0xf0] %v454
      %463 = vst [vmem:[#allocation2 + $0x18] sm:$0xf0] %v455
      %v464 = vld [vmem:[%s2] sm:$0xff]
      %v465 = vld [vmem:[%s2 + $0x8] sm:$0xff]
      %v466 = vld [vmem:[%s2 + $0x10] sm:$0xff]
      %v467 = vld [vmem:[%s2 + $0x18] sm:$0xff]
      %v468 = vld [vmem:[%s2 + $0x20] sm:$0xff]
      %v469 = vld [vmem:[%s2 + $0x28] sm:$0xff]
      %v470 = vld [vmem:[%s2 + $0x30] sm:$0xff]
      %v471 = vld [vmem:[%s2 + $0x38] sm:$0xff]
      %v472 = vld [vmem:[%s2 + $0x40] sm:$0xff]
      %v473 = vld [vmem:[#allocation2] sm:$0xff]
      %v474 = vld [vmem:[#allocation2 + $0x8] sm:$0xff]
      %v475 = vld [vmem:[#allocation2 + $0x10] sm:$0xff]
      %v476 = vld [vmem:[#allocation2 + $0x18] sm:$0xff]
      %v477 = vld [vmem:[%s3] sm:$0xff]
      %v478 = vld [vmem:[%s3 + $0x8] sm:$0xff]
      %v479 = vld [vmem:[%s3 + $0x10] sm:$0xff]
      %v480 = vld [vmem:[%s3 + $0x18] sm:$0xff]
      %v481 = vld [vmem:[%s3 + $0x20] sm:$0xff]
      %v482 = vld [vmem:[%s3 + $0x28] sm:$0xff]
      %v483 = vld [vmem:[%s3 + $0x30] sm:$0xff]
      %v484 = vld [vmem:[%s3 + $0x38] sm:$0xff]
      %v485 = vld [vmem:[%s3 + $0x40] sm:$0xff]
      %487 = vset.pattern.permute.xlu0 0
      %488 = vperm.xlu0 %487, %v477
      %v489 = vpop.permute.xlu0 %488
      %492 = vset.pattern.permute.xlu0 0
      %493 = vperm.xlu0 %492, %v478
      %v494 = vpop.permute.xlu0 %493
      %497 = vset.pattern.permute.xlu0 0
      %498 = vperm.xlu0 %497, %v479
      %v499 = vpop.permute.xlu0 %498
      %502 = vset.pattern.permute.xlu0 0
      %503 = vperm.xlu0 %502, %v480
      %v504 = vpop.permute.xlu0 %503
      %507 = vset.pattern.permute.xlu0 0
      %508 = vperm.xlu0 %507, %v481
      %v509 = vpop.permute.xlu0 %508
      %512 = vset.pattern.permute.xlu0 0
      %513 = vperm.xlu0 %512, %v482
      %v514 = vpop.permute.xlu0 %513
      %517 = vset.pattern.permute.xlu0 0
      %518 = vperm.xlu0 %517, %v483
      %v519 = vpop.permute.xlu0 %518
      %522 = vset.pattern.permute.xlu0 0
      %523 = vperm.xlu0 %522, %v484
      %v524 = vpop.permute.xlu0 %523
      %527 = vset.pattern.permute.xlu0 0
      %528 = vperm.xlu0 %527, %v485
      %v529 = vpop.permute.xlu0 %528
      %vm531 = vcmask 64512
      %v533 = vsel %vm531, %v464, 0
      %v536 = vsel %vm531, %v465, 0
      %v539 = vsel %vm531, %v466, 0
      %v542 = vsel %vm531, %v467, 0
      %v545 = vsel %vm531, %v468, 0
      %v548 = vsel %vm531, %v469, 0
      %v551 = vsel %vm531, %v470, 0
      %v554 = vsel %vm531, %v471, 0
      %v557 = vsel %vm531, %v472, 0
      %559 = vmatprep.subr.mxu0 0.0
      %560 = vmatpush1.msra.mxu0 0.0
      %561 = vmatprep.subr.mxu0 0.0
      %562 = vmatpush1.msra.mxu0 0.0
      %563 = vmatprep.subr.mxu0 0.0
      %564 = vmatpush1.msra.mxu0 0.0
      %565 = vmatprep.subr.mxu0 0.0
      %566 = vmatpush1.msra.mxu0 0.0
      %567 = vmatprep.subr.mxu0 0.0
      %568 = vmatpush1.msra.mxu0 0.0
      %569 = vmatprep.subr.mxu0 0.0
      %570 = vmatpush1.msra.mxu0 0.0
      %571 = vmatprep.subr.mxu0 0.0
      %572 = vmatpush1.msra.mxu0 0.0
      %573 = vmatprep.subr.mxu0 0.0
      %574 = vmatpush1.msra.mxu0 0.0
      %575 = vmatprep.subr.mxu0 0.0
      %576 = vmatpush1.msra.mxu0 0.0
      %577 = vmatprep.subr.mxu0 0.0
      %578 = vmatpush1.msra.mxu0 0.0
      %579 = vmatprep.subr.mxu0 0.0
      %580 = vmatpush1.msra.mxu0 0.0
      %581 = vmatprep.subr.mxu0 0.0
      %582 = vmatpush1.msra.mxu0 0.0
      %583 = vmatprep.subr.mxu0 0.0
      %584 = vmatpush1.msra.mxu0 0.0
      %585 = vmatprep.subr.mxu0 0.0
      %586 = vmatpush1.msra.mxu0 0.0
      %587 = vmatprep.subr.mxu0 0.0
      %588 = vmatpush1.msra.mxu0 0.0
      %589 = vmatprep.subr.mxu0 %v474
      %590 = vmatpush1.msra.mxu0 %v473
      %591 = vmatprep.subr.mxu0 0.0
      %592 = vmatpush2.msra.mxu0 0.0
      %593 = vmatprep.subr.mxu0 0.0
      %594 = vmatpush2.msra.mxu0 0.0
      %595 = vmatprep.subr.mxu0 0.0
      %596 = vmatpush2.msra.mxu0 0.0
      %597 = vmatprep.subr.mxu0 0.0
      %598 = vmatpush2.msra.mxu0 0.0
      %599 = vmatprep.subr.mxu0 0.0
      %600 = vmatpush2.msra.mxu0 0.0
      %601 = vmatprep.subr.mxu0 0.0
      %602 = vmatpush2.msra.mxu0 0.0
      %603 = vmatprep.subr.mxu0 0.0
      %604 = vmatpush2.msra.mxu0 0.0
      %605 = vmatprep.subr.mxu0 0.0
      %606 = vmatpush2.msra.mxu0 0.0
      %607 = vmatprep.subr.mxu0 0.0
      %608 = vmatpush2.msra.mxu0 0.0
      %609 = vmatprep.subr.mxu0 0.0
      %610 = vmatpush2.msra.mxu0 0.0
      %611 = vmatprep.subr.mxu0 0.0
      %612 = vmatpush2.msra.mxu0 0.0
      %613 = vmatprep.subr.mxu0 0.0
      %614 = vmatpush2.msra.mxu0 0.0
      %615 = vmatprep.subr.mxu0 0.0
      %616 = vmatpush2.msra.mxu0 0.0
      %617 = vmatprep.subr.mxu0 0.0
      %618 = vmatpush2.msra.mxu0 0.0
      %619 = vmatprep.subr.mxu0 0.0
      %620 = vmatpush2.msra.mxu0 0.0
      %621 = vmatprep.subr.mxu0 0.0
      %622 = vmatpush2.msra.mxu0 0.0
      %623 = vmatprep.mubr.f32.mxu0 0.0
      %624 = vmatmul.mubr.f32.gmra.mxu0 %v533
      %v625 = vpop.f32.mrf.mxu0
      %v626 = vadd.f32 %v489, %v625
      %v627 = vpop.f32.mrf.mxu0
      %v628 = vadd.f32 %v489, %v627
      %629 = vmatprep.mubr.f32.mxu0 0.0
      %630 = vmatmul.mubr.f32.gmra.mxu0 %v536
      %v631 = vpop.f32.mrf.mxu0
      %v632 = vadd.f32 %v494, %v631
      %v633 = vpop.f32.mrf.mxu0
      %v634 = vadd.f32 %v494, %v633
      %635 = vmatprep.mubr.f32.mxu0 0.0
      %636 = vmatmul.mubr.f32.gmra.mxu0 %v539
      %v637 = vpop.f32.mrf.mxu0
      %v638 = vadd.f32 %v499, %v637
      %v639 = vpop.f32.mrf.mxu0
      %v640 = vadd.f32 %v499, %v639
      %641 = vmatprep.mubr.f32.mxu0 0.0
      %642 = vmatmul.mubr.f32.gmra.mxu0 %v542
      %v643 = vpop.f32.mrf.mxu0
      %v644 = vadd.f32 %v504, %v643
      %v645 = vpop.f32.mrf.mxu0
      %v646 = vadd.f32 %v504, %v645
      %647 = vmatprep.mubr.f32.mxu0 0.0
      %648 = vmatmul.mubr.f32.gmra.mxu0 %v545
      %v649 = vpop.f32.mrf.mxu0
      %v650 = vadd.f32 %v509, %v649
      %v651 = vpop.f32.mrf.mxu0
      %v652 = vadd.f32 %v509, %v651
      %653 = vmatprep.mubr.f32.mxu0 0.0
      %654 = vmatmul.mubr.f32.gmra.mxu0 %v548
      %v655 = vpop.f32.mrf.mxu0
      %v656 = vadd.f32 %v514, %v655
      %v657 = vpop.f32.mrf.mxu0
      %v658 = vadd.f32 %v514, %v657
      %659 = vmatprep.mubr.f32.mxu0 0.0
      %660 = vmatmul.mubr.f32.gmra.mxu0 %v551
      %v661 = vpop.f32.mrf.mxu0
      %v662 = vadd.f32 %v519, %v661
      %v663 = vpop.f32.mrf.mxu0
      %v664 = vadd.f32 %v519, %v663
      %665 = vmatprep.mubr.f32.mxu0 0.0
      %666 = vmatmul.mubr.f32.gmra.mxu0 %v554
      %v667 = vpop.f32.mrf.mxu0
      %v668 = vadd.f32 %v524, %v667
      %v669 = vpop.f32.mrf.mxu0
      %v670 = vadd.f32 %v524, %v669
      %671 = vmatprep.mubr.f32.mxu0 0.0
      %672 = vmatmul.mubr.f32.gmra.mxu0 %v557
      %v673 = vpop.f32.mrf.mxu0
      %v674 = vadd.f32 %v529, %v673
      %v675 = vpop.f32.mrf.mxu0
      %v676 = vadd.f32 %v529, %v675
      %677 = vdwg.mxu0
      %678 = vmatprep.subr.mxu0 0.0
      %679 = vmatpush1.msra.mxu0 0.0
      %680 = vmatprep.subr.mxu0 0.0
      %681 = vmatpush1.msra.mxu0 0.0
      %682 = vmatprep.subr.mxu0 0.0
      %683 = vmatpush1.msra.mxu0 0.0
      %684 = vmatprep.subr.mxu0 0.0
      %685 = vmatpush1.msra.mxu0 0.0
      %686 = vmatprep.subr.mxu0 0.0
      %687 = vmatpush1.msra.mxu0 0.0
      %688 = vmatprep.subr.mxu0 0.0
      %689 = vmatpush1.msra.mxu0 0.0
      %690 = vmatprep.subr.mxu0 0.0
      %691 = vmatpush1.msra.mxu0 0.0
      %692 = vmatprep.subr.mxu0 0.0
      %693 = vmatpush1.msra.mxu0 0.0
      %694 = vmatprep.subr.mxu0 0.0
      %695 = vmatpush1.msra.mxu0 0.0
      %696 = vmatprep.subr.mxu0 0.0
      %697 = vmatpush1.msra.mxu0 0.0
      %698 = vmatprep.subr.mxu0 0.0
      %699 = vmatpush1.msra.mxu0 0.0
      %700 = vmatprep.subr.mxu0 0.0
      %701 = vmatpush1.msra.mxu0 0.0
      %702 = vmatprep.subr.mxu0 0.0
      %703 = vmatpush1.msra.mxu0 0.0
      %704 = vmatprep.subr.mxu0 0.0
      %705 = vmatpush1.msra.mxu0 0.0
      %706 = vmatprep.subr.mxu0 0.0
      %707 = vmatpush1.msra.mxu0 0.0
      %708 = vmatprep.subr.mxu0 %v476
      %709 = vmatpush1.msra.mxu0 %v475
      %710 = vmatprep.subr.mxu0 0.0
      %711 = vmatpush2.msra.mxu0 0.0
      %712 = vmatprep.subr.mxu0 0.0
      %713 = vmatpush2.msra.mxu0 0.0
      %714 = vmatprep.subr.mxu0 0.0
      %715 = vmatpush2.msra.mxu0 0.0
      %716 = vmatprep.subr.mxu0 0.0
      %717 = vmatpush2.msra.mxu0 0.0
      %718 = vmatprep.subr.mxu0 0.0
      %719 = vmatpush2.msra.mxu0 0.0
      %720 = vmatprep.subr.mxu0 0.0
      %721 = vmatpush2.msra.mxu0 0.0
      %722 = vmatprep.subr.mxu0 0.0
      %723 = vmatpush2.msra.mxu0 0.0
      %724 = vmatprep.subr.mxu0 0.0
      %725 = vmatpush2.msra.mxu0 0.0
      %726 = vmatprep.subr.mxu0 0.0
      %727 = vmatpush2.msra.mxu0 0.0
      %728 = vmatprep.subr.mxu0 0.0
      %729 = vmatpush2.msra.mxu0 0.0
      %730 = vmatprep.subr.mxu0 0.0
      %731 = vmatpush2.msra.mxu0 0.0
      %732 = vmatprep.subr.mxu0 0.0
      %733 = vmatpush2.msra.mxu0 0.0
      %734 = vmatprep.subr.mxu0 0.0
      %735 = vmatpush2.msra.mxu0 0.0
      %736 = vmatprep.subr.mxu0 0.0
      %737 = vmatpush2.msra.mxu0 0.0
      %738 = vmatprep.subr.mxu0 0.0
      %739 = vmatpush2.msra.mxu0 0.0
      %740 = vmatprep.subr.mxu0 0.0
      %741 = vmatpush2.msra.mxu0 0.0
      %742 = vmatprep.mubr.f32.mxu0 0.0
      %743 = vmatmul.mubr.f32.gmra.mxu0 %v533
      %v744 = vpop.f32.mrf.mxu0
      %v745 = vadd.f32 %v489, %v744
      %v746 = vpop.f32.mrf.mxu0
      %v747 = vadd.f32 %v489, %v746
      %748 = vmatprep.mubr.f32.mxu0 0.0
      %749 = vmatmul.mubr.f32.gmra.mxu0 %v536
      %v750 = vpop.f32.mrf.mxu0
      %v751 = vadd.f32 %v494, %v750
      %v752 = vpop.f32.mrf.mxu0
      %v753 = vadd.f32 %v494, %v752
      %754 = vmatprep.mubr.f32.mxu0 0.0
      %755 = vmatmul.mubr.f32.gmra.mxu0 %v539
      %v756 = vpop.f32.mrf.mxu0
      %v757 = vadd.f32 %v499, %v756
      %v758 = vpop.f32.mrf.mxu0
      %v759 = vadd.f32 %v499, %v758
      %760 = vmatprep.mubr.f32.mxu0 0.0
      %761 = vmatmul.mubr.f32.gmra.mxu0 %v542
      %v762 = vpop.f32.mrf.mxu0
      %v763 = vadd.f32 %v504, %v762
      %v764 = vpop.f32.mrf.mxu0
      %v765 = vadd.f32 %v504, %v764
      %766 = vmatprep.mubr.f32.mxu0 0.0
      %767 = vmatmul.mubr.f32.gmra.mxu0 %v545
      %v768 = vpop.f32.mrf.mxu0
      %v769 = vadd.f32 %v509, %v768
      %v770 = vpop.f32.mrf.mxu0
      %v771 = vadd.f32 %v509, %v770
      %772 = vmatprep.mubr.f32.mxu0 0.0
      %773 = vmatmul.mubr.f32.gmra.mxu0 %v548
      %v774 = vpop.f32.mrf.mxu0
      %v775 = vadd.f32 %v514, %v774
      %v776 = vpop.f32.mrf.mxu0
      %v777 = vadd.f32 %v514, %v776
      %778 = vmatprep.mubr.f32.mxu0 0.0
      %779 = vmatmul.mubr.f32.gmra.mxu0 %v551
      %v780 = vpop.f32.mrf.mxu0
      %v781 = vadd.f32 %v519, %v780
      %v782 = vpop.f32.mrf.mxu0
      %v783 = vadd.f32 %v519, %v782
      %784 = vmatprep.mubr.f32.mxu0 0.0
      %785 = vmatmul.mubr.f32.gmra.mxu0 %v554
      %v786 = vpop.f32.mrf.mxu0
      %v787 = vadd.f32 %v524, %v786
      %v788 = vpop.f32.mrf.mxu0
      %v789 = vadd.f32 %v524, %v788
      %790 = vmatprep.mubr.f32.mxu0 0.0
      %791 = vmatmul.mubr.f32.gmra.mxu0 %v557
      %v792 = vpop.f32.mrf.mxu0
      %v793 = vadd.f32 %v529, %v792
      %v794 = vpop.f32.mrf.mxu0
      %v795 = vadd.f32 %v529, %v794
      %796 = vdwg.mxu0
      %797 = vst [vmem:[%s305] sm:$0xff] %v626
      %798 = vst [vmem:[%s305 + $0x8] sm:$0xff] %v628
      %799 = vst [vmem:[%s305 + $0x10] sm:$0xff] %v745
      %800 = vst [vmem:[%s305 + $0x18] sm:$0xff] %v747
      %801 = vst [vmem:[%s305 + $0x20] sm:$0xff] %v632
      %802 = vst [vmem:[%s305 + $0x28] sm:$0xff] %v634
      %803 = vst [vmem:[%s305 + $0x30] sm:$0xff] %v751
      %804 = vst [vmem:[%s305 + $0x38] sm:$0xff] %v753
      %805 = vst [vmem:[%s305 + $0x100] sm:$0xff] %v662
      %806 = vst [vmem:[%s305 + $0x108] sm:$0xff] %v664
      %807 = vst [vmem:[%s305 + $0x110] sm:$0xff] %v781
      %808 = vst [vmem:[%s305 + $0x118] sm:$0xff] %v783
      %809 = vst [vmem:[%s305 + $0x120] sm:$0xff] %v668
      %810 = vst [vmem:[%s305 + $0x128] sm:$0xff] %v670
      %811 = vst [vmem:[%s305 + $0x130] sm:$0xff] %v787
      %812 = vst [vmem:[%s305 + $0x138] sm:$0xff] %v789
      %813 = vst [vmem:[%s305 + $0x140] sm:$0xff] %v674
      %814 = vst [vmem:[%s305 + $0x148] sm:$0xff] %v676
      %815 = vst [vmem:[%s305 + $0x150] sm:$0xff] %v793
      %816 = vst [vmem:[%s305 + $0x158] sm:$0xff] %v795
      %v818 = vlaneseq
      %v819 = vshrl.u32 %v818, 7
      %v820 = vsub.s32 0, %v819
      %v821 = vrot.slane %v307, %v820
      %v822 = vlaneseq
      %v823 = vshrl.u32 %v822, 7
      %v824 = vsub.s32 1, %v823
      %v825 = vrot.slane %v307, %v824
      %v826 = vlaneseq
      %v827 = vshrl.u32 %v826, 7
      %v828 = vsub.s32 2, %v827
      %v829 = vrot.slane %v307, %v828
      %v830 = vlaneseq
      %v831 = vshrl.u32 %v830, 7
      %v832 = vsub.s32 3, %v831
      %v833 = vrot.slane %v307, %v832
      %v838 = vmul.f32 %v638, %v821
      %v839 = vmul.f32 %v640, %v825
      %v840 = vmul.f32 %v757, %v829
      %v841 = vmul.f32 %v759, %v833
      %v842 = vmul.f32 %v644, %v821
      %v843 = vmul.f32 %v646, %v825
      %v844 = vmul.f32 %v763, %v829
      %v845 = vmul.f32 %v765, %v833
      %v846 = vmul.f32 %v650, %v821
      %v847 = vmul.f32 %v652, %v825
      %v848 = vmul.f32 %v769, %v829
      %v849 = vmul.f32 %v771, %v833
      %v850 = vmul.f32 %v656, %v821
      %v851 = vmul.f32 %v658, %v825
      %v852 = vmul.f32 %v775, %v829
      %v853 = vmul.f32 %v777, %v833
      %v854 = vpack.c.bf16 %v842, %v838
      %v855 = vpack.c.bf16 %v843, %v839
      %v856 = vpack.c.bf16 %v844, %v840
      %v857 = vpack.c.bf16 %v845, %v841
      %v858 = vpack.c.bf16 %v850, %v846
      %v859 = vpack.c.bf16 %v851, %v847
      %v860 = vpack.c.bf16 %v852, %v848
      %v861 = vpack.c.bf16 %v853, %v849
      %v870 = vunpack.c.l.b16 %v854
      %v871 = vunpack.c.l.b16 %v855
      %v872 = vunpack.c.l.b16 %v856
      %v873 = vunpack.c.l.b16 %v857
      %v874 = vunpack.c.h.b16 %v854
      %v875 = vunpack.c.h.b16 %v855
      %v876 = vunpack.c.h.b16 %v856
      %v877 = vunpack.c.h.b16 %v857
      %v878 = vunpack.c.l.b16 %v858
      %v879 = vunpack.c.l.b16 %v859
      %v880 = vunpack.c.l.b16 %v860
      %v881 = vunpack.c.l.b16 %v861
      %v882 = vunpack.c.h.b16 %v858
      %v883 = vunpack.c.h.b16 %v859
      %v884 = vunpack.c.h.b16 %v860
      %v885 = vunpack.c.h.b16 %v861
      %v886 = vpack.c.b16 %v871, %v870
      %v887 = vpack.c.b16 %v873, %v872
      %v888 = vpack.c.b16 %v875, %v874
      %v889 = vpack.c.b16 %v877, %v876
      %v890 = vpack.c.b16 %v879, %v878
      %v891 = vpack.c.b16 %v881, %v880
      %v892 = vpack.c.b16 %v883, %v882
      %v893 = vpack.c.b16 %v885, %v884
      %902 = vst [vmem:[#allocation3 + $0x4] sm:$0xff] %v886
      %903 = vst [vmem:[#allocation3 + $0xc] sm:$0xff] %v887
      %904 = vst [vmem:[#allocation3 + $0x1c] sm:$0xff] %v888
      %905 = vst [vmem:[#allocation3 + $0x24] sm:$0xff] %v889
      %906 = vst [vmem:[#allocation3 + $0x34] sm:$0xff] %v890
      %907 = vst [vmem:[#allocation3 + $0x3c] sm:$0xff] %v891
      %908 = vst [vmem:[#allocation3 + $0x4c] sm:$0xff] %v892
      %909 = vst [vmem:[#allocation3 + $0x54] sm:$0xff] %v893
      %v910 = vld [vmem:[#allocation3] sm:$0xff]
      %v911 = vld [vmem:[#allocation3 + $0x8] sm:$0xff]
      %v912 = vld [vmem:[#allocation3 + $0x10] sm:$0xf]
      %v913 = vld [vmem:[#allocation3 + $0x18] sm:$0xff]
      %v914 = vld [vmem:[#allocation3 + $0x20] sm:$0xff]
      %v915 = vld [vmem:[#allocation3 + $0x28] sm:$0xf]
      %922 = vrot.lane.b32.xlu0 %v910, 42
      %v923 = vpop.permute.xlu0 %922
      %924 = vrot.lane.b32.xlu0 %v911, 42
      %v925 = vpop.permute.xlu0 %924
      %926 = vrot.lane.b32.xlu0 %v912, 42
      %v927 = vpop.permute.xlu0 %926
      %928 = vrot.lane.b32.xlu0 %v913, 42
      %v929 = vpop.permute.xlu0 %928
      %930 = vrot.lane.b32.xlu0 %v914, 42
      %v931 = vpop.permute.xlu0 %930
      %932 = vrot.lane.b32.xlu0 %v915, 42
      %v933 = vpop.permute.xlu0 %932
      %v934 = vrot.slane %v923, 4
      %v935 = vrot.slane %v925, 4
      %v936 = vrot.slane %v927, 4
      %v937 = vrot.slane %v929, 4
      %v938 = vrot.slane %v931, 4
      %v939 = vrot.slane %v933, 4
      %vm940 = vcmask 1043456
      %v941 = vsel %vm940, %v934, %v935
      %vm942 = vcmask 343040
      %v943 = vsel %vm942, %v923, %v941
      %v944 = vsel %vm940, %v935, %v936
      %v945 = vsel %vm942, %v925, %v944
      %v946 = vsel %vm940, %v937, %v938
      %v947 = vsel %vm942, %v929, %v946
      %v948 = vsel %vm940, %v938, %v939
      %v949 = vsel %vm942, %v931, %v948
      %954 = vst [vmem:[#allocation5] sm:$0xff] %v943
      %955 = vst [vmem:[#allocation5 + $0x8] sm:$0xff] %v945
      %956 = vst [vmem:[#allocation5 + $0x10] sm:$0xff] %v947
      %957 = vst [vmem:[#allocation5 + $0x18] sm:$0xff] %v949
      %v958 = vld [vmem:[#allocation3] sm:$0xff]
      %v959 = vld [vmem:[#allocation3 + $0x8] sm:$0xff]
      %v960 = vld [vmem:[#allocation3 + $0x10] sm:$0xf]
      %v961 = vld [vmem:[#allocation3 + $0x18] sm:$0xff]
      %v962 = vld [vmem:[#allocation3 + $0x20] sm:$0xff]
      %v963 = vld [vmem:[#allocation3 + $0x28] sm:$0xf]
      %970 = vrot.lane.b32.xlu0 %v958, 41
      %v971 = vpop.permute.xlu0 %970
      %972 = vrot.lane.b32.xlu0 %v959, 41
      %v973 = vpop.permute.xlu0 %972
      %974 = vrot.lane.b32.xlu0 %v960, 41
      %v975 = vpop.permute.xlu0 %974
      %976 = vrot.lane.b32.xlu0 %v961, 41
      %v977 = vpop.permute.xlu0 %976
      %978 = vrot.lane.b32.xlu0 %v962, 41
      %v979 = vpop.permute.xlu0 %978
      %980 = vrot.lane.b32.xlu0 %v963, 41
      %v981 = vpop.permute.xlu0 %980
      %v982 = vrot.slane %v971, 4
      %v983 = vrot.slane %v973, 4
      %v984 = vrot.slane %v975, 4
      %v985 = vrot.slane %v977, 4
      %v986 = vrot.slane %v979, 4
      %v987 = vrot.slane %v981, 4
      %v988 = vsel %vm940, %v982, %v983
      %vm989 = vcmask 334848
      %v990 = vsel %vm989, %v971, %v988
      %v991 = vsel %vm940, %v983, %v984
      %v992 = vsel %vm989, %v973, %v991
      %v993 = vsel %vm940, %v985, %v986
      %v994 = vsel %vm989, %v977, %v993
      %v995 = vsel %vm940, %v986, %v987
      %v996 = vsel %vm989, %v979, %v995
      %1001 = vst [vmem:[#allocation5 + $0x20] sm:$0xff] %v990
      %1002 = vst [vmem:[#allocation5 + $0x28] sm:$0xff] %v992
      %1003 = vst [vmem:[#allocation5 + $0x30] sm:$0xff] %v994
      %1004 = vst [vmem:[#allocation5 + $0x38] sm:$0xff] %v996
      %v1005 = vld [vmem:[#allocation3] sm:$0xff]
      %v1006 = vld [vmem:[#allocation3 + $0x8] sm:$0xff]
      %v1007 = vld [vmem:[#allocation3 + $0x10] sm:$0xf]
      %v1008 = vld [vmem:[#allocation3 + $0x18] sm:$0xff]
      %v1009 = vld [vmem:[#allocation3 + $0x20] sm:$0xff]
      %v1010 = vld [vmem:[#allocation3 + $0x28] sm:$0xf]
      %1017 = vrot.lane.b32.xlu0 %v1005, 40
      %v1018 = vpop.permute.xlu0 %1017
      %1019 = vrot.lane.b32.xlu0 %v1006, 40
      %v1020 = vpop.permute.xlu0 %1019
      %1021 = vrot.lane.b32.xlu0 %v1007, 40
      %v1022 = vpop.permute.xlu0 %1021
      %1023 = vrot.lane.b32.xlu0 %v1008, 40
      %v1024 = vpop.permute.xlu0 %1023
      %1025 = vrot.lane.b32.xlu0 %v1009, 40
      %v1026 = vpop.permute.xlu0 %1025
      %1027 = vrot.lane.b32.xlu0 %v1010, 40
      %v1028 = vpop.permute.xlu0 %1027
      %v1029 = vrot.slane %v1018, 4
      %v1030 = vrot.slane %v1020, 4
      %v1031 = vrot.slane %v1022, 4
      %v1032 = vrot.slane %v1024, 4
      %v1033 = vrot.slane %v1026, 4
      %v1034 = vrot.slane %v1028, 4
      %v1035 = vsel %vm940, %v1029, %v1030
      %vm1036 = vcmask 326656
      %v1037 = vsel %vm1036, %v1018, %v1035
      %v1038 = vsel %vm940, %v1030, %v1031
      %v1039 = vsel %vm1036, %v1020, %v1038
      %v1040 = vsel %vm940, %v1032, %v1033
      %v1041 = vsel %vm1036, %v1024, %v1040
      %v1042 = vsel %vm940, %v1033, %v1034
      %v1043 = vsel %vm1036, %v1026, %v1042
      %1048 = vst [vmem:[#allocation5 + $0x40] sm:$0xff] %v1037
      %1049 = vst [vmem:[#allocation5 + $0x48] sm:$0xff] %v1039
      %1050 = vst [vmem:[#allocation5 + $0x50] sm:$0xff] %v1041
      %1051 = vst [vmem:[#allocation5 + $0x58] sm:$0xff] %v1043
      %v1052 = vld [vmem:[#allocation3] sm:$0xff]
      %v1053 = vld [vmem:[#allocation3 + $0x8] sm:$0xff]
      %v1054 = vld [vmem:[#allocation3 + $0x10] sm:$0xf]
      %v1055 = vld [vmem:[#allocation3 + $0x18] sm:$0xff]
      %v1056 = vld [vmem:[#allocation3 + $0x20] sm:$0xff]
      %v1057 = vld [vmem:[#allocation3 + $0x28] sm:$0xf]
      %1064 = vrot.lane.b32.xlu0 %v1052, 39
      %v1065 = vpop.permute.xlu0 %1064
      %1066 = vrot.lane.b32.xlu0 %v1053, 39
      %v1067 = vpop.permute.xlu0 %1066
      %1068 = vrot.lane.b32.xlu0 %v1054, 39
      %v1069 = vpop.permute.xlu0 %1068
      %1070 = vrot.lane.b32.xlu0 %v1055, 39
      %v1071 = vpop.permute.xlu0 %1070
      %1072 = vrot.lane.b32.xlu0 %v1056, 39
      %v1073 = vpop.permute.xlu0 %1072
      %1074 = vrot.lane.b32.xlu0 %v1057, 39
      %v1075 = vpop.permute.xlu0 %1074
      %v1076 = vrot.slane %v1065, 4
      %v1077 = vrot.slane %v1067, 4
      %v1078 = vrot.slane %v1069, 4
      %v1079 = vrot.slane %v1071, 4
      %v1080 = vrot.slane %v1073, 4
      %v1081 = vrot.slane %v1075, 4
      %v1082 = vsel %vm940, %v1076, %v1077
      %vm1083 = vcmask 318464
      %v1084 = vsel %vm1083, %v1065, %v1082
      %v1085 = vsel %vm940, %v1077, %v1078
      %v1086 = vsel %vm1083, %v1067, %v1085
      %v1087 = vsel %vm940, %v1079, %v1080
      %v1088 = vsel %vm1083, %v1071, %v1087
      %v1089 = vsel %vm940, %v1080, %v1081
      %v1090 = vsel %vm1083, %v1073, %v1089
      %1095 = vst [vmem:[#allocation5 + $0x60] sm:$0xff] %v1084
      %1096 = vst [vmem:[#allocation5 + $0x68] sm:$0xff] %v1086
      %1097 = vst [vmem:[#allocation5 + $0x70] sm:$0xff] %v1088
      %1098 = vst [vmem:[#allocation5 + $0x78] sm:$0xff] %v1090
      %v1099 = vld [vmem:[#allocation3] sm:$0xff]
      %v1100 = vld [vmem:[#allocation3 + $0x8] sm:$0xff]
      %v1101 = vld [vmem:[#allocation3 + $0x10] sm:$0xf]
      %v1102 = vld [vmem:[#allocation3 + $0x18] sm:$0xff]
      %v1103 = vld [vmem:[#allocation3 + $0x20] sm:$0xff]
      %v1104 = vld [vmem:[#allocation3 + $0x28] sm:$0xf]
      %1111 = vrot.lane.b32.xlu0 %v1099, 38
      %v1112 = vpop.permute.xlu0 %1111
      %1113 = vrot.lane.b32.xlu0 %v1100, 38
      %v1114 = vpop.permute.xlu0 %1113
      %1115 = vrot.lane.b32.xlu0 %v1101, 38
      %v1116 = vpop.permute.xlu0 %1115
      %1117 = vrot.lane.b32.xlu0 %v1102, 38
      %v1118 = vpop.permute.xlu0 %1117
      %1119 = vrot.lane.b32.xlu0 %v1103, 38
      %v1120 = vpop.permute.xlu0 %1119
      %1121 = vrot.lane.b32.xlu0 %v1104, 38
      %v1122 = vpop.permute.xlu0 %1121
      %v1123 = vrot.slane %v1112, 4
      %v1124 = vrot.slane %v1114, 4
      %v1125 = vrot.slane %v1116, 4
      %v1126 = vrot.slane %v1118, 4
      %v1127 = vrot.slane %v1120, 4
      %v1128 = vrot.slane %v1122, 4
      %v1129 = vsel %vm940, %v1123, %v1124
      %vm1130 = vcmask 310272
      %v1131 = vsel %vm1130, %v1112, %v1129
      %v1132 = vsel %vm940, %v1124, %v1125
      %v1133 = vsel %vm1130, %v1114, %v1132
      %v1134 = vsel %vm940, %v1126, %v1127
      %v1135 = vsel %vm1130, %v1118, %v1134
      %v1136 = vsel %vm940, %v1127, %v1128
      %v1137 = vsel %vm1130, %v1120, %v1136
      %1142 = vst [vmem:[#allocation5 + $0x80] sm:$0xff] %v1131
      %1143 = vst [vmem:[#allocation5 + $0x88] sm:$0xff] %v1133
      %1144 = vst [vmem:[#allocation5 + $0x90] sm:$0xff] %v1135
      %1145 = vst [vmem:[#allocation5 + $0x98] sm:$0xff] %v1137
      %v1146 = vld [vmem:[#allocation3] sm:$0xff]
      %v1147 = vld [vmem:[#allocation3 + $0x8] sm:$0xff]
      %v1148 = vld [vmem:[#allocation3 + $0x10] sm:$0xf]
      %v1149 = vld [vmem:[#allocation3 + $0x18] sm:$0xff]
      %v1150 = vld [vmem:[#allocation3 + $0x20] sm:$0xff]
      %v1151 = vld [vmem:[#allocation3 + $0x28] sm:$0xf]
      %1158 = vrot.lane.b32.xlu0 %v1146, 22
      %v1159 = vpop.permute.xlu0 %1158
      %1160 = vrot.lane.b32.xlu0 %v1147, 22
      %v1161 = vpop.permute.xlu0 %1160
      %1162 = vrot.lane.b32.xlu0 %v1148, 22
      %v1163 = vpop.permute.xlu0 %1162
      %1164 = vrot.lane.b32.xlu0 %v1149, 22
      %v1165 = vpop.permute.xlu0 %1164
      %1166 = vrot.lane.b32.xlu0 %v1150, 22
      %v1167 = vpop.permute.xlu0 %1166
      %1168 = vrot.lane.b32.xlu0 %v1151, 22
      %v1169 = vpop.permute.xlu0 %1168
      %v1170 = vrot.slane %v1159, 4
      %v1171 = vrot.slane %v1161, 4
      %v1172 = vrot.slane %v1163, 4
      %v1173 = vrot.slane %v1165, 4
      %v1174 = vrot.slane %v1167, 4
      %v1175 = vrot.slane %v1169, 4
      %v1176 = vsel %vm940, %v1170, %v1171
      %vm1177 = vcmask 179200
      %v1178 = vsel %vm1177, %v1159, %v1176
      %v1179 = vsel %vm940, %v1171, %v1172
      %v1180 = vsel %vm1177, %v1161, %v1179
      %v1181 = vsel %vm940, %v1173, %v1174
      %v1182 = vsel %vm1177, %v1165, %v1181
      %v1183 = vsel %vm940, %v1174, %v1175
      %v1184 = vsel %vm1177, %v1167, %v1183
      %1189 = vst [vmem:[#allocation5 + $0xa0] sm:$0xff] %v1178
      %1190 = vst [vmem:[#allocation5 + $0xa8] sm:$0xff] %v1180
      %1191 = vst [vmem:[#allocation5 + $0xb0] sm:$0xff] %v1182
      %1192 = vst [vmem:[#allocation5 + $0xb8] sm:$0xff] %v1184
      %v1193 = vld [vmem:[#allocation3] sm:$0xff]
      %v1194 = vld [vmem:[#allocation3 + $0x8] sm:$0xff]
      %v1195 = vld [vmem:[#allocation3 + $0x10] sm:$0xf]
      %v1196 = vld [vmem:[#allocation3 + $0x18] sm:$0xff]
      %v1197 = vld [vmem:[#allocation3 + $0x20] sm:$0xff]
      %v1198 = vld [vmem:[#allocation3 + $0x28] sm:$0xf]
      %1205 = vrot.lane.b32.xlu0 %v1193, 21
      %v1206 = vpop.permute.xlu0 %1205
      %1207 = vrot.lane.b32.xlu0 %v1194, 21
      %v1208 = vpop.permute.xlu0 %1207
      %1209 = vrot.lane.b32.xlu0 %v1195, 21
      %v1210 = vpop.permute.xlu0 %1209
      %1211 = vrot.lane.b32.xlu0 %v1196, 21
      %v1212 = vpop.permute.xlu0 %1211
      %1213 = vrot.lane.b32.xlu0 %v1197, 21
      %v1214 = vpop.permute.xlu0 %1213
      %1215 = vrot.lane.b32.xlu0 %v1198, 21
      %v1216 = vpop.permute.xlu0 %1215
      %v1217 = vrot.slane %v1206, 4
      %v1218 = vrot.slane %v1208, 4
      %v1219 = vrot.slane %v1210, 4
      %v1220 = vrot.slane %v1212, 4
      %v1221 = vrot.slane %v1214, 4
      %v1222 = vrot.slane %v1216, 4
      %v1223 = vsel %vm940, %v1217, %v1218
      %vm1224 = vcmask 171008
      %v1225 = vsel %vm1224, %v1206, %v1223
      %v1226 = vsel %vm940, %v1218, %v1219
      %v1227 = vsel %vm1224, %v1208, %v1226
      %v1228 = vsel %vm940, %v1220, %v1221
      %v1229 = vsel %vm1224, %v1212, %v1228
      %v1230 = vsel %vm940, %v1221, %v1222
      %v1231 = vsel %vm1224, %v1214, %v1230
      %1236 = vst [vmem:[#allocation5 + $0xc0] sm:$0xff] %v1225
      %1237 = vst [vmem:[#allocation5 + $0xc8] sm:$0xff] %v1227
      %1238 = vst [vmem:[#allocation5 + $0xd0] sm:$0xff] %v1229
      %1239 = vst [vmem:[#allocation5 + $0xd8] sm:$0xff] %v1231
      %v1240 = vld [vmem:[#allocation3] sm:$0xff]
      %v1241 = vld [vmem:[#allocation3 + $0x8] sm:$0xff]
      %v1242 = vld [vmem:[#allocation3 + $0x10] sm:$0xf]
      %v1243 = vld [vmem:[#allocation3 + $0x18] sm:$0xff]
      %v1244 = vld [vmem:[#allocation3 + $0x20] sm:$0xff]
      %v1245 = vld [vmem:[#allocation3 + $0x28] sm:$0xf]
      %1252 = vrot.lane.b32.xlu0 %v1240, 20
      %v1253 = vpop.permute.xlu0 %1252
      %1254 = vrot.lane.b32.xlu0 %v1241, 20
      %v1255 = vpop.permute.xlu0 %1254
      %1256 = vrot.lane.b32.xlu0 %v1242, 20
      %v1257 = vpop.permute.xlu0 %1256
      %1258 = vrot.lane.b32.xlu0 %v1243, 20
      %v1259 = vpop.permute.xlu0 %1258
      %1260 = vrot.lane.b32.xlu0 %v1244, 20
      %v1261 = vpop.permute.xlu0 %1260
      %1262 = vrot.lane.b32.xlu0 %v1245, 20
      %v1263 = vpop.permute.xlu0 %1262
      %v1264 = vrot.slane %v1253, 4
      %v1265 = vrot.slane %v1255, 4
      %v1266 = vrot.slane %v1257, 4
      %v1267 = vrot.slane %v1259, 4
      %v1268 = vrot.slane %v1261, 4
      %v1269 = vrot.slane %v1263, 4
      %v1270 = vsel %vm940, %v1264, %v1265
      %vm1271 = vcmask 162816
      %v1272 = vsel %vm1271, %v1253, %v1270
      %v1273 = vsel %vm940, %v1265, %v1266
      %v1274 = vsel %vm1271, %v1255, %v1273
      %v1275 = vsel %vm940, %v1267, %v1268
      %v1276 = vsel %vm1271, %v1259, %v1275
      %v1277 = vsel %vm940, %v1268, %v1269
      %v1278 = vsel %vm1271, %v1261, %v1277
      %1283 = vst [vmem:[#allocation5 + $0xe0] sm:$0xff] %v1272
      %1284 = vst [vmem:[#allocation5 + $0xe8] sm:$0xff] %v1274
      %1285 = vst [vmem:[#allocation5 + $0xf0] sm:$0xff] %v1276
      %1286 = vst [vmem:[#allocation5 + $0xf8] sm:$0xff] %v1278
      %v1287 = vld [vmem:[#allocation3] sm:$0xff]
      %v1288 = vld [vmem:[#allocation3 + $0x8] sm:$0xff]
      %v1289 = vld [vmem:[#allocation3 + $0x10] sm:$0xf]
      %v1290 = vld [vmem:[#allocation3 + $0x18] sm:$0xff]
      %v1291 = vld [vmem:[#allocation3 + $0x20] sm:$0xff]
      %v1292 = vld [vmem:[#allocation3 + $0x28] sm:$0xf]
      %1299 = vrot.lane.b32.xlu0 %v1287, 19
      %v1300 = vpop.permute.xlu0 %1299
      %1301 = vrot.lane.b32.xlu0 %v1288, 19
      %v1302 = vpop.permute.xlu0 %1301
      %1303 = vrot.lane.b32.xlu0 %v1289, 19
      %v1304 = vpop.permute.xlu0 %1303
      %1305 = vrot.lane.b32.xlu0 %v1290, 19
      %v1306 = vpop.permute.xlu0 %1305
      %1307 = vrot.lane.b32.xlu0 %v1291, 19
      %v1308 = vpop.permute.xlu0 %1307
      %1309 = vrot.lane.b32.xlu0 %v1292, 19
      %v1310 = vpop.permute.xlu0 %1309
      %v1311 = vrot.slane %v1300, 4
      %v1312 = vrot.slane %v1302, 4
      %v1313 = vrot.slane %v1304, 4
      %v1314 = vrot.slane %v1306, 4
      %v1315 = vrot.slane %v1308, 4
      %v1316 = vrot.slane %v1310, 4
      %v1317 = vsel %vm940, %v1311, %v1312
      %vm1318 = vcmask 154624
      %v1319 = vsel %vm1318, %v1300, %v1317
      %v1320 = vsel %vm940, %v1312, %v1313
      %v1321 = vsel %vm1318, %v1302, %v1320
      %v1322 = vsel %vm940, %v1314, %v1315
      %v1323 = vsel %vm1318, %v1306, %v1322
      %v1324 = vsel %vm940, %v1315, %v1316
      %v1325 = vsel %vm1318, %v1308, %v1324
      %1330 = vst [vmem:[#allocation5 + $0x100] sm:$0xff] %v1319
      %1331 = vst [vmem:[#allocation5 + $0x108] sm:$0xff] %v1321
      %1332 = vst [vmem:[#allocation5 + $0x110] sm:$0xff] %v1323
      %1333 = vst [vmem:[#allocation5 + $0x118] sm:$0xff] %v1325
      %v1334 = vld [vmem:[#allocation3] sm:$0xff]
      %v1335 = vld [vmem:[#allocation3 + $0x8] sm:$0xff]
      %v1336 = vld [vmem:[#allocation3 + $0x10] sm:$0xf]
      %v1337 = vld [vmem:[#allocation3 + $0x18] sm:$0xff]
      %v1338 = vld [vmem:[#allocation3 + $0x20] sm:$0xff]
      %v1339 = vld [vmem:[#allocation3 + $0x28] sm:$0xf]
      %1346 = vrot.lane.b32.xlu0 %v1334, 18
      %v1347 = vpop.permute.xlu0 %1346
      %1348 = vrot.lane.b32.xlu0 %v1335, 18
      %v1349 = vpop.permute.xlu0 %1348
      %1350 = vrot.lane.b32.xlu0 %v1336, 18
      %v1351 = vpop.permute.xlu0 %1350
      %1352 = vrot.lane.b32.xlu0 %v1337, 18
      %v1353 = vpop.permute.xlu0 %1352
      %1354 = vrot.lane.b32.xlu0 %v1338, 18
      %v1355 = vpop.permute.xlu0 %1354
      %1356 = vrot.lane.b32.xlu0 %v1339, 18
      %v1357 = vpop.permute.xlu0 %1356
      %v1358 = vrot.slane %v1347, 4
      %v1359 = vrot.slane %v1349, 4
      %v1360 = vrot.slane %v1351, 4
      %v1361 = vrot.slane %v1353, 4
      %v1362 = vrot.slane %v1355, 4
      %v1363 = vrot.slane %v1357, 4
      %v1364 = vsel %vm940, %v1358, %v1359
      %vm1365 = vcmask 146432
      %v1366 = vsel %vm1365, %v1347, %v1364
      %v1367 = vsel %vm940, %v1359, %v1360
      %v1368 = vsel %vm1365, %v1349, %v1367
      %v1369 = vsel %vm940, %v1361, %v1362
      %v1370 = vsel %vm1365, %v1353, %v1369
      %v1371 = vsel %vm940, %v1362, %v1363
      %v1372 = vsel %vm1365, %v1355, %v1371
      %1377 = vst [vmem:[#allocation5 + $0x120] sm:$0xff] %v1366
      %1378 = vst [vmem:[#allocation5 + $0x128] sm:$0xff] %v1368
      %1379 = vst [vmem:[#allocation5 + $0x130] sm:$0xff] %v1370
      %1380 = vst [vmem:[#allocation5 + $0x138] sm:$0xff] %v1372
      %v1381 = vld [vmem:[#allocation3] sm:$0xff]
      %v1382 = vld [vmem:[#allocation3 + $0x8] sm:$0xff]
      %v1383 = vld [vmem:[#allocation3 + $0x10] sm:$0xf]
      %v1384 = vld [vmem:[#allocation3 + $0x18] sm:$0xff]
      %v1385 = vld [vmem:[#allocation3 + $0x20] sm:$0xff]
      %v1386 = vld [vmem:[#allocation3 + $0x28] sm:$0xf]
      %1393 = vrot.lane.b32.xlu0 %v1381, 2
      %v1394 = vpop.permute.xlu0 %1393
      %1395 = vrot.lane.b32.xlu0 %v1382, 2
      %v1396 = vpop.permute.xlu0 %1395
      %1397 = vrot.lane.b32.xlu0 %v1383, 2
      %v1398 = vpop.permute.xlu0 %1397
      %1399 = vrot.lane.b32.xlu0 %v1384, 2
      %v1400 = vpop.permute.xlu0 %1399
      %1401 = vrot.lane.b32.xlu0 %v1385, 2
      %v1402 = vpop.permute.xlu0 %1401
      %1403 = vrot.lane.b32.xlu0 %v1386, 2
      %v1404 = vpop.permute.xlu0 %1403
      %v1405 = vrot.slane %v1394, 4
      %v1406 = vrot.slane %v1396, 4
      %v1407 = vrot.slane %v1398, 4
      %v1408 = vrot.slane %v1400, 4
      %v1409 = vrot.slane %v1402, 4
      %v1410 = vrot.slane %v1404, 4
      %v1411 = vsel %vm940, %v1405, %v1406
      %vm1412 = vcmask 15360
      %v1413 = vsel %vm1412, %v1394, %v1411
      %v1414 = vsel %vm940, %v1406, %v1407
      %v1415 = vsel %vm1412, %v1396, %v1414
      %v1416 = vsel %vm940, %v1408, %v1409
      %v1417 = vsel %vm1412, %v1400, %v1416
      %v1418 = vsel %vm940, %v1409, %v1410
      %v1419 = vsel %vm1412, %v1402, %v1418
      %1424 = vst [vmem:[#allocation5 + $0x140] sm:$0xff] %v1413
      %1425 = vst [vmem:[#allocation5 + $0x148] sm:$0xff] %v1415
      %1426 = vst [vmem:[#allocation5 + $0x150] sm:$0xff] %v1417
      %1427 = vst [vmem:[#allocation5 + $0x158] sm:$0xff] %v1419
      %v1428 = vld [vmem:[#allocation3] sm:$0xff]
      %v1429 = vld [vmem:[#allocation3 + $0x8] sm:$0xff]
      %v1430 = vld [vmem:[#allocation3 + $0x10] sm:$0xf]
      %v1431 = vld [vmem:[#allocation3 + $0x18] sm:$0xff]
      %v1432 = vld [vmem:[#allocation3 + $0x20] sm:$0xff]
      %v1433 = vld [vmem:[#allocation3 + $0x28] sm:$0xf]
      %1440 = vrot.lane.b32.xlu0 %v1428, 1
      %v1441 = vpop.permute.xlu0 %1440
      %1442 = vrot.lane.b32.xlu0 %v1429, 1
      %v1443 = vpop.permute.xlu0 %1442
      %1444 = vrot.lane.b32.xlu0 %v1430, 1
      %v1445 = vpop.permute.xlu0 %1444
      %1446 = vrot.lane.b32.xlu0 %v1431, 1
      %v1447 = vpop.permute.xlu0 %1446
      %1448 = vrot.lane.b32.xlu0 %v1432, 1
      %v1449 = vpop.permute.xlu0 %1448
      %1450 = vrot.lane.b32.xlu0 %v1433, 1
      %v1451 = vpop.permute.xlu0 %1450
      %v1452 = vrot.slane %v1441, 4
      %v1453 = vrot.slane %v1443, 4
      %v1454 = vrot.slane %v1445, 4
      %v1455 = vrot.slane %v1447, 4
      %v1456 = vrot.slane %v1449, 4
      %v1457 = vrot.slane %v1451, 4
      %v1458 = vsel %vm940, %v1452, %v1453
      %vm1459 = vcmask 7168
      %v1460 = vsel %vm1459, %v1441, %v1458
      %v1461 = vsel %vm940, %v1453, %v1454
      %v1462 = vsel %vm1459, %v1443, %v1461
      %v1463 = vsel %vm940, %v1455, %v1456
      %v1464 = vsel %vm1459, %v1447, %v1463
      %v1465 = vsel %vm940, %v1456, %v1457
      %v1466 = vsel %vm1459, %v1449, %v1465
      %1471 = vst [vmem:[#allocation5 + $0x160] sm:$0xff] %v1460
      %1472 = vst [vmem:[#allocation5 + $0x168] sm:$0xff] %v1462
      %1473 = vst [vmem:[#allocation5 + $0x170] sm:$0xff] %v1464
      %1474 = vst [vmem:[#allocation5 + $0x178] sm:$0xff] %v1466
      %v1475 = vld [vmem:[#allocation3 + $0x4] sm:$0xff]
      %v1476 = vld [vmem:[#allocation3 + $0xc] sm:$0xff]
      %v1477 = vld [vmem:[#allocation3 + $0x1c] sm:$0xff]
      %v1478 = vld [vmem:[#allocation3 + $0x24] sm:$0xff]
      %1479 = vst [vmem:[#allocation5 + $0x180] sm:$0xff] %v1475
      %1480 = vst [vmem:[#allocation5 + $0x188] sm:$0xff] %v1476
      %1481 = vst [vmem:[#allocation5 + $0x190] sm:$0xff] %v1477
      %1482 = vst [vmem:[#allocation5 + $0x198] sm:$0xff] %v1478
      %v1483 = vld [vmem:[#allocation3 + $0x4] sm:$0xff]
      %v1484 = vld [vmem:[#allocation3 + $0xc] sm:$0xff]
      %v1485 = vld [vmem:[#allocation3 + $0x14] sm:$0xf]
      %v1486 = vld [vmem:[#allocation3 + $0x1c] sm:$0xff]
      %v1487 = vld [vmem:[#allocation3 + $0x24] sm:$0xff]
      %v1488 = vld [vmem:[#allocation3 + $0x2c] sm:$0xf]
      %1495 = vrot.lane.b32.xlu0 %v1483, 127
      %v1496 = vpop.permute.xlu0 %1495
      %1497 = vrot.lane.b32.xlu0 %v1484, 127
      %v1498 = vpop.permute.xlu0 %1497
      %1499 = vrot.lane.b32.xlu0 %v1485, 127
      %v1500 = vpop.permute.xlu0 %1499
      %1501 = vrot.lane.b32.xlu0 %v1486, 127
      %v1502 = vpop.permute.xlu0 %1501
      %1503 = vrot.lane.b32.xlu0 %v1487, 127
      %v1504 = vpop.permute.xlu0 %1503
      %1505 = vrot.lane.b32.xlu0 %v1488, 127
      %v1506 = vpop.permute.xlu0 %1505
      %v1507 = vrot.slane %v1496, 4
      %v1508 = vrot.slane %v1498, 4
      %v1509 = vrot.slane %v1500, 4
      %v1510 = vrot.slane %v1502, 4
      %v1511 = vrot.slane %v1504, 4
      %v1512 = vrot.slane %v1506, 4
      %v1513 = vsel %vm940, %v1507, %v1508
      %vm1514 = vcmask 1039360
      %v1515 = vsel %vm1514, %v1496, %v1513
      %v1516 = vsel %vm940, %v1508, %v1509
      %v1517 = vsel %vm1514, %v1498, %v1516
      %v1518 = vsel %vm940, %v1510, %v1511
      %v1519 = vsel %vm1514, %v1502, %v1518
      %v1520 = vsel %vm940, %v1511, %v1512
      %v1521 = vsel %vm1514, %v1504, %v1520
      %1526 = vst [vmem:[#allocation5 + $0x1a0] sm:$0xff] %v1515
      %1527 = vst [vmem:[#allocation5 + $0x1a8] sm:$0xff] %v1517
      %1528 = vst [vmem:[#allocation5 + $0x1b0] sm:$0xff] %v1519
      %1529 = vst [vmem:[#allocation5 + $0x1b8] sm:$0xff] %v1521
      %v1530 = vld [vmem:[#allocation3 + $0x4] sm:$0xff]
      %v1531 = vld [vmem:[#allocation3 + $0xc] sm:$0xff]
      %v1532 = vld [vmem:[#allocation3 + $0x14] sm:$0xf]
      %v1533 = vld [vmem:[#allocation3 + $0x1c] sm:$0xff]
      %v1534 = vld [vmem:[#allocation3 + $0x24] sm:$0xff]
      %v1535 = vld [vmem:[#allocation3 + $0x2c] sm:$0xf]
      %1542 = vrot.lane.b32.xlu0 %v1530, 126
      %v1543 = vpop.permute.xlu0 %1542
      %1544 = vrot.lane.b32.xlu0 %v1531, 126
      %v1545 = vpop.permute.xlu0 %1544
      %1546 = vrot.lane.b32.xlu0 %v1532, 126
      %v1547 = vpop.permute.xlu0 %1546
      %1548 = vrot.lane.b32.xlu0 %v1533, 126
      %v1549 = vpop.permute.xlu0 %1548
      %1550 = vrot.lane.b32.xlu0 %v1534, 126
      %v1551 = vpop.permute.xlu0 %1550
      %1552 = vrot.lane.b32.xlu0 %v1535, 126
      %v1553 = vpop.permute.xlu0 %1552
      %v1554 = vrot.slane %v1543, 4
      %v1555 = vrot.slane %v1545, 4
      %v1556 = vrot.slane %v1547, 4
      %v1557 = vrot.slane %v1549, 4
      %v1558 = vrot.slane %v1551, 4
      %v1559 = vrot.slane %v1553, 4
      %v1560 = vsel %vm940, %v1554, %v1555
      %vm1561 = vcmask 1031168
      %v1562 = vsel %vm1561, %v1543, %v1560
      %v1563 = vsel %vm940, %v1555, %v1556
      %v1564 = vsel %vm1561, %v1545, %v1563
      %v1565 = vsel %vm940, %v1557, %v1558
      %v1566 = vsel %vm1561, %v1549, %v1565
      %v1567 = vsel %vm940, %v1558, %v1559
      %v1568 = vsel %vm1561, %v1551, %v1567
      %1573 = vst [vmem:[#allocation5 + $0x1c0] sm:$0xff] %v1562
      %1574 = vst [vmem:[#allocation5 + $0x1c8] sm:$0xff] %v1564
      %1575 = vst [vmem:[#allocation5 + $0x1d0] sm:$0xff] %v1566
      %1576 = vst [vmem:[#allocation5 + $0x1d8] sm:$0xff] %v1568
      %v1577 = vld [vmem:[#allocation3 + $0x4] sm:$0xff]
      %v1578 = vld [vmem:[#allocation3 + $0xc] sm:$0xff]
      %v1579 = vld [vmem:[#allocation3 + $0x14] sm:$0xf]
      %v1580 = vld [vmem:[#allocation3 + $0x1c] sm:$0xff]
      %v1581 = vld [vmem:[#allocation3 + $0x24] sm:$0xff]
      %v1582 = vld [vmem:[#allocation3 + $0x2c] sm:$0xf]
      %1589 = vrot.lane.b32.xlu0 %v1577, 110
      %v1590 = vpop.permute.xlu0 %1589
      %1591 = vrot.lane.b32.xlu0 %v1578, 110
      %v1592 = vpop.permute.xlu0 %1591
      %1593 = vrot.lane.b32.xlu0 %v1579, 110
      %v1594 = vpop.permute.xlu0 %1593
      %1595 = vrot.lane.b32.xlu0 %v1580, 110
      %v1596 = vpop.permute.xlu0 %1595
      %1597 = vrot.lane.b32.xlu0 %v1581, 110
      %v1598 = vpop.permute.xlu0 %1597
      %1599 = vrot.lane.b32.xlu0 %v1582, 110
      %v1600 = vpop.permute.xlu0 %1599
      %v1601 = vrot.slane %v1590, 4
      %v1602 = vrot.slane %v1592, 4
      %v1603 = vrot.slane %v1594, 4
      %v1604 = vrot.slane %v1596, 4
      %v1605 = vrot.slane %v1598, 4
      %v1606 = vrot.slane %v1600, 4
      %v1607 = vsel %vm940, %v1601, %v1602
      %vm1608 = vcmask 900096
      %v1609 = vsel %vm1608, %v1590, %v1607
      %v1610 = vsel %vm940, %v1602, %v1603
      %v1611 = vsel %vm1608, %v1592, %v1610
      %v1612 = vsel %vm940, %v1604, %v1605
      %v1613 = vsel %vm1608, %v1596, %v1612
      %v1614 = vsel %vm940, %v1605, %v1606
      %v1615 = vsel %vm1608, %v1598, %v1614
      %1620 = vst [vmem:[#allocation5 + $0x1e0] sm:$0xff] %v1609
      %1621 = vst [vmem:[#allocation5 + $0x1e8] sm:$0xff] %v1611
      %1622 = vst [vmem:[#allocation5 + $0x1f0] sm:$0xff] %v1613
      %1623 = vst [vmem:[#allocation5 + $0x1f8] sm:$0xff] %v1615
      %v1624 = vld [vmem:[#allocation3 + $0x4] sm:$0xff]
      %v1625 = vld [vmem:[#allocation3 + $0xc] sm:$0xff]
      %v1626 = vld [vmem:[#allocation3 + $0x14] sm:$0xf]
      %v1627 = vld [vmem:[#allocation3 + $0x1c] sm:$0xff]
      %v1628 = vld [vmem:[#allocation3 + $0x24] sm:$0xff]
      %v1629 = vld [vmem:[#allocation3 + $0x2c] sm:$0xf]
      %1636 = vrot.lane.b32.xlu0 %v1624, 109
      %v1637 = vpop.permute.xlu0 %1636
      %1638 = vrot.lane.b32.xlu0 %v1625, 109
      %v1639 = vpop.permute.xlu0 %1638
      %1640 = vrot.lane.b32.xlu0 %v1626, 109
      %v1641 = vpop.permute.xlu0 %1640
      %1642 = vrot.lane.b32.xlu0 %v1627, 109
      %v1643 = vpop.permute.xlu0 %1642
      %1644 = vrot.lane.b32.xlu0 %v1628, 109
      %v1645 = vpop.permute.xlu0 %1644
      %1646 = vrot.lane.b32.xlu0 %v1629, 109
      %v1647 = vpop.permute.xlu0 %1646
      %v1648 = vrot.slane %v1637, 4
      %v1649 = vrot.slane %v1639, 4
      %v1650 = vrot.slane %v1641, 4
      %v1651 = vrot.slane %v1643, 4
      %v1652 = vrot.slane %v1645, 4
      %v1653 = vrot.slane %v1647, 4
      %v1654 = vsel %vm940, %v1648, %v1649
      %vm1655 = vcmask 891904
      %v1656 = vsel %vm1655, %v1637, %v1654
      %v1657 = vsel %vm940, %v1649, %v1650
      %v1658 = vsel %vm1655, %v1639, %v1657
      %v1659 = vsel %vm940, %v1651, %v1652
      %v1660 = vsel %vm1655, %v1643, %v1659
      %v1661 = vsel %vm940, %v1652, %v1653
      %v1662 = vsel %vm1655, %v1645, %v1661
      %1667 = vst [vmem:[#allocation5 + $0x200] sm:$0xff] %v1656
      %1668 = vst [vmem:[#allocation5 + $0x208] sm:$0xff] %v1658
      %1669 = vst [vmem:[#allocation5 + $0x210] sm:$0xff] %v1660
      %1670 = vst [vmem:[#allocation5 + $0x218] sm:$0xff] %v1662
      %v1671 = vld [vmem:[#allocation3 + $0x4] sm:$0xff]
      %v1672 = vld [vmem:[#allocation3 + $0xc] sm:$0xff]
      %v1673 = vld [vmem:[#allocation3 + $0x14] sm:$0xf]
      %v1674 = vld [vmem:[#allocation3 + $0x1c] sm:$0xff]
      %v1675 = vld [vmem:[#allocation3 + $0x24] sm:$0xff]
      %v1676 = vld [vmem:[#allocation3 + $0x2c] sm:$0xf]
      %1683 = vrot.lane.b32.xlu0 %v1671, 108
      %v1684 = vpop.permute.xlu0 %1683
      %1685 = vrot.lane.b32.xlu0 %v1672, 108
      %v1686 = vpop.permute.xlu0 %1685
      %1687 = vrot.lane.b32.xlu0 %v1673, 108
      %v1688 = vpop.permute.xlu0 %1687
      %1689 = vrot.lane.b32.xlu0 %v1674, 108
      %v1690 = vpop.permute.xlu0 %1689
      %1691 = vrot.lane.b32.xlu0 %v1675, 108
      %v1692 = vpop.permute.xlu0 %1691
      %1693 = vrot.lane.b32.xlu0 %v1676, 108
      %v1694 = vpop.permute.xlu0 %1693
      %v1695 = vrot.slane %v1684, 4
      %v1696 = vrot.slane %v1686, 4
      %v1697 = vrot.slane %v1688, 4
      %v1698 = vrot.slane %v1690, 4
      %v1699 = vrot.slane %v1692, 4
      %v1700 = vrot.slane %v1694, 4
      %v1701 = vsel %vm940, %v1695, %v1696
      %vm1702 = vcmask 883712
      %v1703 = vsel %vm1702, %v1684, %v1701
      %v1704 = vsel %vm940, %v1696, %v1697
      %v1705 = vsel %vm1702, %v1686, %v1704
      %v1706 = vsel %vm940, %v1698, %v1699
      %v1707 = vsel %vm1702, %v1690, %v1706
      %v1708 = vsel %vm940, %v1699, %v1700
      %v1709 = vsel %vm1702, %v1692, %v1708
      %1714 = vst [vmem:[#allocation5 + $0x220] sm:$0xff] %v1703
      %1715 = vst [vmem:[#allocation5 + $0x228] sm:$0xff] %v1705
      %1716 = vst [vmem:[#allocation5 + $0x230] sm:$0xff] %v1707
      %1717 = vst [vmem:[#allocation5 + $0x238] sm:$0xff] %v1709
      %v1718 = vld [vmem:[#allocation3 + $0x4] sm:$0xff]
      %v1719 = vld [vmem:[#allocation3 + $0xc] sm:$0xff]
      %v1720 = vld [vmem:[#allocation3 + $0x14] sm:$0xf]
      %v1721 = vld [vmem:[#allocation3 + $0x1c] sm:$0xff]
      %v1722 = vld [vmem:[#allocation3 + $0x24] sm:$0xff]
      %v1723 = vld [vmem:[#allocation3 + $0x2c] sm:$0xf]
      %1730 = vrot.lane.b32.xlu0 %v1718, 107
      %v1731 = vpop.permute.xlu0 %1730
      %1732 = vrot.lane.b32.xlu0 %v1719, 107
      %v1733 = vpop.permute.xlu0 %1732
      %1734 = vrot.lane.b32.xlu0 %v1720, 107
      %v1735 = vpop.permute.xlu0 %1734
      %1736 = vrot.lane.b32.xlu0 %v1721, 107
      %v1737 = vpop.permute.xlu0 %1736
      %1738 = vrot.lane.b32.xlu0 %v1722, 107
      %v1739 = vpop.permute.xlu0 %1738
      %1740 = vrot.lane.b32.xlu0 %v1723, 107
      %v1741 = vpop.permute.xlu0 %1740
      %v1742 = vrot.slane %v1731, 4
      %v1743 = vrot.slane %v1733, 4
      %v1744 = vrot.slane %v1735, 4
      %v1745 = vrot.slane %v1737, 4
      %v1746 = vrot.slane %v1739, 4
      %v1747 = vrot.slane %v1741, 4
      %v1748 = vsel %vm940, %v1742, %v1743
      %vm1749 = vcmask 875520
      %v1750 = vsel %vm1749, %v1731, %v1748
      %v1751 = vsel %vm940, %v1743, %v1744
      %v1752 = vsel %vm1749, %v1733, %v1751
      %v1753 = vsel %vm940, %v1745, %v1746
      %v1754 = vsel %vm1749, %v1737, %v1753
      %v1755 = vsel %vm940, %v1746, %v1747
      %v1756 = vsel %vm1749, %v1739, %v1755
      %1761 = vst [vmem:[#allocation5 + $0x240] sm:$0xff] %v1750
      %1762 = vst [vmem:[#allocation5 + $0x248] sm:$0xff] %v1752
      %1763 = vst [vmem:[#allocation5 + $0x250] sm:$0xff] %v1754
      %1764 = vst [vmem:[#allocation5 + $0x258] sm:$0xff] %v1756
      %v1765 = vld [vmem:[#allocation3 + $0x4] sm:$0xff]
      %v1766 = vld [vmem:[#allocation3 + $0xc] sm:$0xff]
      %v1767 = vld [vmem:[#allocation3 + $0x14] sm:$0xf]
      %v1768 = vld [vmem:[#allocation3 + $0x1c] sm:$0xff]
      %v1769 = vld [vmem:[#allocation3 + $0x24] sm:$0xff]
      %v1770 = vld [vmem:[#allocation3 + $0x2c] sm:$0xf]
      %1777 = vrot.lane.b32.xlu0 %v1765, 106
      %v1778 = vpop.permute.xlu0 %1777
      %1779 = vrot.lane.b32.xlu0 %v1766, 106
      %v1780 = vpop.permute.xlu0 %1779
      %1781 = vrot.lane.b32.xlu0 %v1767, 106
      %v1782 = vpop.permute.xlu0 %1781
      %1783 = vrot.lane.b32.xlu0 %v1768, 106
      %v1784 = vpop.permute.xlu0 %1783
      %1785 = vrot.lane.b32.xlu0 %v1769, 106
      %v1786 = vpop.permute.xlu0 %1785
      %1787 = vrot.lane.b32.xlu0 %v1770, 106
      %v1788 = vpop.permute.xlu0 %1787
      %v1789 = vrot.slane %v1778, 4
      %v1790 = vrot.slane %v1780, 4
      %v1791 = vrot.slane %v1782, 4
      %v1792 = vrot.slane %v1784, 4
      %v1793 = vrot.slane %v1786, 4
      %v1794 = vrot.slane %v1788, 4
      %v1795 = vsel %vm940, %v1789, %v1790
      %vm1796 = vcmask 867328
      %v1797 = vsel %vm1796, %v1778, %v1795
      %v1798 = vsel %vm940, %v1790, %v1791
      %v1799 = vsel %vm1796, %v1780, %v1798
      %v1800 = vsel %vm940, %v1792, %v1793
      %v1801 = vsel %vm1796, %v1784, %v1800
      %v1802 = vsel %vm940, %v1793, %v1794
      %v1803 = vsel %vm1796, %v1786, %v1802
      %1808 = vst [vmem:[#allocation5 + $0x260] sm:$0xff] %v1797
      %1809 = vst [vmem:[#allocation5 + $0x268] sm:$0xff] %v1799
      %1810 = vst [vmem:[#allocation5 + $0x270] sm:$0xff] %v1801
      %1811 = vst [vmem:[#allocation5 + $0x278] sm:$0xff] %v1803
      %v1812 = vld [vmem:[#allocation3 + $0x4] sm:$0xff]
      %v1813 = vld [vmem:[#allocation3 + $0xc] sm:$0xff]
      %v1814 = vld [vmem:[#allocation3 + $0x14] sm:$0xf]
      %v1815 = vld [vmem:[#allocation3 + $0x1c] sm:$0xff]
      %v1816 = vld [vmem:[#allocation3 + $0x24] sm:$0xff]
      %v1817 = vld [vmem:[#allocation3 + $0x2c] sm:$0xf]
      %1824 = vrot.lane.b32.xlu0 %v1812, 90
      %v1825 = vpop.permute.xlu0 %1824
      %1826 = vrot.lane.b32.xlu0 %v1813, 90
      %v1827 = vpop.permute.xlu0 %1826
      %1828 = vrot.lane.b32.xlu0 %v1814, 90
      %v1829 = vpop.permute.xlu0 %1828
      %1830 = vrot.lane.b32.xlu0 %v1815, 90
      %v1831 = vpop.permute.xlu0 %1830
      %1832 = vrot.lane.b32.xlu0 %v1816, 90
      %v1833 = vpop.permute.xlu0 %1832
      %1834 = vrot.lane.b32.xlu0 %v1817, 90
      %v1835 = vpop.permute.xlu0 %1834
      %v1836 = vrot.slane %v1825, 4
      %v1837 = vrot.slane %v1827, 4
      %v1838 = vrot.slane %v1829, 4
      %v1839 = vrot.slane %v1831, 4
      %v1840 = vrot.slane %v1833, 4
      %v1841 = vrot.slane %v1835, 4
      %v1842 = vsel %vm940, %v1836, %v1837
      %vm1843 = vcmask 736256
      %v1844 = vsel %vm1843, %v1825, %v1842
      %v1845 = vsel %vm940, %v1837, %v1838
      %v1846 = vsel %vm1843, %v1827, %v1845
      %v1847 = vsel %vm940, %v1839, %v1840
      %v1848 = vsel %vm1843, %v1831, %v1847
      %v1849 = vsel %vm940, %v1840, %v1841
      %v1850 = vsel %vm1843, %v1833, %v1849
      %1855 = vst [vmem:[#allocation5 + $0x280] sm:$0xff] %v1844
      %1856 = vst [vmem:[#allocation5 + $0x288] sm:$0xff] %v1846
      %1857 = vst [vmem:[#allocation5 + $0x290] sm:$0xff] %v1848
      %1858 = vst [vmem:[#allocation5 + $0x298] sm:$0xff] %v1850
      %v1859 = vld [vmem:[#allocation3 + $0x4] sm:$0xff]
      %v1860 = vld [vmem:[#allocation3 + $0xc] sm:$0xff]
      %v1861 = vld [vmem:[#allocation3 + $0x14] sm:$0xf]
      %v1862 = vld [vmem:[#allocation3 + $0x1c] sm:$0xff]
      %v1863 = vld [vmem:[#allocation3 + $0x24] sm:$0xff]
      %v1864 = vld [vmem:[#allocation3 + $0x2c] sm:$0xf]
      %1871 = vrot.lane.b32.xlu0 %v1859, 89
      %v1872 = vpop.permute.xlu0 %1871
      %1873 = vrot.lane.b32.xlu0 %v1860, 89
      %v1874 = vpop.permute.xlu0 %1873
      %1875 = vrot.lane.b32.xlu0 %v1861, 89
      %v1876 = vpop.permute.xlu0 %1875
      %1877 = vrot.lane.b32.xlu0 %v1862, 89
      %v1878 = vpop.permute.xlu0 %1877
      %1879 = vrot.lane.b32.xlu0 %v1863, 89
      %v1880 = vpop.permute.xlu0 %1879
      %1881 = vrot.lane.b32.xlu0 %v1864, 89
      %v1882 = vpop.permute.xlu0 %1881
      %v1883 = vrot.slane %v1872, 4
      %v1884 = vrot.slane %v1874, 4
      %v1885 = vrot.slane %v1876, 4
      %v1886 = vrot.slane %v1878, 4
      %v1887 = vrot.slane %v1880, 4
      %v1888 = vrot.slane %v1882, 4
      %v1889 = vsel %vm940, %v1883, %v1884
      %vm1890 = vcmask 728064
      %v1891 = vsel %vm1890, %v1872, %v1889
      %v1892 = vsel %vm940, %v1884, %v1885
      %v1893 = vsel %vm1890, %v1874, %v1892
      %v1894 = vsel %vm940, %v1886, %v1887
      %v1895 = vsel %vm1890, %v1878, %v1894
      %v1896 = vsel %vm940, %v1887, %v1888
      %v1897 = vsel %vm1890, %v1880, %v1896
      %1902 = vst [vmem:[#allocation5 + $0x2a0] sm:$0xff] %v1891
      %1903 = vst [vmem:[#allocation5 + $0x2a8] sm:$0xff] %v1893
      %1904 = vst [vmem:[#allocation5 + $0x2b0] sm:$0xff] %v1895
      %1905 = vst [vmem:[#allocation5 + $0x2b8] sm:$0xff] %v1897
      %v1906 = vld [vmem:[#allocation3 + $0x4] sm:$0xff]
      %v1907 = vld [vmem:[#allocation3 + $0xc] sm:$0xff]
      %v1908 = vld [vmem:[#allocation3 + $0x14] sm:$0xf]
      %v1909 = vld [vmem:[#allocation3 + $0x1c] sm:$0xff]
      %v1910 = vld [vmem:[#allocation3 + $0x24] sm:$0xff]
      %v1911 = vld [vmem:[#allocation3 + $0x2c] sm:$0xf]
      %1918 = vrot.lane.b32.xlu0 %v1906, 88
      %v1919 = vpop.permute.xlu0 %1918
      %1920 = vrot.lane.b32.xlu0 %v1907, 88
      %v1921 = vpop.permute.xlu0 %1920
      %1922 = vrot.lane.b32.xlu0 %v1908, 88
      %v1923 = vpop.permute.xlu0 %1922
      %1924 = vrot.lane.b32.xlu0 %v1909, 88
      %v1925 = vpop.permute.xlu0 %1924
      %1926 = vrot.lane.b32.xlu0 %v1910, 88
      %v1927 = vpop.permute.xlu0 %1926
      %1928 = vrot.lane.b32.xlu0 %v1911, 88
      %v1929 = vpop.permute.xlu0 %1928
      %v1930 = vrot.slane %v1919, 4
      %v1931 = vrot.slane %v1921, 4
      %v1932 = vrot.slane %v1923, 4
      %v1933 = vrot.slane %v1925, 4
      %v1934 = vrot.slane %v1927, 4
      %v1935 = vrot.slane %v1929, 4
      %v1936 = vsel %vm940, %v1930, %v1931
      %vm1937 = vcmask 719872
      %v1938 = vsel %vm1937, %v1919, %v1936
      %v1939 = vsel %vm940, %v1931, %v1932
      %v1940 = vsel %vm1937, %v1921, %v1939
      %v1941 = vsel %vm940, %v1933, %v1934
      %v1942 = vsel %vm1937, %v1925, %v1941
      %v1943 = vsel %vm940, %v1934, %v1935
      %v1944 = vsel %vm1937, %v1927, %v1943
      %1949 = vst [vmem:[#allocation5 + $0x2c0] sm:$0xff] %v1938
      %1950 = vst [vmem:[#allocation5 + $0x2c8] sm:$0xff] %v1940
      %1951 = vst [vmem:[#allocation5 + $0x2d0] sm:$0xff] %v1942
      %1952 = vst [vmem:[#allocation5 + $0x2d8] sm:$0xff] %v1944
      %v1953 = vld [vmem:[#allocation3 + $0x4] sm:$0xff]
      %v1954 = vld [vmem:[#allocation3 + $0xc] sm:$0xff]
      %v1955 = vld [vmem:[#allocation3 + $0x14] sm:$0xf]
      %v1956 = vld [vmem:[#allocation3 + $0x1c] sm:$0xff]
      %v1957 = vld [vmem:[#allocation3 + $0x24] sm:$0xff]
      %v1958 = vld [vmem:[#allocation3 + $0x2c] sm:$0xf]
      %1965 = vrot.lane.b32.xlu0 %v1953, 87
      %v1966 = vpop.permute.xlu0 %1965
      %1967 = vrot.lane.b32.xlu0 %v1954, 87
      %v1968 = vpop.permute.xlu0 %1967
      %1969 = vrot.lane.b32.xlu0 %v1955, 87
      %v1970 = vpop.permute.xlu0 %1969
      %1971 = vrot.lane.b32.xlu0 %v1956, 87
      %v1972 = vpop.permute.xlu0 %1971
      %1973 = vrot.lane.b32.xlu0 %v1957, 87
      %v1974 = vpop.permute.xlu0 %1973
      %1975 = vrot.lane.b32.xlu0 %v1958, 87
      %v1976 = vpop.permute.xlu0 %1975
      %v1977 = vrot.slane %v1966, 4
      %v1978 = vrot.slane %v1968, 4
      %v1979 = vrot.slane %v1970, 4
      %v1980 = vrot.slane %v1972, 4
      %v1981 = vrot.slane %v1974, 4
      %v1982 = vrot.slane %v1976, 4
      %v1983 = vsel %vm940, %v1977, %v1978
      %vm1984 = vcmask 711680
      %v1985 = vsel %vm1984, %v1966, %v1983
      %v1986 = vsel %vm940, %v1978, %v1979
      %v1987 = vsel %vm1984, %v1968, %v1986
      %v1988 = vsel %vm940, %v1980, %v1981
      %v1989 = vsel %vm1984, %v1972, %v1988
      %v1990 = vsel %vm940, %v1981, %v1982
      %v1991 = vsel %vm1984, %v1974, %v1990
      %1996 = vst [vmem:[#allocation5 + $0x2e0] sm:$0xff] %v1985
      %1997 = vst [vmem:[#allocation5 + $0x2e8] sm:$0xff] %v1987
      %1998 = vst [vmem:[#allocation5 + $0x2f0] sm:$0xff] %v1989
      %1999 = vst [vmem:[#allocation5 + $0x2f8] sm:$0xff] %v1991
      %v2000 = vld [vmem:[#allocation3 + $0x4] sm:$0xff]
      %v2001 = vld [vmem:[#allocation3 + $0xc] sm:$0xff]
      %v2002 = vld [vmem:[#allocation3 + $0x14] sm:$0xf]
      %v2003 = vld [vmem:[#allocation3 + $0x1c] sm:$0xff]
      %v2004 = vld [vmem:[#allocation3 + $0x24] sm:$0xff]
      %v2005 = vld [vmem:[#allocation3 + $0x2c] sm:$0xf]
      %2012 = vrot.lane.b32.xlu0 %v2000, 86
      %v2013 = vpop.permute.xlu0 %2012
      %2014 = vrot.lane.b32.xlu0 %v2001, 86
      %v2015 = vpop.permute.xlu0 %2014
      %2016 = vrot.lane.b32.xlu0 %v2002, 86
      %v2017 = vpop.permute.xlu0 %2016
      %2018 = vrot.lane.b32.xlu0 %v2003, 86
      %v2019 = vpop.permute.xlu0 %2018
      %2020 = vrot.lane.b32.xlu0 %v2004, 86
      %v2021 = vpop.permute.xlu0 %2020
      %2022 = vrot.lane.b32.xlu0 %v2005, 86
      %v2023 = vpop.permute.xlu0 %2022
      %v2024 = vrot.slane %v2013, 4
      %v2025 = vrot.slane %v2015, 4
      %v2026 = vrot.slane %v2017, 4
      %v2027 = vrot.slane %v2019, 4
      %v2028 = vrot.slane %v2021, 4
      %v2029 = vrot.slane %v2023, 4
      %v2030 = vsel %vm940, %v2024, %v2025
      %vm2031 = vcmask 703488
      %v2032 = vsel %vm2031, %v2013, %v2030
      %v2033 = vsel %vm940, %v2025, %v2026
      %v2034 = vsel %vm2031, %v2015, %v2033
      %v2035 = vsel %vm940, %v2027, %v2028
      %v2036 = vsel %vm2031, %v2019, %v2035
      %v2037 = vsel %vm940, %v2028, %v2029
      %v2038 = vsel %vm2031, %v2021, %v2037
      %2043 = vst [vmem:[#allocation5 + $0x300] sm:$0xff] %v2032
      %2044 = vst [vmem:[#allocation5 + $0x308] sm:$0xff] %v2034
      %2045 = vst [vmem:[#allocation5 + $0x310] sm:$0xff] %v2036
      %2046 = vst [vmem:[#allocation5 + $0x318] sm:$0xff] %v2038
      %v2047 = vld [vmem:[#allocation3 + $0x30] sm:$0xff]
      %v2048 = vld [vmem:[#allocation3 + $0x38] sm:$0xff]
      %v2049 = vld [vmem:[#allocation3 + $0x40] sm:$0xf]
      %v2050 = vld [vmem:[#allocation3 + $0x48] sm:$0xff]
      %v2051 = vld [vmem:[#allocation3 + $0x50] sm:$0xff]
      %v2052 = vld [vmem:[#allocation3 + $0x58] sm:$0xf]
      %2059 = vrot.lane.b32.xlu0 %v2047, 21
      %v2060 = vpop.permute.xlu0 %2059
      %2061 = vrot.lane.b32.xlu0 %v2048, 21
      %v2062 = vpop.permute.xlu0 %2061
      %2063 = vrot.lane.b32.xlu0 %v2049, 21
      %v2064 = vpop.permute.xlu0 %2063
      %2065 = vrot.lane.b32.xlu0 %v2050, 21
      %v2066 = vpop.permute.xlu0 %2065
      %2067 = vrot.lane.b32.xlu0 %v2051, 21
      %v2068 = vpop.permute.xlu0 %2067
      %2069 = vrot.lane.b32.xlu0 %v2052, 21
      %v2070 = vpop.permute.xlu0 %2069
      %v2071 = vrot.slane %v2060, 4
      %v2072 = vrot.slane %v2062, 4
      %v2073 = vrot.slane %v2064, 4
      %v2074 = vrot.slane %v2066, 4
      %v2075 = vrot.slane %v2068, 4
      %v2076 = vrot.slane %v2070, 4
      %v2077 = vsel %vm940, %v2071, %v2072
      %v2078 = vsel %vm1224, %v2060, %v2077
      %v2079 = vsel %vm940, %v2072, %v2073
      %v2080 = vsel %vm1224, %v2062, %v2079
      %v2081 = vsel %vm940, %v2074, %v2075
      %v2082 = vsel %vm1224, %v2066, %v2081
      %v2083 = vsel %vm940, %v2075, %v2076
      %v2084 = vsel %vm1224, %v2068, %v2083
      %2089 = vst [vmem:[#allocation5 + $0x320] sm:$0xff] %v2078
      %2090 = vst [vmem:[#allocation5 + $0x328] sm:$0xff] %v2080
      %2091 = vst [vmem:[#allocation5 + $0x330] sm:$0xff] %v2082
      %2092 = vst [vmem:[#allocation5 + $0x338] sm:$0xff] %v2084
      %v2093 = vld [vmem:[#allocation3 + $0x30] sm:$0xff]
      %v2094 = vld [vmem:[#allocation3 + $0x38] sm:$0xff]
      %v2095 = vld [vmem:[#allocation3 + $0x40] sm:$0xf]
      %v2096 = vld [vmem:[#allocation3 + $0x48] sm:$0xff]
      %v2097 = vld [vmem:[#allocation3 + $0x50] sm:$0xff]
      %v2098 = vld [vmem:[#allocation3 + $0x58] sm:$0xf]
      %2105 = vrot.lane.b32.xlu0 %v2093, 20
      %v2106 = vpop.permute.xlu0 %2105
      %2107 = vrot.lane.b32.xlu0 %v2094, 20
      %v2108 = vpop.permute.xlu0 %2107
      %2109 = vrot.lane.b32.xlu0 %v2095, 20
      %v2110 = vpop.permute.xlu0 %2109
      %2111 = vrot.lane.b32.xlu0 %v2096, 20
      %v2112 = vpop.permute.xlu0 %2111
      %2113 = vrot.lane.b32.xlu0 %v2097, 20
      %v2114 = vpop.permute.xlu0 %2113
      %2115 = vrot.lane.b32.xlu0 %v2098, 20
      %v2116 = vpop.permute.xlu0 %2115
      %v2117 = vrot.slane %v2106, 4
      %v2118 = vrot.slane %v2108, 4
      %v2119 = vrot.slane %v2110, 4
      %v2120 = vrot.slane %v2112, 4
      %v2121 = vrot.slane %v2114, 4
      %v2122 = vrot.slane %v2116, 4
      %v2123 = vsel %vm940, %v2117, %v2118
      %v2124 = vsel %vm1271, %v2106, %v2123
      %v2125 = vsel %vm940, %v2118, %v2119
      %v2126 = vsel %vm1271, %v2108, %v2125
      %v2127 = vsel %vm940, %v2120, %v2121
      %v2128 = vsel %vm1271, %v2112, %v2127
      %v2129 = vsel %vm940, %v2121, %v2122
      %v2130 = vsel %vm1271, %v2114, %v2129
      %2135 = vst [vmem:[#allocation5 + $0x340] sm:$0xff] %v2124
      %2136 = vst [vmem:[#allocation5 + $0x348] sm:$0xff] %v2126
      %2137 = vst [vmem:[#allocation5 + $0x350] sm:$0xff] %v2128
      %2138 = vst [vmem:[#allocation5 + $0x358] sm:$0xff] %v2130
      %v2139 = vld [vmem:[#allocation3 + $0x30] sm:$0xff]
      %v2140 = vld [vmem:[#allocation3 + $0x38] sm:$0xff]
      %v2141 = vld [vmem:[#allocation3 + $0x40] sm:$0xf]
      %v2142 = vld [vmem:[#allocation3 + $0x48] sm:$0xff]
      %v2143 = vld [vmem:[#allocation3 + $0x50] sm:$0xff]
      %v2144 = vld [vmem:[#allocation3 + $0x58] sm:$0xf]
      %2151 = vrot.lane.b32.xlu0 %v2139, 19
      %v2152 = vpop.permute.xlu0 %2151
      %2153 = vrot.lane.b32.xlu0 %v2140, 19
      %v2154 = vpop.permute.xlu0 %2153
      %2155 = vrot.lane.b32.xlu0 %v2141, 19
      %v2156 = vpop.permute.xlu0 %2155
      %2157 = vrot.lane.b32.xlu0 %v2142, 19
      %v2158 = vpop.permute.xlu0 %2157
      %2159 = vrot.lane.b32.xlu0 %v2143, 19
      %v2160 = vpop.permute.xlu0 %2159
      %2161 = vrot.lane.b32.xlu0 %v2144, 19
      %v2162 = vpop.permute.xlu0 %2161
      %v2163 = vrot.slane %v2152, 4
      %v2164 = vrot.slane %v2154, 4
      %v2165 = vrot.slane %v2156, 4
      %v2166 = vrot.slane %v2158, 4
      %v2167 = vrot.slane %v2160, 4
      %v2168 = vrot.slane %v2162, 4
      %v2169 = vsel %vm940, %v2163, %v2164
      %v2170 = vsel %vm1318, %v2152, %v2169
      %v2171 = vsel %vm940, %v2164, %v2165
      %v2172 = vsel %vm1318, %v2154, %v2171
      %v2173 = vsel %vm940, %v2166, %v2167
      %v2174 = vsel %vm1318, %v2158, %v2173
      %v2175 = vsel %vm940, %v2167, %v2168
      %v2176 = vsel %vm1318, %v2160, %v2175
      %2181 = vst [vmem:[#allocation5 + $0x360] sm:$0xff] %v2170
      %2182 = vst [vmem:[#allocation5 + $0x368] sm:$0xff] %v2172
      %2183 = vst [vmem:[#allocation5 + $0x370] sm:$0xff] %v2174
      %2184 = vst [vmem:[#allocation5 + $0x378] sm:$0xff] %v2176
      %v2185 = vld [vmem:[#allocation3 + $0x30] sm:$0xff]
      %v2186 = vld [vmem:[#allocation3 + $0x38] sm:$0xff]
      %v2187 = vld [vmem:[#allocation3 + $0x40] sm:$0xf]
      %v2188 = vld [vmem:[#allocation3 + $0x48] sm:$0xff]
      %v2189 = vld [vmem:[#allocation3 + $0x50] sm:$0xff]
      %v2190 = vld [vmem:[#allocation3 + $0x58] sm:$0xf]
      %2197 = vrot.lane.b32.xlu0 %v2185, 1
      %v2198 = vpop.permute.xlu0 %2197
      %2199 = vrot.lane.b32.xlu0 %v2186, 1
      %v2200 = vpop.permute.xlu0 %2199
      %2201 = vrot.lane.b32.xlu0 %v2187, 1
      %v2202 = vpop.permute.xlu0 %2201
      %2203 = vrot.lane.b32.xlu0 %v2188, 1
      %v2204 = vpop.permute.xlu0 %2203
      %2205 = vrot.lane.b32.xlu0 %v2189, 1
      %v2206 = vpop.permute.xlu0 %2205
      %2207 = vrot.lane.b32.xlu0 %v2190, 1
      %v2208 = vpop.permute.xlu0 %2207
      %v2209 = vrot.slane %v2198, 4
      %v2210 = vrot.slane %v2200, 4
      %v2211 = vrot.slane %v2202, 4
      %v2212 = vrot.slane %v2204, 4
      %v2213 = vrot.slane %v2206, 4
      %v2214 = vrot.slane %v2208, 4
      %v2215 = vsel %vm940, %v2209, %v2210
      %v2216 = vsel %vm1459, %v2198, %v2215
      %v2217 = vsel %vm940, %v2210, %v2211
      %v2218 = vsel %vm1459, %v2200, %v2217
      %v2219 = vsel %vm940, %v2212, %v2213
      %v2220 = vsel %vm1459, %v2204, %v2219
      %v2221 = vsel %vm940, %v2213, %v2214
      %v2222 = vsel %vm1459, %v2206, %v2221
      %2227 = vst [vmem:[#allocation5 + $0x380] sm:$0xff] %v2216
      %2228 = vst [vmem:[#allocation5 + $0x388] sm:$0xff] %v2218
      %2229 = vst [vmem:[#allocation5 + $0x390] sm:$0xff] %v2220
      %2230 = vst [vmem:[#allocation5 + $0x398] sm:$0xff] %v2222
      %v2231 = vld [vmem:[#allocation3 + $0x34] sm:$0xff]
      %v2232 = vld [vmem:[#allocation3 + $0x3c] sm:$0xff]
      %v2233 = vld [vmem:[#allocation3 + $0x4c] sm:$0xff]
      %v2234 = vld [vmem:[#allocation3 + $0x54] sm:$0xff]
      %2235 = vst [vmem:[#allocation5 + $0x3a0] sm:$0xff] %v2231
      %2236 = vst [vmem:[#allocation5 + $0x3a8] sm:$0xff] %v2232
      %2237 = vst [vmem:[#allocation5 + $0x3b0] sm:$0xff] %v2233
      %2238 = vst [vmem:[#allocation5 + $0x3b8] sm:$0xff] %v2234
      %v2239 = vld [vmem:[#allocation3 + $0x34] sm:$0xff]
      %v2240 = vld [vmem:[#allocation3 + $0x3c] sm:$0xff]
      %v2241 = vld [vmem:[#allocation3 + $0x44] sm:$0xf]
      %v2242 = vld [vmem:[#allocation3 + $0x4c] sm:$0xff]
      %v2243 = vld [vmem:[#allocation3 + $0x54] sm:$0xff]
      %v2244 = vld [vmem:[#allocation3 + $0x5c] sm:$0xf]
      %2251 = vrot.lane.b32.xlu0 %v2239, 127
      %v2252 = vpop.permute.xlu0 %2251
      %2253 = vrot.lane.b32.xlu0 %v2240, 127
      %v2254 = vpop.permute.xlu0 %2253
      %2255 = vrot.lane.b32.xlu0 %v2241, 127
      %v2256 = vpop.permute.xlu0 %2255
      %2257 = vrot.lane.b32.xlu0 %v2242, 127
      %v2258 = vpop.permute.xlu0 %2257
      %2259 = vrot.lane.b32.xlu0 %v2243, 127
      %v2260 = vpop.permute.xlu0 %2259
      %2261 = vrot.lane.b32.xlu0 %v2244, 127
      %v2262 = vpop.permute.xlu0 %2261
      %v2263 = vrot.slane %v2252, 4
      %v2264 = vrot.slane %v2254, 4
      %v2265 = vrot.slane %v2256, 4
      %v2266 = vrot.slane %v2258, 4
      %v2267 = vrot.slane %v2260, 4
      %v2268 = vrot.slane %v2262, 4
      %v2269 = vsel %vm940, %v2263, %v2264
      %v2270 = vsel %vm1514, %v2252, %v2269
      %v2271 = vsel %vm940, %v2264, %v2265
      %v2272 = vsel %vm1514, %v2254, %v2271
      %v2273 = vsel %vm940, %v2266, %v2267
      %v2274 = vsel %vm1514, %v2258, %v2273
      %v2275 = vsel %vm940, %v2267, %v2268
      %v2276 = vsel %vm1514, %v2260, %v2275
      %2281 = vst [vmem:[#allocation5 + $0x3c0] sm:$0xff] %v2270
      %2282 = vst [vmem:[#allocation5 + $0x3c8] sm:$0xff] %v2272
      %2283 = vst [vmem:[#allocation5 + $0x3d0] sm:$0xff] %v2274
      %2284 = vst [vmem:[#allocation5 + $0x3d8] sm:$0xff] %v2276
      %v2285 = vld [vmem:[#allocation3 + $0x34] sm:$0xff]
      %v2286 = vld [vmem:[#allocation3 + $0x3c] sm:$0xff]
      %v2287 = vld [vmem:[#allocation3 + $0x44] sm:$0xf]
      %v2288 = vld [vmem:[#allocation3 + $0x4c] sm:$0xff]
      %v2289 = vld [vmem:[#allocation3 + $0x54] sm:$0xff]
      %v2290 = vld [vmem:[#allocation3 + $0x5c] sm:$0xf]
      %2297 = vrot.lane.b32.xlu0 %v2285, 109
      %v2298 = vpop.permute.xlu0 %2297
      %2299 = vrot.lane.b32.xlu0 %v2286, 109
      %v2300 = vpop.permute.xlu0 %2299
      %2301 = vrot.lane.b32.xlu0 %v2287, 109
      %v2302 = vpop.permute.xlu0 %2301
      %2303 = vrot.lane.b32.xlu0 %v2288, 109
      %v2304 = vpop.permute.xlu0 %2303
      %2305 = vrot.lane.b32.xlu0 %v2289, 109
      %v2306 = vpop.permute.xlu0 %2305
      %2307 = vrot.lane.b32.xlu0 %v2290, 109
      %v2308 = vpop.permute.xlu0 %2307
      %v2309 = vrot.slane %v2298, 4
      %v2310 = vrot.slane %v2300, 4
      %v2311 = vrot.slane %v2302, 4
      %v2312 = vrot.slane %v2304, 4
      %v2313 = vrot.slane %v2306, 4
      %v2314 = vrot.slane %v2308, 4
      %v2315 = vsel %vm940, %v2309, %v2310
      %v2316 = vsel %vm1655, %v2298, %v2315
      %v2317 = vsel %vm940, %v2310, %v2311
      %v2318 = vsel %vm1655, %v2300, %v2317
      %v2319 = vsel %vm940, %v2312, %v2313
      %v2320 = vsel %vm1655, %v2304, %v2319
      %v2321 = vsel %vm940, %v2313, %v2314
      %v2322 = vsel %vm1655, %v2306, %v2321
      %2327 = vst [vmem:[#allocation5 + $0x3e0] sm:$0xff] %v2316
      %2328 = vst [vmem:[#allocation5 + $0x3e8] sm:$0xff] %v2318
      %2329 = vst [vmem:[#allocation5 + $0x3f0] sm:$0xff] %v2320
      %2330 = vst [vmem:[#allocation5 + $0x3f8] sm:$0xff] %v2322
      %v2331 = vld [vmem:[#allocation3 + $0x34] sm:$0xff]
      %v2332 = vld [vmem:[#allocation3 + $0x3c] sm:$0xff]
      %v2333 = vld [vmem:[#allocation3 + $0x44] sm:$0xf]
      %v2334 = vld [vmem:[#allocation3 + $0x4c] sm:$0xff]
      %v2335 = vld [vmem:[#allocation3 + $0x54] sm:$0xff]
      %v2336 = vld [vmem:[#allocation3 + $0x5c] sm:$0xf]
      %2343 = vrot.lane.b32.xlu0 %v2331, 108
      %v2344 = vpop.permute.xlu0 %2343
      %2345 = vrot.lane.b32.xlu0 %v2332, 108
      %v2346 = vpop.permute.xlu0 %2345
      %2347 = vrot.lane.b32.xlu0 %v2333, 108
      %v2348 = vpop.permute.xlu0 %2347
      %2349 = vrot.lane.b32.xlu0 %v2334, 108
      %v2350 = vpop.permute.xlu0 %2349
      %2351 = vrot.lane.b32.xlu0 %v2335, 108
      %v2352 = vpop.permute.xlu0 %2351
      %2353 = vrot.lane.b32.xlu0 %v2336, 108
      %v2354 = vpop.permute.xlu0 %2353
      %v2355 = vrot.slane %v2344, 4
      %v2356 = vrot.slane %v2346, 4
      %v2357 = vrot.slane %v2348, 4
      %v2358 = vrot.slane %v2350, 4
      %v2359 = vrot.slane %v2352, 4
      %v2360 = vrot.slane %v2354, 4
      %v2361 = vsel %vm940, %v2355, %v2356
      %v2362 = vsel %vm1702, %v2344, %v2361
      %v2363 = vsel %vm940, %v2356, %v2357
      %v2364 = vsel %vm1702, %v2346, %v2363
      %v2365 = vsel %vm940, %v2358, %v2359
      %v2366 = vsel %vm1702, %v2350, %v2365
      %v2367 = vsel %vm940, %v2359, %v2360
      %v2368 = vsel %vm1702, %v2352, %v2367
      %2373 = vst [vmem:[#allocation5 + $0x400] sm:$0xff] %v2362
      %2374 = vst [vmem:[#allocation5 + $0x408] sm:$0xff] %v2364
      %2375 = vst [vmem:[#allocation5 + $0x410] sm:$0xff] %v2366
      %2376 = vst [vmem:[#allocation5 + $0x418] sm:$0xff] %v2368
      %v2377 = vld [vmem:[#allocation3 + $0x34] sm:$0xff]
      %v2378 = vld [vmem:[#allocation3 + $0x3c] sm:$0xff]
      %v2379 = vld [vmem:[#allocation3 + $0x44] sm:$0xf]
      %v2380 = vld [vmem:[#allocation3 + $0x4c] sm:$0xff]
      %v2381 = vld [vmem:[#allocation3 + $0x54] sm:$0xff]
      %v2382 = vld [vmem:[#allocation3 + $0x5c] sm:$0xf]
      %2389 = vrot.lane.b32.xlu0 %v2377, 107
      %v2390 = vpop.permute.xlu0 %2389
      %2391 = vrot.lane.b32.xlu0 %v2378, 107
      %v2392 = vpop.permute.xlu0 %2391
      %2393 = vrot.lane.b32.xlu0 %v2379, 107
      %v2394 = vpop.permute.xlu0 %2393
      %2395 = vrot.lane.b32.xlu0 %v2380, 107
      %v2396 = vpop.permute.xlu0 %2395
      %2397 = vrot.lane.b32.xlu0 %v2381, 107
      %v2398 = vpop.permute.xlu0 %2397
      %2399 = vrot.lane.b32.xlu0 %v2382, 107
      %v2400 = vpop.permute.xlu0 %2399
      %v2401 = vrot.slane %v2390, 4
      %v2402 = vrot.slane %v2392, 4
      %v2403 = vrot.slane %v2394, 4
      %v2404 = vrot.slane %v2396, 4
      %v2405 = vrot.slane %v2398, 4
      %v2406 = vrot.slane %v2400, 4
      %v2407 = vsel %vm940, %v2401, %v2402
      %v2408 = vsel %vm1749, %v2390, %v2407
      %v2409 = vsel %vm940, %v2402, %v2403
      %v2410 = vsel %vm1749, %v2392, %v2409
      %v2411 = vsel %vm940, %v2404, %v2405
      %v2412 = vsel %vm1749, %v2396, %v2411
      %v2413 = vsel %vm940, %v2405, %v2406
      %v2414 = vsel %vm1749, %v2398, %v2413
      %2419 = vst [vmem:[#allocation5 + $0x420] sm:$0xff] %v2408
      %2420 = vst [vmem:[#allocation5 + $0x428] sm:$0xff] %v2410
      %2421 = vst [vmem:[#allocation5 + $0x430] sm:$0xff] %v2412
      %2422 = vst [vmem:[#allocation5 + $0x438] sm:$0xff] %v2414
      %v2423 = vld [vmem:[%s4] sm:$0xff]
      %v2424 = vld [vmem:[%s4 + $0x8] sm:$0xff]
      %v2425 = vld [vmem:[%s4 + $0x10] sm:$0xf]
      %v2426 = vld [vmem:[%s4 + $0x14] sm:$0xff]
      %v2427 = vld [vmem:[%s4 + $0x1c] sm:$0xff]
      %v2428 = vld [vmem:[%s4 + $0x24] sm:$0xf]
      %v2429 = vld [vmem:[%s4 + $0x28] sm:$0xff]
      %v2430 = vld [vmem:[%s4 + $0x30] sm:$0xff]
      %v2431 = vld [vmem:[%s4 + $0x38] sm:$0xf]
      %v2432 = vld [vmem:[%s4 + $0x3c] sm:$0xff]
      %v2433 = vld [vmem:[%s4 + $0x44] sm:$0xff]
      %v2434 = vld [vmem:[%s4 + $0x4c] sm:$0xf]
      %v2435 = vld [vmem:[%s4 + $0x50] sm:$0xff]
      %v2436 = vld [vmem:[%s4 + $0x58] sm:$0xff]
      %v2437 = vld [vmem:[%s4 + $0x60] sm:$0xf]
      %v2438 = vld [vmem:[%s4 + $0x64] sm:$0xff]
      %v2439 = vld [vmem:[%s4 + $0x6c] sm:$0xff]
      %v2440 = vld [vmem:[%s4 + $0x74] sm:$0xf]
      %v2441 = vld [vmem:[%s4 + $0x78] sm:$0xff]
      %v2442 = vld [vmem:[%s4 + $0x80] sm:$0xff]
      %v2443 = vld [vmem:[%s4 + $0x88] sm:$0xf]
      %v2444 = vld [vmem:[#allocation5] sm:$0xff]
      %v2445 = vld [vmem:[#allocation5 + $0x8] sm:$0xff]
      %v2446 = vld [vmem:[#allocation5 + $0x10] sm:$0xff]
      %v2447 = vld [vmem:[#allocation5 + $0x18] sm:$0xff]
      %v2448 = vld [vmem:[#allocation5 + $0x20] sm:$0xff]
      %v2449 = vld [vmem:[#allocation5 + $0x28] sm:$0xff]
      %v2450 = vld [vmem:[#allocation5 + $0x30] sm:$0xff]
      %v2451 = vld [vmem:[#allocation5 + $0x38] sm:$0xff]
      %v2452 = vld [vmem:[#allocation5 + $0x40] sm:$0xff]
      %v2453 = vld [vmem:[#allocation5 + $0x48] sm:$0xff]
      %v2454 = vld [vmem:[#allocation5 + $0x50] sm:$0xff]
      %v2455 = vld [vmem:[#allocation5 + $0x58] sm:$0xff]
      %v2456 = vld [vmem:[#allocation5 + $0x60] sm:$0xff]
      %v2457 = vld [vmem:[#allocation5 + $0x68] sm:$0xff]
      %v2458 = vld [vmem:[#allocation5 + $0x70] sm:$0xff]
      %v2459 = vld [vmem:[#allocation5 + $0x78] sm:$0xff]
      %v2460 = vld [vmem:[#allocation5 + $0x80] sm:$0xff]
      %v2461 = vld [vmem:[#allocation5 + $0x88] sm:$0xff]
      %v2462 = vld [vmem:[#allocation5 + $0x90] sm:$0xff]
      %v2463 = vld [vmem:[#allocation5 + $0x98] sm:$0xff]
      %v2464 = vld [vmem:[#allocation5 + $0xa0] sm:$0xff]
      %v2465 = vld [vmem:[#allocation5 + $0xa8] sm:$0xff]
      %v2466 = vld [vmem:[#allocation5 + $0xb0] sm:$0xff]
      %v2467 = vld [vmem:[#allocation5 + $0xb8] sm:$0xff]
      %v2468 = vld [vmem:[#allocation5 + $0xc0] sm:$0xff]
      %v2469 = vld [vmem:[#allocation5 + $0xc8] sm:$0xff]
      %v2470 = vld [vmem:[#allocation5 + $0xd0] sm:$0xff]
      %v2471 = vld [vmem:[#allocation5 + $0xd8] sm:$0xff]
      %v2472 = vld [vmem:[#allocation5 + $0xe0] sm:$0xff]
      %v2473 = vld [vmem:[#allocation5 + $0xe8] sm:$0xff]
      %v2474 = vld [vmem:[#allocation5 + $0xf0] sm:$0xff]
      %v2475 = vld [vmem:[#allocation5 + $0xf8] sm:$0xff]
      %v2476 = vld [vmem:[#allocation5 + $0x100] sm:$0xff]
      %v2477 = vld [vmem:[#allocation5 + $0x108] sm:$0xff]
      %v2478 = vld [vmem:[#allocation5 + $0x110] sm:$0xff]
      %v2479 = vld [vmem:[#allocation5 + $0x118] sm:$0xff]
      %v2480 = vld [vmem:[#allocation5 + $0x120] sm:$0xff]
      %v2481 = vld [vmem:[#allocation5 + $0x128] sm:$0xff]
      %v2482 = vld [vmem:[#allocation5 + $0x130] sm:$0xff]
      %v2483 = vld [vmem:[#allocation5 + $0x138] sm:$0xff]
      %v2484 = vld [vmem:[#allocation5 + $0x140] sm:$0xff]
      %v2485 = vld [vmem:[#allocation5 + $0x148] sm:$0xff]
      %v2486 = vld [vmem:[#allocation5 + $0x150] sm:$0xff]
      %v2487 = vld [vmem:[#allocation5 + $0x158] sm:$0xff]
      %v2488 = vld [vmem:[#allocation5 + $0x160] sm:$0xff]
      %v2489 = vld [vmem:[#allocation5 + $0x168] sm:$0xff]
      %v2490 = vld [vmem:[#allocation5 + $0x170] sm:$0xff]
      %v2491 = vld [vmem:[#allocation5 + $0x178] sm:$0xff]
      %v2492 = vld [vmem:[#allocation5 + $0x180] sm:$0xff]
      %v2493 = vld [vmem:[#allocation5 + $0x188] sm:$0xff]
      %v2494 = vld [vmem:[#allocation5 + $0x190] sm:$0xff]
      %v2495 = vld [vmem:[#allocation5 + $0x198] sm:$0xff]
      %v2496 = vld [vmem:[#allocation5 + $0x1a0] sm:$0xff]
      %v2497 = vld [vmem:[#allocation5 + $0x1a8] sm:$0xff]
      %v2498 = vld [vmem:[#allocation5 + $0x1b0] sm:$0xff]
      %v2499 = vld [vmem:[#allocation5 + $0x1b8] sm:$0xff]
      %v2500 = vld [vmem:[#allocation5 + $0x1c0] sm:$0xff]
      %v2501 = vld [vmem:[#allocation5 + $0x1c8] sm:$0xff]
      %v2502 = vld [vmem:[#allocation5 + $0x1d0] sm:$0xff]
      %v2503 = vld [vmem:[#allocation5 + $0x1d8] sm:$0xff]
      %v2504 = vld [vmem:[#allocation5 + $0x1e0] sm:$0xff]
      %v2505 = vld [vmem:[#allocation5 + $0x1e8] sm:$0xff]
      %v2506 = vld [vmem:[#allocation5 + $0x1f0] sm:$0xff]
      %v2507 = vld [vmem:[#allocation5 + $0x1f8] sm:$0xff]
      %v2508 = vld [vmem:[#allocation5 + $0x200] sm:$0xff]
      %v2509 = vld [vmem:[#allocation5 + $0x208] sm:$0xff]
      %v2510 = vld [vmem:[#allocation5 + $0x210] sm:$0xff]
      %v2511 = vld [vmem:[#allocation5 + $0x218] sm:$0xff]
      %v2512 = vld [vmem:[#allocation5 + $0x220] sm:$0xff]
      %v2513 = vld [vmem:[#allocation5 + $0x228] sm:$0xff]
      %v2514 = vld [vmem:[#allocation5 + $0x230] sm:$0xff]
      %v2515 = vld [vmem:[#allocation5 + $0x238] sm:$0xff]
      %v2516 = vld [vmem:[#allocation5 + $0x240] sm:$0xff]
      %v2517 = vld [vmem:[#allocation5 + $0x248] sm:$0xff]
      %v2518 = vld [vmem:[#allocation5 + $0x250] sm:$0xff]
      %v2519 = vld [vmem:[#allocation5 + $0x258] sm:$0xff]
      %v2520 = vld [vmem:[#allocation5 + $0x260] sm:$0xff]
      %v2521 = vld [vmem:[#allocation5 + $0x268] sm:$0xff]
      %v2522 = vld [vmem:[#allocation5 + $0x270] sm:$0xff]
      %v2523 = vld [vmem:[#allocation5 + $0x278] sm:$0xff]
      %v2524 = vld [vmem:[#allocation5 + $0x280] sm:$0xff]
      %v2525 = vld [vmem:[#allocation5 + $0x288] sm:$0xff]
      %v2526 = vld [vmem:[#allocation5 + $0x290] sm:$0xff]
      %v2527 = vld [vmem:[#allocation5 + $0x298] sm:$0xff]
      %v2528 = vld [vmem:[#allocation5 + $0x2a0] sm:$0xff]
      %v2529 = vld [vmem:[#allocation5 + $0x2a8] sm:$0xff]
      %v2530 = vld [vmem:[#allocation5 + $0x2b0] sm:$0xff]
      %v2531 = vld [vmem:[#allocation5 + $0x2b8] sm:$0xff]
      %v2532 = vld [vmem:[#allocation5 + $0x2c0] sm:$0xff]
      %v2533 = vld [vmem:[#allocation5 + $0x2c8] sm:$0xff]
      %v2534 = vld [vmem:[#allocation5 + $0x2d0] sm:$0xff]
      %v2535 = vld [vmem:[#allocation5 + $0x2d8] sm:$0xff]
      %v2536 = vld [vmem:[#allocation5 + $0x2e0] sm:$0xff]
      %v2537 = vld [vmem:[#allocation5 + $0x2e8] sm:$0xff]
      %v2538 = vld [vmem:[#allocation5 + $0x2f0] sm:$0xff]
      %v2539 = vld [vmem:[#allocation5 + $0x2f8] sm:$0xff]
      %v2540 = vld [vmem:[#allocation5 + $0x300] sm:$0xff]
      %v2541 = vld [vmem:[#allocation5 + $0x308] sm:$0xff]
      %v2542 = vld [vmem:[#allocation5 + $0x310] sm:$0xff]
      %v2543 = vld [vmem:[#allocation5 + $0x318] sm:$0xff]
      %v2544 = vld [vmem:[#allocation5 + $0x320] sm:$0xff]
      %v2545 = vld [vmem:[#allocation5 + $0x328] sm:$0xff]
      %v2546 = vld [vmem:[#allocation5 + $0x330] sm:$0xff]
      %v2547 = vld [vmem:[#allocation5 + $0x338] sm:$0xff]
      %v2548 = vld [vmem:[#allocation5 + $0x340] sm:$0xff]
      %v2549 = vld [vmem:[#allocation5 + $0x348] sm:$0xff]
      %v2550 = vld [vmem:[#allocation5 + $0x350] sm:$0xff]
      %v2551 = vld [vmem:[#allocation5 + $0x358] sm:$0xff]
      %v2552 = vld [vmem:[#allocation5 + $0x360] sm:$0xff]
      %v2553 = vld [vmem:[#allocation5 + $0x368] sm:$0xff]
      %v2554 = vld [vmem:[#allocation5 + $0x370] sm:$0xff]
      %v2555 = vld [vmem:[#allocation5 + $0x378] sm:$0xff]
      %v2556 = vld [vmem:[#allocation5 + $0x380] sm:$0xff]
      %v2557 = vld [vmem:[#allocation5 + $0x388] sm:$0xff]
      %v2558 = vld [vmem:[#allocation5 + $0x390] sm:$0xff]
      %v2559 = vld [vmem:[#allocation5 + $0x398] sm:$0xff]
      %v2560 = vld [vmem:[#allocation5 + $0x3a0] sm:$0xff]
      %v2561 = vld [vmem:[#allocation5 + $0x3a8] sm:$0xff]
      %v2562 = vld [vmem:[#allocation5 + $0x3b0] sm:$0xff]
      %v2563 = vld [vmem:[#allocation5 + $0x3b8] sm:$0xff]
      %v2564 = vld [vmem:[#allocation5 + $0x3c0] sm:$0xff]
      %v2565 = vld [vmem:[#allocation5 + $0x3c8] sm:$0xff]
      %v2566 = vld [vmem:[#allocation5 + $0x3d0] sm:$0xff]
      %v2567 = vld [vmem:[#allocation5 + $0x3d8] sm:$0xff]
      %v2568 = vld [vmem:[#allocation5 + $0x3e0] sm:$0xff]
      %v2569 = vld [vmem:[#allocation5 + $0x3e8] sm:$0xff]
      %v2570 = vld [vmem:[#allocation5 + $0x3f0] sm:$0xff]
      %v2571 = vld [vmem:[#allocation5 + $0x3f8] sm:$0xff]
      %v2572 = vld [vmem:[#allocation5 + $0x400] sm:$0xff]
      %v2573 = vld [vmem:[#allocation5 + $0x408] sm:$0xff]
      %v2574 = vld [vmem:[#allocation5 + $0x410] sm:$0xff]
      %v2575 = vld [vmem:[#allocation5 + $0x418] sm:$0xff]
      %v2576 = vld [vmem:[#allocation5 + $0x420] sm:$0xff]
      %v2577 = vld [vmem:[#allocation5 + $0x428] sm:$0xff]
      %v2578 = vld [vmem:[#allocation5 + $0x430] sm:$0xff]
      %v2579 = vld [vmem:[#allocation5 + $0x438] sm:$0xff]
      %v2580 = vld [vmem:[%s5] sm:$0xff]
      %v2581 = vld [vmem:[%s5 + $0x8] sm:$0xff]
      %v2582 = vld [vmem:[%s5 + $0x10] sm:$0xff]
      %v2583 = vld [vmem:[%s5 + $0x18] sm:$0xff]
      %v2584 = vld [vmem:[%s5 + $0x20] sm:$0xff]
      %v2585 = vld [vmem:[%s5 + $0x28] sm:$0xff]
      %v2586 = vld [vmem:[%s5 + $0x30] sm:$0xff]
      %2588 = vset.pattern.permute.xlu0 0
      %2589 = vperm.xlu0 %2588, %v2580
      %v2590 = vpop.permute.xlu0 %2589
      %2593 = vset.pattern.permute.xlu0 0
      %2594 = vperm.xlu0 %2593, %v2581
      %v2595 = vpop.permute.xlu0 %2594
      %2598 = vset.pattern.permute.xlu0 0
      %2599 = vperm.xlu0 %2598, %v2582
      %v2600 = vpop.permute.xlu0 %2599
      %2603 = vset.pattern.permute.xlu0 0
      %2604 = vperm.xlu0 %2603, %v2583
      %v2605 = vpop.permute.xlu0 %2604
      %2608 = vset.pattern.permute.xlu0 0
      %2609 = vperm.xlu0 %2608, %v2584
      %v2610 = vpop.permute.xlu0 %2609
      %2613 = vset.pattern.permute.xlu0 0
      %2614 = vperm.xlu0 %2613, %v2585
      %v2615 = vpop.permute.xlu0 %2614
      %2618 = vset.pattern.permute.xlu0 0
      %2619 = vperm.xlu0 %2618, %v2586
      %v2620 = vpop.permute.xlu0 %2619
      %v2643 = vunpack.c.l.b16 %v2423
      %v2644 = vunpack.c.h.b16 %v2423
      %v2645 = vunpack.c.l.b16 %v2424
      %v2646 = vunpack.c.h.b16 %v2424
      %v2647 = vunpack.c.l.b16 %v2425
      %v2648 = vunpack.c.l.b16 %v2426
      %v2649 = vunpack.c.h.b16 %v2426
      %v2650 = vunpack.c.l.b16 %v2427
      %v2651 = vunpack.c.h.b16 %v2427
      %v2652 = vunpack.c.l.b16 %v2428
      %v2653 = vunpack.c.l.b16 %v2429
      %v2654 = vunpack.c.h.b16 %v2429
      %v2655 = vunpack.c.l.b16 %v2430
      %v2656 = vunpack.c.h.b16 %v2430
      %v2657 = vunpack.c.l.b16 %v2431
      %v2658 = vunpack.c.l.b16 %v2432
      %v2659 = vunpack.c.h.b16 %v2432
      %v2660 = vunpack.c.l.b16 %v2433
      %v2661 = vunpack.c.h.b16 %v2433
      %v2662 = vunpack.c.l.b16 %v2434
      %v2663 = vunpack.c.l.b16 %v2435
      %v2664 = vunpack.c.h.b16 %v2435
      %v2665 = vunpack.c.l.b16 %v2436
      %v2666 = vunpack.c.h.b16 %v2436
      %v2667 = vunpack.c.l.b16 %v2437
      %v2668 = vunpack.c.l.b16 %v2438
      %v2669 = vunpack.c.h.b16 %v2438
      %v2670 = vunpack.c.l.b16 %v2439
      %v2671 = vunpack.c.h.b16 %v2439
      %v2672 = vunpack.c.l.b16 %v2440
      %v2673 = vunpack.c.l.b16 %v2441
      %v2674 = vunpack.c.h.b16 %v2441
      %v2675 = vunpack.c.l.b16 %v2442
      %v2676 = vunpack.c.h.b16 %v2442
      %v2677 = vunpack.c.l.b16 %v2443
      %v2678 = vpack.c.b16 %v2648, %v2643
      %v2679 = vpack.c.b16 %v2649, %v2644
      %v2680 = vpack.c.b16 %v2650, %v2645
      %v2681 = vpack.c.b16 %v2651, %v2646
      %v2682 = vpack.c.b16 %v2652, %v2647
      %v2683 = vpack.c.b16 %v2658, %v2653
      %v2684 = vpack.c.b16 %v2659, %v2654
      %v2685 = vpack.c.b16 %v2660, %v2655
      %v2686 = vpack.c.b16 %v2661, %v2656
      %v2687 = vpack.c.b16 %v2662, %v2657
      %v2688 = vpack.c.b16 %v2668, %v2663
      %v2689 = vpack.c.b16 %v2669, %v2664
      %v2690 = vpack.c.b16 %v2670, %v2665
      %v2691 = vpack.c.b16 %v2671, %v2666
      %v2692 = vpack.c.b16 %v2672, %v2667
      %v2693 = vpack.c.b16 %v2673, %v2673
      %v2694 = vpack.c.b16 %v2674, %v2674
      %v2695 = vpack.c.b16 %v2675, %v2675
      %v2696 = vpack.c.b16 %v2676, %v2676
      %v2697 = vpack.c.b16 %v2677, %v2677
      %v2850 = vunpack.c.l.b16 %v2444
      %v2851 = vunpack.c.h.b16 %v2444
      %v2852 = vunpack.c.l.b16 %v2445
      %v2853 = vunpack.c.h.b16 %v2445
      %v2854 = vunpack.c.l.b16 %v2446
      %v2855 = vunpack.c.h.b16 %v2446
      %v2856 = vunpack.c.l.b16 %v2447
      %v2857 = vunpack.c.h.b16 %v2447
      %v2858 = vunpack.c.l.b16 %v2448
      %v2859 = vunpack.c.h.b16 %v2448
      %v2860 = vunpack.c.l.b16 %v2449
      %v2861 = vunpack.c.h.b16 %v2449
      %v2862 = vunpack.c.l.b16 %v2450
      %v2863 = vunpack.c.h.b16 %v2450
      %v2864 = vunpack.c.l.b16 %v2451
      %v2865 = vunpack.c.h.b16 %v2451
      %v2866 = vunpack.c.l.b16 %v2452
      %v2867 = vunpack.c.h.b16 %v2452
      %v2868 = vunpack.c.l.b16 %v2453
      %v2869 = vunpack.c.h.b16 %v2453
      %v2870 = vunpack.c.l.b16 %v2454
      %v2871 = vunpack.c.h.b16 %v2454
      %v2872 = vunpack.c.l.b16 %v2455
      %v2873 = vunpack.c.h.b16 %v2455
      %v2874 = vunpack.c.l.b16 %v2456
      %v2875 = vunpack.c.h.b16 %v2456
      %v2876 = vunpack.c.l.b16 %v2457
      %v2877 = vunpack.c.h.b16 %v2457
      %v2878 = vunpack.c.l.b16 %v2458
      %v2879 = vunpack.c.h.b16 %v2458
      %v2880 = vunpack.c.l.b16 %v2459
      %v2881 = vunpack.c.h.b16 %v2459
      %v2882 = vunpack.c.l.b16 %v2460
      %v2883 = vunpack.c.h.b16 %v2460
      %v2884 = vunpack.c.l.b16 %v2461
      %v2885 = vunpack.c.h.b16 %v2461
      %v2886 = vunpack.c.l.b16 %v2462
      %v2887 = vunpack.c.h.b16 %v2462
      %v2888 = vunpack.c.l.b16 %v2463
      %v2889 = vunpack.c.h.b16 %v2463
      %v2890 = vunpack.c.l.b16 %v2464
      %v2891 = vunpack.c.h.b16 %v2464
      %v2892 = vunpack.c.l.b16 %v2465
      %v2893 = vunpack.c.h.b16 %v2465
      %v2894 = vunpack.c.l.b16 %v2466
      %v2895 = vunpack.c.h.b16 %v2466
      %v2896 = vunpack.c.l.b16 %v2467
      %v2897 = vunpack.c.h.b16 %v2467
      %v2898 = vunpack.c.l.b16 %v2468
      %v2899 = vunpack.c.h.b16 %v2468
      %v2900 = vunpack.c.l.b16 %v2469
      %v2901 = vunpack.c.h.b16 %v2469
      %v2902 = vunpack.c.l.b16 %v2470
      %v2903 = vunpack.c.h.b16 %v2470
      %v2904 = vunpack.c.l.b16 %v2471
      %v2905 = vunpack.c.h.b16 %v2471
      %v2906 = vunpack.c.l.b16 %v2472
      %v2907 = vunpack.c.h.b16 %v2472
      %v2908 = vunpack.c.l.b16 %v2473
      %v2909 = vunpack.c.h.b16 %v2473
      %v2910 = vunpack.c.l.b16 %v2474
      %v2911 = vunpack.c.h.b16 %v2474
      %v2912 = vunpack.c.l.b16 %v2475
      %v2913 = vunpack.c.h.b16 %v2475
      %v2914 = vunpack.c.l.b16 %v2476
      %v2915 = vunpack.c.h.b16 %v2476
      %v2916 = vunpack.c.l.b16 %v2477
      %v2917 = vunpack.c.h.b16 %v2477
      %v2918 = vunpack.c.l.b16 %v2478
      %v2919 = vunpack.c.h.b16 %v2478
      %v2920 = vunpack.c.l.b16 %v2479
      %v2921 = vunpack.c.h.b16 %v2479
      %v2922 = vunpack.c.l.b16 %v2480
      %v2923 = vunpack.c.h.b16 %v2480
      %v2924 = vunpack.c.l.b16 %v2481
      %v2925 = vunpack.c.h.b16 %v2481
      %v2926 = vunpack.c.l.b16 %v2482
      %v2927 = vunpack.c.h.b16 %v2482
      %v2928 = vunpack.c.l.b16 %v2483
      %v2929 = vunpack.c.h.b16 %v2483
      %v2930 = vunpack.c.l.b16 %v2484
      %v2931 = vunpack.c.h.b16 %v2484
      %v2932 = vunpack.c.l.b16 %v2485
      %v2933 = vunpack.c.h.b16 %v2485
      %v2934 = vunpack.c.l.b16 %v2486
      %v2935 = vunpack.c.h.b16 %v2486
      %v2936 = vunpack.c.l.b16 %v2487
      %v2937 = vunpack.c.h.b16 %v2487
      %v2938 = vunpack.c.l.b16 %v2488
      %v2939 = vunpack.c.h.b16 %v2488
      %v2940 = vunpack.c.l.b16 %v2489
      %v2941 = vunpack.c.h.b16 %v2489
      %v2942 = vunpack.c.l.b16 %v2490
      %v2943 = vunpack.c.h.b16 %v2490
      %v2944 = vunpack.c.l.b16 %v2491
      %v2945 = vunpack.c.h.b16 %v2491
      %v2946 = vunpack.c.l.b16 %v2492
      %v2947 = vunpack.c.h.b16 %v2492
      %v2948 = vunpack.c.l.b16 %v2493
      %v2949 = vunpack.c.h.b16 %v2493
      %v2950 = vunpack.c.l.b16 %v2494
      %v2951 = vunpack.c.h.b16 %v2494
      %v2952 = vunpack.c.l.b16 %v2495
      %v2953 = vunpack.c.h.b16 %v2495
      %v2954 = vunpack.c.l.b16 %v2496
      %v2955 = vunpack.c.h.b16 %v2496
      %v2956 = vunpack.c.l.b16 %v2497
      %v2957 = vunpack.c.h.b16 %v2497
      %v2958 = vunpack.c.l.b16 %v2498
      %v2959 = vunpack.c.h.b16 %v2498
      %v2960 = vunpack.c.l.b16 %v2499
      %v2961 = vunpack.c.h.b16 %v2499
      %v2962 = vunpack.c.l.b16 %v2500
      %v2963 = vunpack.c.h.b16 %v2500
      %v2964 = vunpack.c.l.b16 %v2501
      %v2965 = vunpack.c.h.b16 %v2501
      %v2966 = vunpack.c.l.b16 %v2502
      %v2967 = vunpack.c.h.b16 %v2502
      %v2968 = vunpack.c.l.b16 %v2503
      %v2969 = vunpack.c.h.b16 %v2503
      %v2970 = vunpack.c.l.b16 %v2504
      %v2971 = vunpack.c.h.b16 %v2504
      %v2972 = vunpack.c.l.b16 %v2505
      %v2973 = vunpack.c.h.b16 %v2505
      %v2974 = vunpack.c.l.b16 %v2506
      %v2975 = vunpack.c.h.b16 %v2506
      %v2976 = vunpack.c.l.b16 %v2507
      %v2977 = vunpack.c.h.b16 %v2507
      %v2978 = vunpack.c.l.b16 %v2508
      %v2979 = vunpack.c.h.b16 %v2508
      %v2980 = vunpack.c.l.b16 %v2509
      %v2981 = vunpack.c.h.b16 %v2509
      %v2982 = vunpack.c.l.b16 %v2510
      %v2983 = vunpack.c.h.b16 %v2510
      %v2984 = vunpack.c.l.b16 %v2511
      %v2985 = vunpack.c.h.b16 %v2511
      %v2986 = vunpack.c.l.b16 %v2512
      %v2987 = vunpack.c.h.b16 %v2512
      %v2988 = vunpack.c.l.b16 %v2513
      %v2989 = vunpack.c.h.b16 %v2513
      %v2990 = vunpack.c.l.b16 %v2514
      %v2991 = vunpack.c.h.b16 %v2514
      %v2992 = vunpack.c.l.b16 %v2515
      %v2993 = vunpack.c.h.b16 %v2515
      %v2994 = vunpack.c.l.b16 %v2516
      %v2995 = vunpack.c.h.b16 %v2516
      %v2996 = vunpack.c.l.b16 %v2517
      %v2997 = vunpack.c.h.b16 %v2517
      %v2998 = vunpack.c.l.b16 %v2518
      %v2999 = vunpack.c.h.b16 %v2518
      %v3000 = vunpack.c.l.b16 %v2519
      %v3001 = vunpack.c.h.b16 %v2519
      %v3002 = vunpack.c.l.b16 %v2520
      %v3003 = vunpack.c.h.b16 %v2520
      %v3004 = vunpack.c.l.b16 %v2521
      %v3005 = vunpack.c.h.b16 %v2521
      %v3006 = vunpack.c.l.b16 %v2522
      %v3007 = vunpack.c.h.b16 %v2522
      %v3008 = vunpack.c.l.b16 %v2523
      %v3009 = vunpack.c.h.b16 %v2523
      %v3010 = vunpack.c.l.b16 %v2524
      %v3011 = vunpack.c.h.b16 %v2524
      %v3012 = vunpack.c.l.b16 %v2525
      %v3013 = vunpack.c.h.b16 %v2525
      %v3014 = vunpack.c.l.b16 %v2526
      %v3015 = vunpack.c.h.b16 %v2526
      %v3016 = vunpack.c.l.b16 %v2527
      %v3017 = vunpack.c.h.b16 %v2527
      %v3018 = vunpack.c.l.b16 %v2528
      %v3019 = vunpack.c.h.b16 %v2528
      %v3020 = vunpack.c.l.b16 %v2529
      %v3021 = vunpack.c.h.b16 %v2529
      %v3022 = vunpack.c.l.b16 %v2530
      %v3023 = vunpack.c.h.b16 %v2530
      %v3024 = vunpack.c.l.b16 %v2531
      %v3025 = vunpack.c.h.b16 %v2531
      %v3026 = vunpack.c.l.b16 %v2532
      %v3027 = vunpack.c.h.b16 %v2532
      %v3028 = vunpack.c.l.b16 %v2533
      %v3029 = vunpack.c.h.b16 %v2533
      %v3030 = vunpack.c.l.b16 %v2534
      %v3031 = vunpack.c.h.b16 %v2534
      %v3032 = vunpack.c.l.b16 %v2535
      %v3033 = vunpack.c.h.b16 %v2535
      %v3034 = vunpack.c.l.b16 %v2536
      %v3035 = vunpack.c.h.b16 %v2536
      %v3036 = vunpack.c.l.b16 %v2537
      %v3037 = vunpack.c.h.b16 %v2537
      %v3038 = vunpack.c.l.b16 %v2538
      %v3039 = vunpack.c.h.b16 %v2538
      %v3040 = vunpack.c.l.b16 %v2539
      %v3041 = vunpack.c.h.b16 %v2539
      %v3042 = vunpack.c.l.b16 %v2540
      %v3043 = vunpack.c.h.b16 %v2540
      %v3044 = vunpack.c.l.b16 %v2541
      %v3045 = vunpack.c.h.b16 %v2541
      %v3046 = vunpack.c.l.b16 %v2542
      %v3047 = vunpack.c.h.b16 %v2542
      %v3048 = vunpack.c.l.b16 %v2543
      %v3049 = vunpack.c.h.b16 %v2543
      %v3050 = vunpack.c.l.b16 %v2544
      %v3051 = vunpack.c.h.b16 %v2544
      %v3052 = vunpack.c.l.b16 %v2545
      %v3053 = vunpack.c.h.b16 %v2545
      %v3054 = vunpack.c.l.b16 %v2546
      %v3055 = vunpack.c.h.b16 %v2546
      %v3056 = vunpack.c.l.b16 %v2547
      %v3057 = vunpack.c.h.b16 %v2547
      %v3058 = vunpack.c.l.b16 %v2548
      %v3059 = vunpack.c.h.b16 %v2548
      %v3060 = vunpack.c.l.b16 %v2549
      %v3061 = vunpack.c.h.b16 %v2549
      %v3062 = vunpack.c.l.b16 %v2550
      %v3063 = vunpack.c.h.b16 %v2550
      %v3064 = vunpack.c.l.b16 %v2551
      %v3065 = vunpack.c.h.b16 %v2551
      %v3066 = vunpack.c.l.b16 %v2552
      %v3067 = vunpack.c.h.b16 %v2552
      %v3068 = vunpack.c.l.b16 %v2553
      %v3069 = vunpack.c.h.b16 %v2553
      %v3070 = vunpack.c.l.b16 %v2554
      %v3071 = vunpack.c.h.b16 %v2554
      %v3072 = vunpack.c.l.b16 %v2555
      %v3073 = vunpack.c.h.b16 %v2555
      %v3074 = vunpack.c.l.b16 %v2556
      %v3075 = vunpack.c.h.b16 %v2556
      %v3076 = vunpack.c.l.b16 %v2557
      %v3077 = vunpack.c.h.b16 %v2557
      %v3078 = vunpack.c.l.b16 %v2558
      %v3079 = vunpack.c.h.b16 %v2558
      %v3080 = vunpack.c.l.b16 %v2559
      %v3081 = vunpack.c.h.b16 %v2559
      %v3082 = vunpack.c.l.b16 %v2560
      %v3083 = vunpack.c.h.b16 %v2560
      %v3084 = vunpack.c.l.b16 %v2561
      %v3085 = vunpack.c.h.b16 %v2561
      %v3086 = vunpack.c.l.b16 %v2562
      %v3087 = vunpack.c.h.b16 %v2562
      %v3088 = vunpack.c.l.b16 %v2563
      %v3089 = vunpack.c.h.b16 %v2563
      %v3090 = vunpack.c.l.b16 %v2564
      %v3091 = vunpack.c.h.b16 %v2564
      %v3092 = vunpack.c.l.b16 %v2565
      %v3093 = vunpack.c.h.b16 %v2565
      %v3094 = vunpack.c.l.b16 %v2566
      %v3095 = vunpack.c.h.b16 %v2566
      %v3096 = vunpack.c.l.b16 %v2567
      %v3097 = vunpack.c.h.b16 %v2567
      %v3098 = vunpack.c.l.b16 %v2568
      %v3099 = vunpack.c.h.b16 %v2568
      %v3100 = vunpack.c.l.b16 %v2569
      %v3101 = vunpack.c.h.b16 %v2569
      %v3102 = vunpack.c.l.b16 %v2570
      %v3103 = vunpack.c.h.b16 %v2570
      %v3104 = vunpack.c.l.b16 %v2571
      %v3105 = vunpack.c.h.b16 %v2571
      %v3106 = vunpack.c.l.b16 %v2572
      %v3107 = vunpack.c.h.b16 %v2572
      %v3108 = vunpack.c.l.b16 %v2573
      %v3109 = vunpack.c.h.b16 %v2573
      %v3110 = vunpack.c.l.b16 %v2574
      %v3111 = vunpack.c.h.b16 %v2574
      %v3112 = vunpack.c.l.b16 %v2575
      %v3113 = vunpack.c.h.b16 %v2575
      %v3114 = vunpack.c.l.b16 %v2576
      %v3115 = vunpack.c.h.b16 %v2576
      %v3116 = vunpack.c.l.b16 %v2577
      %v3117 = vunpack.c.h.b16 %v2577
      %v3118 = vunpack.c.l.b16 %v2578
      %v3119 = vunpack.c.h.b16 %v2578
      %v3120 = vunpack.c.l.b16 %v2579
      %v3121 = vunpack.c.h.b16 %v2579
      %v3122 = vpack.c.b16 %v2854, %v2850
      %v3123 = vpack.c.b16 %v2855, %v2851
      %v3124 = vpack.c.b16 %v2856, %v2852
      %v3125 = vpack.c.b16 %v2857, %v2853
      %v3126 = vpack.c.b16 %v2862, %v2858
      %v3127 = vpack.c.b16 %v2863, %v2859
      %v3128 = vpack.c.b16 %v2864, %v2860
      %v3129 = vpack.c.b16 %v2865, %v2861
      %v3130 = vpack.c.b16 %v2870, %v2866
      %v3131 = vpack.c.b16 %v2871, %v2867
      %v3132 = vpack.c.b16 %v2872, %v2868
      %v3133 = vpack.c.b16 %v2873, %v2869
      %v3134 = vpack.c.b16 %v2878, %v2874
      %v3135 = vpack.c.b16 %v2879, %v2875
      %v3136 = vpack.c.b16 %v2880, %v2876
      %v3137 = vpack.c.b16 %v2881, %v2877
      %v3138 = vpack.c.b16 %v2886, %v2882
      %v3139 = vpack.c.b16 %v2887, %v2883
      %v3140 = vpack.c.b16 %v2888, %v2884
      %v3141 = vpack.c.b16 %v2889, %v2885
      %v3142 = vpack.c.b16 %v2894, %v2890
      %v3143 = vpack.c.b16 %v2895, %v2891
      %v3144 = vpack.c.b16 %v2896, %v2892
      %v3145 = vpack.c.b16 %v2897, %v2893
      %v3146 = vpack.c.b16 %v2902, %v2898
      %v3147 = vpack.c.b16 %v2903, %v2899
      %v3148 = vpack.c.b16 %v2904, %v2900
      %v3149 = vpack.c.b16 %v2905, %v2901
      %v3150 = vpack.c.b16 %v2910, %v2906
      %v3151 = vpack.c.b16 %v2911, %v2907
      %v3152 = vpack.c.b16 %v2912, %v2908
      %v3153 = vpack.c.b16 %v2913, %v2909
      %v3154 = vpack.c.b16 %v2918, %v2914
      %v3155 = vpack.c.b16 %v2919, %v2915
      %v3156 = vpack.c.b16 %v2920, %v2916
      %v3157 = vpack.c.b16 %v2921, %v2917
      %v3158 = vpack.c.b16 %v2926, %v2922
      %v3159 = vpack.c.b16 %v2927, %v2923
      %v3160 = vpack.c.b16 %v2928, %v2924
      %v3161 = vpack.c.b16 %v2929, %v2925
      %v3162 = vpack.c.b16 %v2934, %v2930
      %v3163 = vpack.c.b16 %v2935, %v2931
      %v3164 = vpack.c.b16 %v2936, %v2932
      %v3165 = vpack.c.b16 %v2937, %v2933
      %v3166 = vpack.c.b16 %v2942, %v2938
      %v3167 = vpack.c.b16 %v2943, %v2939
      %v3168 = vpack.c.b16 %v2944, %v2940
      %v3169 = vpack.c.b16 %v2945, %v2941
      %v3170 = vpack.c.b16 %v2950, %v2946
      %v3171 = vpack.c.b16 %v2951, %v2947
      %v3172 = vpack.c.b16 %v2952, %v2948
      %v3173 = vpack.c.b16 %v2953, %v2949
      %v3174 = vpack.c.b16 %v2958, %v2954
      %v3175 = vpack.c.b16 %v2959, %v2955
      %v3176 = vpack.c.b16 %v2960, %v2956
      %v3177 = vpack.c.b16 %v2961, %v2957
      %v3178 = vpack.c.b16 %v2966, %v2962
      %v3179 = vpack.c.b16 %v2967, %v2963
      %v3180 = vpack.c.b16 %v2968, %v2964
      %v3181 = vpack.c.b16 %v2969, %v2965
      %v3182 = vpack.c.b16 %v2974, %v2970
      %v3183 = vpack.c.b16 %v2975, %v2971
      %v3184 = vpack.c.b16 %v2976, %v2972
      %v3185 = vpack.c.b16 %v2977, %v2973
      %v3186 = vpack.c.b16 %v2982, %v2978
      %v3187 = vpack.c.b16 %v2983, %v2979
      %v3188 = vpack.c.b16 %v2984, %v2980
      %v3189 = vpack.c.b16 %v2985, %v2981
      %v3190 = vpack.c.b16 %v2990, %v2986
      %v3191 = vpack.c.b16 %v2991, %v2987
      %v3192 = vpack.c.b16 %v2992, %v2988
      %v3193 = vpack.c.b16 %v2993, %v2989
      %v3194 = vpack.c.b16 %v2998, %v2994
      %v3195 = vpack.c.b16 %v2999, %v2995
      %v3196 = vpack.c.b16 %v3000, %v2996
      %v3197 = vpack.c.b16 %v3001, %v2997
      %v3198 = vpack.c.b16 %v3006, %v3002
      %v3199 = vpack.c.b16 %v3007, %v3003
      %v3200 = vpack.c.b16 %v3008, %v3004
      %v3201 = vpack.c.b16 %v3009, %v3005
      %v3202 = vpack.c.b16 %v3014, %v3010
      %v3203 = vpack.c.b16 %v3015, %v3011
      %v3204 = vpack.c.b16 %v3016, %v3012
      %v3205 = vpack.c.b16 %v3017, %v3013
      %v3206 = vpack.c.b16 %v3022, %v3018
      %v3207 = vpack.c.b16 %v3023, %v3019
      %v3208 = vpack.c.b16 %v3024, %v3020
      %v3209 = vpack.c.b16 %v3025, %v3021
      %v3210 = vpack.c.b16 %v3030, %v3026
      %v3211 = vpack.c.b16 %v3031, %v3027
      %v3212 = vpack.c.b16 %v3032, %v3028
      %v3213 = vpack.c.b16 %v3033, %v3029
      %v3214 = vpack.c.b16 %v3038, %v3034
      %v3215 = vpack.c.b16 %v3039, %v3035
      %v3216 = vpack.c.b16 %v3040, %v3036
      %v3217 = vpack.c.b16 %v3041, %v3037
      %v3218 = vpack.c.b16 %v3046, %v3042
      %v3219 = vpack.c.b16 %v3047, %v3043
      %v3220 = vpack.c.b16 %v3048, %v3044
      %v3221 = vpack.c.b16 %v3049, %v3045
      %v3222 = vpack.c.b16 %v3054, %v3050
      %v3223 = vpack.c.b16 %v3055, %v3051
      %v3224 = vpack.c.b16 %v3056, %v3052
      %v3225 = vpack.c.b16 %v3057, %v3053
      %v3226 = vpack.c.b16 %v3062, %v3058
      %v3227 = vpack.c.b16 %v3063, %v3059
      %v3228 = vpack.c.b16 %v3064, %v3060
      %v3229 = vpack.c.b16 %v3065, %v3061
      %v3230 = vpack.c.b16 %v3070, %v3066
      %v3231 = vpack.c.b16 %v3071, %v3067
      %v3232 = vpack.c.b16 %v3072, %v3068
      %v3233 = vpack.c.b16 %v3073, %v3069
      %v3234 = vpack.c.b16 %v3078, %v3074
      %v3235 = vpack.c.b16 %v3079, %v3075
      %v3236 = vpack.c.b16 %v3080, %v3076
      %v3237 = vpack.c.b16 %v3081, %v3077
      %v3238 = vpack.c.b16 %v3086, %v3082
      %v3239 = vpack.c.b16 %v3087, %v3083
      %v3240 = vpack.c.b16 %v3088, %v3084
      %v3241 = vpack.c.b16 %v3089, %v3085
      %v3242 = vpack.c.b16 %v3094, %v3090
      %v3243 = vpack.c.b16 %v3095, %v3091
      %v3244 = vpack.c.b16 %v3096, %v3092
      %v3245 = vpack.c.b16 %v3097, %v3093
      %v3246 = vpack.c.b16 %v3102, %v3098
      %v3247 = vpack.c.b16 %v3103, %v3099
      %v3248 = vpack.c.b16 %v3104, %v3100
      %v3249 = vpack.c.b16 %v3105, %v3101
      %v3250 = vpack.c.b16 %v3110, %v3106
      %v3251 = vpack.c.b16 %v3111, %v3107
      %v3252 = vpack.c.b16 %v3112, %v3108
      %v3253 = vpack.c.b16 %v3113, %v3109
      %v3254 = vpack.c.b16 %v3118, %v3114
      %v3255 = vpack.c.b16 %v3119, %v3115
      %v3256 = vpack.c.b16 %v3120, %v3116
      %v3257 = vpack.c.b16 %v3121, %v3117
      %vm3394 = vcmask 261120
      %v3396 = vsel %vm3394, %v2682, 0
      %v3399 = vsel %vm3394, %v2687, 0
      %v3402 = vsel %vm3394, %v2692, 0
      %v3405 = vsel %vm3394, %v2697, 0
      %3407 = vmatprep.subr.bf16.mxu0 %v3151
      %3408 = vmatpush1.bf16.msra.mxu0 %v3150
      %3409 = vmatprep.subr.bf16.mxu0 %v3147
      %3410 = vmatpush1.bf16.msra.mxu0 %v3146
      %3411 = vmatprep.subr.bf16.mxu0 %v3143
      %3412 = vmatpush1.bf16.msra.mxu0 %v3142
      %3413 = vmatprep.subr.bf16.mxu0 %v3139
      %3414 = vmatpush1.bf16.msra.mxu0 %v3138
      %3415 = vmatprep.subr.bf16.mxu0 %v3135
      %3416 = vmatpush1.bf16.msra.mxu0 %v3134
      %3417 = vmatprep.subr.bf16.mxu0 %v3131
      %3418 = vmatpush1.bf16.msra.mxu0 %v3130
      %3419 = vmatprep.subr.bf16.mxu0 %v3127
      %3420 = vmatpush1.bf16.msra.mxu0 %v3126
      %3421 = vmatprep.subr.bf16.mxu0 %v3123
      %3422 = vmatpush1.bf16.msra.mxu0 %v3122
      %3423 = vmatprep.subr.bf16.mxu0 %v3183
      %3424 = vmatpush2.bf16.msra.mxu0 %v3182
      %3425 = vmatprep.subr.bf16.mxu0 %v3179
      %3426 = vmatpush2.bf16.msra.mxu0 %v3178
      %3427 = vmatprep.subr.bf16.mxu0 %v3175
      %3428 = vmatpush2.bf16.msra.mxu0 %v3174
      %3429 = vmatprep.subr.bf16.mxu0 %v3171
      %3430 = vmatpush2.bf16.msra.mxu0 %v3170
      %3431 = vmatprep.subr.bf16.mxu0 %v3167
      %3432 = vmatpush2.bf16.msra.mxu0 %v3166
      %3433 = vmatprep.subr.bf16.mxu0 %v3163
      %3434 = vmatpush2.bf16.msra.mxu0 %v3162
      %3435 = vmatprep.subr.bf16.mxu0 %v3159
      %3436 = vmatpush2.bf16.msra.mxu0 %v3158
      %3437 = vmatprep.subr.bf16.mxu0 %v3155
      %3438 = vmatpush2.bf16.msra.mxu0 %v3154
      %3439 = vmatprep.mubr.bf16.mxu0 %v2679
      %3440 = vmatmul.mubr.bf16.gmra.mxu0 %v2678
      %v3441 = vpop.f32.mrf.mxu0
      %v3442 = vadd.f32 %v2590, %v3441
      %v3443 = vpop.f32.mrf.mxu0
      %v3444 = vadd.f32 %v2590, %v3443
      %v3445 = vpop.f32.mrf.mxu0
      %v3446 = vadd.f32 %v2595, %v3445
      %v3447 = vpop.f32.mrf.mxu0
      %v3448 = vadd.f32 %v2595, %v3447
      %3449 = vmatprep.mubr.bf16.mxu0 %v2684
      %3450 = vmatmul.mubr.bf16.gmra.mxu0 %v2683
      %v3451 = vpop.f32.mrf.mxu0
      %v3452 = vadd.f32 %v2600, %v3451
      %v3453 = vpop.f32.mrf.mxu0
      %v3454 = vadd.f32 %v2600, %v3453
      %v3455 = vpop.f32.mrf.mxu0
      %v3456 = vadd.f32 %v2605, %v3455
      %v3457 = vpop.f32.mrf.mxu0
      %v3458 = vadd.f32 %v2605, %v3457
      %3459 = vmatprep.mubr.bf16.mxu0 %v2689
      %3460 = vmatmul.mubr.bf16.gmra.mxu0 %v2688
      %v3461 = vpop.f32.mrf.mxu0
      %v3462 = vadd.f32 %v2610, %v3461
      %v3463 = vpop.f32.mrf.mxu0
      %v3464 = vadd.f32 %v2610, %v3463
      %v3465 = vpop.f32.mrf.mxu0
      %v3466 = vadd.f32 %v2615, %v3465
      %v3467 = vpop.f32.mrf.mxu0
      %v3468 = vadd.f32 %v2615, %v3467
      %3469 = vmatprep.mubr.bf16.mxu0 %v2694
      %3470 = vmatmul.mubr.bf16.gmra.mxu0 %v2693
      %v3471 = vpop.f32.mrf.mxu0
      %v3472 = vadd.f32 %v2620, %v3471
      %v3473 = vpop.f32.mrf.mxu0
      %v3474 = vadd.f32 %v2620, %v3473
      %v3475 = vpop.f32.mrf.mxu0
      %v3476 = vpop.f32.mrf.mxu0
      %3477 = vdwg.mxu0
      %3478 = vmatprep.subr.bf16.mxu0 %v3215
      %3479 = vmatpush1.bf16.msra.mxu0 %v3214
      %3480 = vmatprep.subr.bf16.mxu0 %v3211
      %3481 = vmatpush1.bf16.msra.mxu0 %v3210
      %3482 = vmatprep.subr.bf16.mxu0 %v3207
      %3483 = vmatpush1.bf16.msra.mxu0 %v3206
      %3484 = vmatprep.subr.bf16.mxu0 %v3203
      %3485 = vmatpush1.bf16.msra.mxu0 %v3202
      %3486 = vmatprep.subr.bf16.mxu0 %v3199
      %3487 = vmatpush1.bf16.msra.mxu0 %v3198
      %3488 = vmatprep.subr.bf16.mxu0 %v3195
      %3489 = vmatpush1.bf16.msra.mxu0 %v3194
      %3490 = vmatprep.subr.bf16.mxu0 %v3191
      %3491 = vmatpush1.bf16.msra.mxu0 %v3190
      %3492 = vmatprep.subr.bf16.mxu0 %v3187
      %3493 = vmatpush1.bf16.msra.mxu0 %v3186
      %3494 = vmatprep.subr.bf16.mxu0 %v3247
      %3495 = vmatpush2.bf16.msra.mxu0 %v3246
      %3496 = vmatprep.subr.bf16.mxu0 %v3243
      %3497 = vmatpush2.bf16.msra.mxu0 %v3242
      %3498 = vmatprep.subr.bf16.mxu0 %v3239
      %3499 = vmatpush2.bf16.msra.mxu0 %v3238
      %3500 = vmatprep.subr.bf16.mxu0 %v3235
      %3501 = vmatpush2.bf16.msra.mxu0 %v3234
      %3502 = vmatprep.subr.bf16.mxu0 %v3231
      %3503 = vmatpush2.bf16.msra.mxu0 %v3230
      %3504 = vmatprep.subr.bf16.mxu0 %v3227
      %3505 = vmatpush2.bf16.msra.mxu0 %v3226
      %3506 = vmatprep.subr.bf16.mxu0 %v3223
      %3507 = vmatpush2.bf16.msra.mxu0 %v3222
      %3508 = vmatprep.subr.bf16.mxu0 %v3219
      %3509 = vmatpush2.bf16.msra.mxu0 %v3218
      %3510 = vmatprep.mubr.bf16.mxu0 %v2681
      %3511 = vmatmul.mubr.bf16.gmra.mxu0 %v2680
      %v3512 = vpop.f32.mrf.mxu0
      %v3513 = vadd.f32 %v3442, %v3512
      %v3514 = vpop.f32.mrf.mxu0
      %v3515 = vadd.f32 %v3444, %v3514
      %v3516 = vpop.f32.mrf.mxu0
      %v3517 = vadd.f32 %v3446, %v3516
      %v3518 = vpop.f32.mrf.mxu0
      %v3519 = vadd.f32 %v3448, %v3518
      %3520 = vmatprep.mubr.bf16.mxu0 %v2686
      %3521 = vmatmul.mubr.bf16.gmra.mxu0 %v2685
      %v3522 = vpop.f32.mrf.mxu0
      %v3523 = vadd.f32 %v3452, %v3522
      %v3524 = vpop.f32.mrf.mxu0
      %v3525 = vadd.f32 %v3454, %v3524
      %v3526 = vpop.f32.mrf.mxu0
      %v3527 = vadd.f32 %v3456, %v3526
      %v3528 = vpop.f32.mrf.mxu0
      %v3529 = vadd.f32 %v3458, %v3528
      %3530 = vmatprep.mubr.bf16.mxu0 %v2691
      %3531 = vmatmul.mubr.bf16.gmra.mxu0 %v2690
      %v3532 = vpop.f32.mrf.mxu0
      %v3533 = vadd.f32 %v3462, %v3532
      %v3534 = vpop.f32.mrf.mxu0
      %v3535 = vadd.f32 %v3464, %v3534
      %v3536 = vpop.f32.mrf.mxu0
      %v3537 = vadd.f32 %v3466, %v3536
      %v3538 = vpop.f32.mrf.mxu0
      %v3539 = vadd.f32 %v3468, %v3538
      %3540 = vmatprep.mubr.bf16.mxu0 %v2696
      %3541 = vmatmul.mubr.bf16.gmra.mxu0 %v2695
      %v3542 = vpop.f32.mrf.mxu0
      %v3543 = vadd.f32 %v3472, %v3542
      %v3544 = vpop.f32.mrf.mxu0
      %v3545 = vadd.f32 %v3474, %v3544
      %v3546 = vpop.f32.mrf.mxu0
      %v3547 = vpop.f32.mrf.mxu0
      %3548 = vdwg.mxu0
      %3549 = vmatprep.subr.bf16.mxu0 0
      %3550 = vmatpush1.bf16.msra.mxu0 0
      %3551 = vmatprep.subr.bf16.mxu0 0
      %3552 = vmatpush1.bf16.msra.mxu0 0
      %3553 = vmatprep.subr.bf16.mxu0 0
      %3554 = vmatpush1.bf16.msra.mxu0 0
      %3555 = vmatprep.subr.bf16.mxu0 0
      %3556 = vmatpush1.bf16.msra.mxu0 0
      %3557 = vmatprep.subr.bf16.mxu0 0
      %3558 = vmatpush1.bf16.msra.mxu0 0
      %3559 = vmatprep.subr.bf16.mxu0 0
      %3560 = vmatpush1.bf16.msra.mxu0 0
      %3561 = vmatprep.subr.bf16.mxu0 %v3255
      %3562 = vmatpush1.bf16.msra.mxu0 %v3254
      %3563 = vmatprep.subr.bf16.mxu0 %v3251
      %3564 = vmatpush1.bf16.msra.mxu0 %v3250
      %3565 = vmatprep.subr.bf16.mxu0 0
      %3566 = vmatpush2.bf16.msra.mxu0 0
      %3567 = vmatprep.subr.bf16.mxu0 0
      %3568 = vmatpush2.bf16.msra.mxu0 0
      %3569 = vmatprep.subr.bf16.mxu0 0
      %3570 = vmatpush2.bf16.msra.mxu0 0
      %3571 = vmatprep.subr.bf16.mxu0 0
      %3572 = vmatpush2.bf16.msra.mxu0 0
      %3573 = vmatprep.subr.bf16.mxu0 0
      %3574 = vmatpush2.bf16.msra.mxu0 0
      %3575 = vmatprep.subr.bf16.mxu0 0
      %3576 = vmatpush2.bf16.msra.mxu0 0
      %3577 = vmatprep.subr.bf16.mxu0 0
      %3578 = vmatpush2.bf16.msra.mxu0 0
      %3579 = vmatprep.subr.bf16.mxu0 0
      %3580 = vmatpush2.bf16.msra.mxu0 0
      %3581 = vmatprep.mubr.bf16.mxu0 0
      %3582 = vmatmul.mubr.bf16.gmra.mxu0 %v3396
      %v3583 = vpop.f32.mrf.mxu0
      %v3584 = vadd.f32 %v3513, %v3583
      %v3585 = vpop.f32.mrf.mxu0
      %v3586 = vadd.f32 %v3515, %v3585
      %v3587 = vpop.f32.mrf.mxu0
      %v3588 = vadd.f32 %v3517, %v3587
      %v3589 = vpop.f32.mrf.mxu0
      %v3590 = vadd.f32 %v3519, %v3589
      %3591 = vmatprep.mubr.bf16.mxu0 0
      %3592 = vmatmul.mubr.bf16.gmra.mxu0 %v3399
      %v3593 = vpop.f32.mrf.mxu0
      %v3594 = vadd.f32 %v3523, %v3593
      %v3595 = vpop.f32.mrf.mxu0
      %v3596 = vadd.f32 %v3525, %v3595
      %v3597 = vpop.f32.mrf.mxu0
      %v3598 = vadd.f32 %v3527, %v3597
      %v3599 = vpop.f32.mrf.mxu0
      %v3600 = vadd.f32 %v3529, %v3599
      %3601 = vmatprep.mubr.bf16.mxu0 0
      %3602 = vmatmul.mubr.bf16.gmra.mxu0 %v3402
      %v3603 = vpop.f32.mrf.mxu0
      %v3604 = vadd.f32 %v3533, %v3603
      %v3605 = vpop.f32.mrf.mxu0
      %v3606 = vadd.f32 %v3535, %v3605
      %v3607 = vpop.f32.mrf.mxu0
      %v3608 = vadd.f32 %v3537, %v3607
      %v3609 = vpop.f32.mrf.mxu0
      %v3610 = vadd.f32 %v3539, %v3609
      %3611 = vmatprep.mubr.bf16.mxu0 0
      %3612 = vmatmul.mubr.bf16.gmra.mxu0 %v3405
      %v3613 = vpop.f32.mrf.mxu0
      %v3614 = vadd.f32 %v3543, %v3613
      %v3615 = vpop.f32.mrf.mxu0
      %v3616 = vadd.f32 %v3545, %v3615
      %v3617 = vpop.f32.mrf.mxu0
      %v3618 = vpop.f32.mrf.mxu0
      %3619 = vdwg.mxu0
      %3620 = vmatprep.subr.bf16.mxu0 %v3153
      %3621 = vmatpush1.bf16.msra.mxu0 %v3152
      %3622 = vmatprep.subr.bf16.mxu0 %v3149
      %3623 = vmatpush1.bf16.msra.mxu0 %v3148
      %3624 = vmatprep.subr.bf16.mxu0 %v3145
      %3625 = vmatpush1.bf16.msra.mxu0 %v3144
      %3626 = vmatprep.subr.bf16.mxu0 %v3141
      %3627 = vmatpush1.bf16.msra.mxu0 %v3140
      %3628 = vmatprep.subr.bf16.mxu0 %v3137
      %3629 = vmatpush1.bf16.msra.mxu0 %v3136
      %3630 = vmatprep.subr.bf16.mxu0 %v3133
      %3631 = vmatpush1.bf16.msra.mxu0 %v3132
      %3632 = vmatprep.subr.bf16.mxu0 %v3129
      %3633 = vmatpush1.bf16.msra.mxu0 %v3128
      %3634 = vmatprep.subr.bf16.mxu0 %v3125
      %3635 = vmatpush1.bf16.msra.mxu0 %v3124
      %3636 = vmatprep.subr.bf16.mxu0 %v3185
      %3637 = vmatpush2.bf16.msra.mxu0 %v3184
      %3638 = vmatprep.subr.bf16.mxu0 %v3181
      %3639 = vmatpush2.bf16.msra.mxu0 %v3180
      %3640 = vmatprep.subr.bf16.mxu0 %v3177
      %3641 = vmatpush2.bf16.msra.mxu0 %v3176
      %3642 = vmatprep.subr.bf16.mxu0 %v3173
      %3643 = vmatpush2.bf16.msra.mxu0 %v3172
      %3644 = vmatprep.subr.bf16.mxu0 %v3169
      %3645 = vmatpush2.bf16.msra.mxu0 %v3168
      %3646 = vmatprep.subr.bf16.mxu0 %v3165
      %3647 = vmatpush2.bf16.msra.mxu0 %v3164
      %3648 = vmatprep.subr.bf16.mxu0 %v3161
      %3649 = vmatpush2.bf16.msra.mxu0 %v3160
      %3650 = vmatprep.subr.bf16.mxu0 %v3157
      %3651 = vmatpush2.bf16.msra.mxu0 %v3156
      %3652 = vmatprep.mubr.bf16.mxu0 %v2679
      %3653 = vmatmul.mubr.bf16.gmra.mxu0 %v2678
      %v3654 = vpop.f32.mrf.mxu0
      %v3655 = vadd.f32 %v2590, %v3654
      %v3656 = vpop.f32.mrf.mxu0
      %v3657 = vadd.f32 %v2590, %v3656
      %v3658 = vpop.f32.mrf.mxu0
      %v3659 = vadd.f32 %v2595, %v3658
      %v3660 = vpop.f32.mrf.mxu0
      %v3661 = vadd.f32 %v2595, %v3660
      %3662 = vmatprep.mubr.bf16.mxu0 %v2684
      %3663 = vmatmul.mubr.bf16.gmra.mxu0 %v2683
      %v3664 = vpop.f32.mrf.mxu0
      %v3665 = vadd.f32 %v2600, %v3664
      %v3666 = vpop.f32.mrf.mxu0
      %v3667 = vadd.f32 %v2600, %v3666
      %v3668 = vpop.f32.mrf.mxu0
      %v3669 = vadd.f32 %v2605, %v3668
      %v3670 = vpop.f32.mrf.mxu0
      %v3671 = vadd.f32 %v2605, %v3670
      %3672 = vmatprep.mubr.bf16.mxu0 %v2689
      %3673 = vmatmul.mubr.bf16.gmra.mxu0 %v2688
      %v3674 = vpop.f32.mrf.mxu0
      %v3675 = vadd.f32 %v2610, %v3674
      %v3676 = vpop.f32.mrf.mxu0
      %v3677 = vadd.f32 %v2610, %v3676
      %v3678 = vpop.f32.mrf.mxu0
      %v3679 = vadd.f32 %v2615, %v3678
      %v3680 = vpop.f32.mrf.mxu0
      %v3681 = vadd.f32 %v2615, %v3680
      %3682 = vmatprep.mubr.bf16.mxu0 %v2694
      %3683 = vmatmul.mubr.bf16.gmra.mxu0 %v2693
      %v3684 = vpop.f32.mrf.mxu0
      %v3685 = vadd.f32 %v2620, %v3684
      %v3686 = vpop.f32.mrf.mxu0
      %v3687 = vadd.f32 %v2620, %v3686
      %v3688 = vpop.f32.mrf.mxu0
      %v3689 = vpop.f32.mrf.mxu0
      %3690 = vdwg.mxu0
      %3691 = vmatprep.subr.bf16.mxu0 %v3217
      %3692 = vmatpush1.bf16.msra.mxu0 %v3216
      %3693 = vmatprep.subr.bf16.mxu0 %v3213
      %3694 = vmatpush1.bf16.msra.mxu0 %v3212
      %3695 = vmatprep.subr.bf16.mxu0 %v3209
      %3696 = vmatpush1.bf16.msra.mxu0 %v3208
      %3697 = vmatprep.subr.bf16.mxu0 %v3205
      %3698 = vmatpush1.bf16.msra.mxu0 %v3204
      %3699 = vmatprep.subr.bf16.mxu0 %v3201
      %3700 = vmatpush1.bf16.msra.mxu0 %v3200
      %3701 = vmatprep.subr.bf16.mxu0 %v3197
      %3702 = vmatpush1.bf16.msra.mxu0 %v3196
      %3703 = vmatprep.subr.bf16.mxu0 %v3193
      %3704 = vmatpush1.bf16.msra.mxu0 %v3192
      %3705 = vmatprep.subr.bf16.mxu0 %v3189
      %3706 = vmatpush1.bf16.msra.mxu0 %v3188
      %3707 = vmatprep.subr.bf16.mxu0 %v3249
      %3708 = vmatpush2.bf16.msra.mxu0 %v3248
      %3709 = vmatprep.subr.bf16.mxu0 %v3245
      %3710 = vmatpush2.bf16.msra.mxu0 %v3244
      %3711 = vmatprep.subr.bf16.mxu0 %v3241
      %3712 = vmatpush2.bf16.msra.mxu0 %v3240
      %3713 = vmatprep.subr.bf16.mxu0 %v3237
      %3714 = vmatpush2.bf16.msra.mxu0 %v3236
      %3715 = vmatprep.subr.bf16.mxu0 %v3233
      %3716 = vmatpush2.bf16.msra.mxu0 %v3232
      %3717 = vmatprep.subr.bf16.mxu0 %v3229
      %3718 = vmatpush2.bf16.msra.mxu0 %v3228
      %3719 = vmatprep.subr.bf16.mxu0 %v3225
      %3720 = vmatpush2.bf16.msra.mxu0 %v3224
      %3721 = vmatprep.subr.bf16.mxu0 %v3221
      %3722 = vmatpush2.bf16.msra.mxu0 %v3220
      %3723 = vmatprep.mubr.bf16.mxu0 %v2681
      %3724 = vmatmul.mubr.bf16.gmra.mxu0 %v2680
      %v3725 = vpop.f32.mrf.mxu0
      %v3726 = vadd.f32 %v3655, %v3725
      %v3727 = vpop.f32.mrf.mxu0
      %v3728 = vadd.f32 %v3657, %v3727
      %v3729 = vpop.f32.mrf.mxu0
      %v3730 = vadd.f32 %v3659, %v3729
      %v3731 = vpop.f32.mrf.mxu0
      %v3732 = vadd.f32 %v3661, %v3731
      %3733 = vmatprep.mubr.bf16.mxu0 %v2686
      %3734 = vmatmul.mubr.bf16.gmra.mxu0 %v2685
      %v3735 = vpop.f32.mrf.mxu0
      %v3736 = vadd.f32 %v3665, %v3735
      %v3737 = vpop.f32.mrf.mxu0
      %v3738 = vadd.f32 %v3667, %v3737
      %v3739 = vpop.f32.mrf.mxu0
      %v3740 = vadd.f32 %v3669, %v3739
      %v3741 = vpop.f32.mrf.mxu0
      %v3742 = vadd.f32 %v3671, %v3741
      %3743 = vmatprep.mubr.bf16.mxu0 %v2691
      %3744 = vmatmul.mubr.bf16.gmra.mxu0 %v2690
      %v3745 = vpop.f32.mrf.mxu0
      %v3746 = vadd.f32 %v3675, %v3745
      %v3747 = vpop.f32.mrf.mxu0
      %v3748 = vadd.f32 %v3677, %v3747
      %v3749 = vpop.f32.mrf.mxu0
      %v3750 = vadd.f32 %v3679, %v3749
      %v3751 = vpop.f32.mrf.mxu0
      %v3752 = vadd.f32 %v3681, %v3751
      %3753 = vmatprep.mubr.bf16.mxu0 %v2696
      %3754 = vmatmul.mubr.bf16.gmra.mxu0 %v2695
      %v3755 = vpop.f32.mrf.mxu0
      %v3756 = vadd.f32 %v3685, %v3755
      %v3757 = vpop.f32.mrf.mxu0
      %v3758 = vadd.f32 %v3687, %v3757
      %v3759 = vpop.f32.mrf.mxu0
      %v3760 = vpop.f32.mrf.mxu0
      %3761 = vdwg.mxu0
      %3762 = vmatprep.subr.bf16.mxu0 0
      %3763 = vmatpush1.bf16.msra.mxu0 0
      %3764 = vmatprep.subr.bf16.mxu0 0
      %3765 = vmatpush1.bf16.msra.mxu0 0
      %3766 = vmatprep.subr.bf16.mxu0 0
      %3767 = vmatpush1.bf16.msra.mxu0 0
      %3768 = vmatprep.subr.bf16.mxu0 0
      %3769 = vmatpush1.bf16.msra.mxu0 0
      %3770 = vmatprep.subr.bf16.mxu0 0
      %3771 = vmatpush1.bf16.msra.mxu0 0
      %3772 = vmatprep.subr.bf16.mxu0 0
      %3773 = vmatpush1.bf16.msra.mxu0 0
      %3774 = vmatprep.subr.bf16.mxu0 %v3257
      %3775 = vmatpush1.bf16.msra.mxu0 %v3256
      %3776 = vmatprep.subr.bf16.mxu0 %v3253
      %3777 = vmatpush1.bf16.msra.mxu0 %v3252
      %3778 = vmatprep.subr.bf16.mxu0 0
      %3779 = vmatpush2.bf16.msra.mxu0 0
      %3780 = vmatprep.subr.bf16.mxu0 0
      %3781 = vmatpush2.bf16.msra.mxu0 0
      %3782 = vmatprep.subr.bf16.mxu0 0
      %3783 = vmatpush2.bf16.msra.mxu0 0
      %3784 = vmatprep.subr.bf16.mxu0 0
      %3785 = vmatpush2.bf16.msra.mxu0 0
      %3786 = vmatprep.subr.bf16.mxu0 0
      %3787 = vmatpush2.bf16.msra.mxu0 0
      %3788 = vmatprep.subr.bf16.mxu0 0
      %3789 = vmatpush2.bf16.msra.mxu0 0
      %3790 = vmatprep.subr.bf16.mxu0 0
      %3791 = vmatpush2.bf16.msra.mxu0 0
      %3792 = vmatprep.subr.bf16.mxu0 0
      %3793 = vmatpush2.bf16.msra.mxu0 0
      %3794 = vmatprep.mubr.bf16.mxu0 0
      %3795 = vmatmul.mubr.bf16.gmra.mxu0 %v3396
      %v3796 = vpop.f32.mrf.mxu0
      %v3797 = vadd.f32 %v3726, %v3796
      %v3798 = vpop.f32.mrf.mxu0
      %v3799 = vadd.f32 %v3728, %v3798
      %v3800 = vpop.f32.mrf.mxu0
      %v3801 = vadd.f32 %v3730, %v3800
      %v3802 = vpop.f32.mrf.mxu0
      %v3803 = vadd.f32 %v3732, %v3802
      %3804 = vmatprep.mubr.bf16.mxu0 0
      %3805 = vmatmul.mubr.bf16.gmra.mxu0 %v3399
      %v3806 = vpop.f32.mrf.mxu0
      %v3807 = vadd.f32 %v3736, %v3806
      %v3808 = vpop.f32.mrf.mxu0
      %v3809 = vadd.f32 %v3738, %v3808
      %v3810 = vpop.f32.mrf.mxu0
      %v3811 = vadd.f32 %v3740, %v3810
      %v3812 = vpop.f32.mrf.mxu0
      %v3813 = vadd.f32 %v3742, %v3812
      %3814 = vmatprep.mubr.bf16.mxu0 0
      %3815 = vmatmul.mubr.bf16.gmra.mxu0 %v3402
      %v3816 = vpop.f32.mrf.mxu0
      %v3817 = vadd.f32 %v3746, %v3816
      %v3818 = vpop.f32.mrf.mxu0
      %v3819 = vadd.f32 %v3748, %v3818
      %v3820 = vpop.f32.mrf.mxu0
      %v3821 = vadd.f32 %v3750, %v3820
      %v3822 = vpop.f32.mrf.mxu0
      %v3823 = vadd.f32 %v3752, %v3822
      %3824 = vmatprep.mubr.bf16.mxu0 0
      %3825 = vmatmul.mubr.bf16.gmra.mxu0 %v3405
      %v3826 = vpop.f32.mrf.mxu0
      %v3827 = vadd.f32 %v3756, %v3826
      %v3828 = vpop.f32.mrf.mxu0
      %v3829 = vadd.f32 %v3758, %v3828
      %v3830 = vpop.f32.mrf.mxu0
      %v3831 = vpop.f32.mrf.mxu0
      %3832 = vdwg.mxu0
      %3833 = vst [vmem:[%s305 + $0x40] sm:$0xff] %v3584
      %3834 = vst [vmem:[%s305 + $0x48] sm:$0xff] %v3586
      %3835 = vst [vmem:[%s305 + $0x50] sm:$0xff] %v3797
      %3836 = vst [vmem:[%s305 + $0x58] sm:$0xff] %v3799
      %3837 = vst [vmem:[%s305 + $0x60] sm:$0xff] %v3588
      %3838 = vst [vmem:[%s305 + $0x68] sm:$0xff] %v3590
      %3839 = vst [vmem:[%s305 + $0x70] sm:$0xff] %v3801
      %3840 = vst [vmem:[%s305 + $0x78] sm:$0xff] %v3803
      %3841 = vst [vmem:[%s305 + $0x80] sm:$0xff] %v3594
      %3842 = vst [vmem:[%s305 + $0x88] sm:$0xff] %v3596
      %3843 = vst [vmem:[%s305 + $0x90] sm:$0xff] %v3807
      %3844 = vst [vmem:[%s305 + $0x98] sm:$0xff] %v3809
      %v3845 = vmul.f32 %v3598, %v821
      %v3846 = vmul.f32 %v3600, %v825
      %v3847 = vmul.f32 %v3811, %v829
      %v3848 = vmul.f32 %v3813, %v833
      %v3849 = vmul.f32 %v3604, %v821
      %v3850 = vmul.f32 %v3606, %v825
      %v3851 = vmul.f32 %v3817, %v829
      %v3852 = vmul.f32 %v3819, %v833
      %v3853 = vmul.f32 %v3608, %v821
      %v3854 = vmul.f32 %v3610, %v825
      %v3855 = vmul.f32 %v3821, %v829
      %v3856 = vmul.f32 %v3823, %v833
      %v3857 = vmul.f32 %v3614, %v821
      %v3858 = vmul.f32 %v3616, %v825
      %v3859 = vmul.f32 %v3827, %v829
      %v3860 = vmul.f32 %v3829, %v833
      %v3861 = vpack.c.bf16 %v3849, %v3845
      %v3862 = vpack.c.bf16 %v3850, %v3846
      %v3863 = vpack.c.bf16 %v3851, %v3847
      %v3864 = vpack.c.bf16 %v3852, %v3848
      %v3865 = vpack.c.bf16 %v3857, %v3853
      %v3866 = vpack.c.bf16 %v3858, %v3854
      %v3867 = vpack.c.bf16 %v3859, %v3855
      %v3868 = vpack.c.bf16 %v3860, %v3856
      %v3877 = vunpack.c.l.b16 %v3861
      %v3878 = vunpack.c.l.b16 %v3862
      %v3879 = vunpack.c.l.b16 %v3863
      %v3880 = vunpack.c.l.b16 %v3864
      %v3881 = vunpack.c.h.b16 %v3861
      %v3882 = vunpack.c.h.b16 %v3862
      %v3883 = vunpack.c.h.b16 %v3863
      %v3884 = vunpack.c.h.b16 %v3864
      %v3885 = vunpack.c.l.b16 %v3865
      %v3886 = vunpack.c.l.b16 %v3866
      %v3887 = vunpack.c.l.b16 %v3867
      %v3888 = vunpack.c.l.b16 %v3868
      %v3889 = vunpack.c.h.b16 %v3865
      %v3890 = vunpack.c.h.b16 %v3866
      %v3891 = vunpack.c.h.b16 %v3867
      %v3892 = vunpack.c.h.b16 %v3868
      %v3893 = vpack.c.b16 %v3878, %v3877
      %v3894 = vpack.c.b16 %v3880, %v3879
      %v3895 = vpack.c.b16 %v3882, %v3881
      %v3896 = vpack.c.b16 %v3884, %v3883
      %v3897 = vpack.c.b16 %v3886, %v3885
      %v3898 = vpack.c.b16 %v3888, %v3887
      %v3899 = vpack.c.b16 %v3890, %v3889
      %v3900 = vpack.c.b16 %v3892, %v3891
      %3909 = vst [vmem:[#allocation4 + $0x4] sm:$0xff] %v3893
      %3910 = vst [vmem:[#allocation4 + $0xc] sm:$0xff] %v3894
      %3911 = vst [vmem:[#allocation4 + $0x1c] sm:$0xff] %v3895
      %3912 = vst [vmem:[#allocation4 + $0x24] sm:$0xff] %v3896
      %3913 = vst [vmem:[#allocation4 + $0x34] sm:$0xff] %v3897
      %3914 = vst [vmem:[#allocation4 + $0x3c] sm:$0xff] %v3898
      %3915 = vst [vmem:[#allocation4 + $0x4c] sm:$0xff] %v3899
      %3916 = vst [vmem:[#allocation4 + $0x54] sm:$0xff] %v3900
      %v3917 = vld [vmem:[#allocation4] sm:$0xff]
      %v3918 = vld [vmem:[#allocation4 + $0x8] sm:$0xff]
      %v3919 = vld [vmem:[#allocation4 + $0x10] sm:$0xf]
      %v3920 = vld [vmem:[#allocation4 + $0x18] sm:$0xff]
      %v3921 = vld [vmem:[#allocation4 + $0x20] sm:$0xff]
      %v3922 = vld [vmem:[#allocation4 + $0x28] sm:$0xf]
      %v3923 = vld [vmem:[#allocation4 + $0x30] sm:$0xff]
      %v3924 = vld [vmem:[#allocation4 + $0x38] sm:$0xff]
      %v3925 = vld [vmem:[#allocation4 + $0x40] sm:$0xf]
      %v3926 = vld [vmem:[#allocation4 + $0x48] sm:$0xff]
      %v3927 = vld [vmem:[#allocation4 + $0x50] sm:$0xff]
      %v3928 = vld [vmem:[#allocation4 + $0x58] sm:$0xf]
      %3941 = vrot.lane.b32.xlu0 %v3917, 21
      %v3942 = vpop.permute.xlu0 %3941
      %3943 = vrot.lane.b32.xlu0 %v3918, 21
      %v3944 = vpop.permute.xlu0 %3943
      %3945 = vrot.lane.b32.xlu0 %v3919, 21
      %v3946 = vpop.permute.xlu0 %3945
      %3947 = vrot.lane.b32.xlu0 %v3920, 21
      %v3948 = vpop.permute.xlu0 %3947
      %3949 = vrot.lane.b32.xlu0 %v3921, 21
      %v3950 = vpop.permute.xlu0 %3949
      %3951 = vrot.lane.b32.xlu0 %v3922, 21
      %v3952 = vpop.permute.xlu0 %3951
      %3953 = vrot.lane.b32.xlu0 %v3923, 21
      %v3954 = vpop.permute.xlu0 %3953
      %3955 = vrot.lane.b32.xlu0 %v3924, 21
      %v3956 = vpop.permute.xlu0 %3955
      %3957 = vrot.lane.b32.xlu0 %v3925, 21
      %v3958 = vpop.permute.xlu0 %3957
      %3959 = vrot.lane.b32.xlu0 %v3926, 21
      %v3960 = vpop.permute.xlu0 %3959
      %3961 = vrot.lane.b32.xlu0 %v3927, 21
      %v3962 = vpop.permute.xlu0 %3961
      %3963 = vrot.lane.b32.xlu0 %v3928, 21
      %v3964 = vpop.permute.xlu0 %3963
      %v3965 = vrot.slane %v3942, 4
      %v3966 = vrot.slane %v3944, 4
      %v3967 = vrot.slane %v3946, 4
      %v3968 = vrot.slane %v3948, 4
      %v3969 = vrot.slane %v3950, 4
      %v3970 = vrot.slane %v3952, 4
      %v3971 = vrot.slane %v3954, 4
      %v3972 = vrot.slane %v3956, 4
      %v3973 = vrot.slane %v3958, 4
      %v3974 = vrot.slane %v3960, 4
      %v3975 = vrot.slane %v3962, 4
      %v3976 = vrot.slane %v3964, 4
      %v3977 = vsel %vm940, %v3965, %v3966
      %v3978 = vsel %vm1224, %v3942, %v3977
      %v3979 = vsel %vm940, %v3966, %v3967
      %v3980 = vsel %vm1224, %v3944, %v3979
      %v3981 = vsel %vm940, %v3968, %v3969
      %v3982 = vsel %vm1224, %v3948, %v3981
      %v3983 = vsel %vm940, %v3969, %v3970
      %v3984 = vsel %vm1224, %v3950, %v3983
      %v3985 = vsel %vm940, %v3971, %v3972
      %v3986 = vsel %vm1224, %v3954, %v3985
      %v3987 = vsel %vm940, %v3972, %v3973
      %v3988 = vsel %vm1224, %v3956, %v3987
      %v3989 = vsel %vm940, %v3974, %v3975
      %v3990 = vsel %vm1224, %v3960, %v3989
      %v3991 = vsel %vm940, %v3975, %v3976
      %v3992 = vsel %vm1224, %v3962, %v3991
      %4001 = vst [vmem:[#allocation5] sm:$0xff] %v3978
      %4002 = vst [vmem:[#allocation5 + $0x8] sm:$0xff] %v3980
      %4003 = vst [vmem:[#allocation5 + $0x10] sm:$0xff] %v3982
      %4004 = vst [vmem:[#allocation5 + $0x18] sm:$0xff] %v3984
      %4005 = vst [vmem:[#allocation5 + $0x20] sm:$0xff] %v3986
      %4006 = vst [vmem:[#allocation5 + $0x28] sm:$0xff] %v3988
      %4007 = vst [vmem:[#allocation5 + $0x30] sm:$0xff] %v3990
      %4008 = vst [vmem:[#allocation5 + $0x38] sm:$0xff] %v3992
      %v4009 = vld [vmem:[#allocation4] sm:$0xff]
      %v4010 = vld [vmem:[#allocation4 + $0x8] sm:$0xff]
      %v4011 = vld [vmem:[#allocation4 + $0x10] sm:$0xf]
      %v4012 = vld [vmem:[#allocation4 + $0x18] sm:$0xff]
      %v4013 = vld [vmem:[#allocation4 + $0x20] sm:$0xff]
      %v4014 = vld [vmem:[#allocation4 + $0x28] sm:$0xf]
      %v4015 = vld [vmem:[#allocation4 + $0x30] sm:$0xff]
      %v4016 = vld [vmem:[#allocation4 + $0x38] sm:$0xff]
      %v4017 = vld [vmem:[#allocation4 + $0x40] sm:$0xf]
      %v4018 = vld [vmem:[#allocation4 + $0x48] sm:$0xff]
      %v4019 = vld [vmem:[#allocation4 + $0x50] sm:$0xff]
      %v4020 = vld [vmem:[#allocation4 + $0x58] sm:$0xf]
      %4033 = vrot.lane.b32.xlu0 %v4009, 20
      %v4034 = vpop.permute.xlu0 %4033
      %4035 = vrot.lane.b32.xlu0 %v4010, 20
      %v4036 = vpop.permute.xlu0 %4035
      %4037 = vrot.lane.b32.xlu0 %v4011, 20
      %v4038 = vpop.permute.xlu0 %4037
      %4039 = vrot.lane.b32.xlu0 %v4012, 20
      %v4040 = vpop.permute.xlu0 %4039
      %4041 = vrot.lane.b32.xlu0 %v4013, 20
      %v4042 = vpop.permute.xlu0 %4041
      %4043 = vrot.lane.b32.xlu0 %v4014, 20
      %v4044 = vpop.permute.xlu0 %4043
      %4045 = vrot.lane.b32.xlu0 %v4015, 20
      %v4046 = vpop.permute.xlu0 %4045
      %4047 = vrot.lane.b32.xlu0 %v4016, 20
      %v4048 = vpop.permute.xlu0 %4047
      %4049 = vrot.lane.b32.xlu0 %v4017, 20
      %v4050 = vpop.permute.xlu0 %4049
      %4051 = vrot.lane.b32.xlu0 %v4018, 20
      %v4052 = vpop.permute.xlu0 %4051
      %4053 = vrot.lane.b32.xlu0 %v4019, 20
      %v4054 = vpop.permute.xlu0 %4053
      %4055 = vrot.lane.b32.xlu0 %v4020, 20
      %v4056 = vpop.permute.xlu0 %4055
      %v4057 = vrot.slane %v4034, 4
      %v4058 = vrot.slane %v4036, 4
      %v4059 = vrot.slane %v4038, 4
      %v4060 = vrot.slane %v4040, 4
      %v4061 = vrot.slane %v4042, 4
      %v4062 = vrot.slane %v4044, 4
      %v4063 = vrot.slane %v4046, 4
      %v4064 = vrot.slane %v4048, 4
      %v4065 = vrot.slane %v4050, 4
      %v4066 = vrot.slane %v4052, 4
      %v4067 = vrot.slane %v4054, 4
      %v4068 = vrot.slane %v4056, 4
      %v4069 = vsel %vm940, %v4057, %v4058
      %v4070 = vsel %vm1271, %v4034, %v4069
      %v4071 = vsel %vm940, %v4058, %v4059
      %v4072 = vsel %vm1271, %v4036, %v4071
      %v4073 = vsel %vm940, %v4060, %v4061
      %v4074 = vsel %vm1271, %v4040, %v4073
      %v4075 = vsel %vm940, %v4061, %v4062
      %v4076 = vsel %vm1271, %v4042, %v4075
      %v4077 = vsel %vm940, %v4063, %v4064
      %v4078 = vsel %vm1271, %v4046, %v4077
      %v4079 = vsel %vm940, %v4064, %v4065
      %v4080 = vsel %vm1271, %v4048, %v4079
      %v4081 = vsel %vm940, %v4066, %v4067
      %v4082 = vsel %vm1271, %v4052, %v4081
      %v4083 = vsel %vm940, %v4067, %v4068
      %v4084 = vsel %vm1271, %v4054, %v4083
      %4093 = vst [vmem:[#allocation5 + $0x40] sm:$0xff] %v4070
      %4094 = vst [vmem:[#allocation5 + $0x48] sm:$0xff] %v4072
      %4095 = vst [vmem:[#allocation5 + $0x50] sm:$0xff] %v4074
      %4096 = vst [vmem:[#allocation5 + $0x58] sm:$0xff] %v4076
      %4097 = vst [vmem:[#allocation5 + $0x60] sm:$0xff] %v4078
      %4098 = vst [vmem:[#allocation5 + $0x68] sm:$0xff] %v4080
      %4099 = vst [vmem:[#allocation5 + $0x70] sm:$0xff] %v4082
      %4100 = vst [vmem:[#allocation5 + $0x78] sm:$0xff] %v4084
      %v4101 = vld [vmem:[#allocation4] sm:$0xff]
      %v4102 = vld [vmem:[#allocation4 + $0x8] sm:$0xff]
      %v4103 = vld [vmem:[#allocation4 + $0x10] sm:$0xf]
      %v4104 = vld [vmem:[#allocation4 + $0x18] sm:$0xff]
      %v4105 = vld [vmem:[#allocation4 + $0x20] sm:$0xff]
      %v4106 = vld [vmem:[#allocation4 + $0x28] sm:$0xf]
      %v4107 = vld [vmem:[#allocation4 + $0x30] sm:$0xff]
      %v4108 = vld [vmem:[#allocation4 + $0x38] sm:$0xff]
      %v4109 = vld [vmem:[#allocation4 + $0x40] sm:$0xf]
      %v4110 = vld [vmem:[#allocation4 + $0x48] sm:$0xff]
      %v4111 = vld [vmem:[#allocation4 + $0x50] sm:$0xff]
      %v4112 = vld [vmem:[#allocation4 + $0x58] sm:$0xf]
      %4125 = vrot.lane.b32.xlu0 %v4101, 19
      %v4126 = vpop.permute.xlu0 %4125
      %4127 = vrot.lane.b32.xlu0 %v4102, 19
      %v4128 = vpop.permute.xlu0 %4127
      %4129 = vrot.lane.b32.xlu0 %v4103, 19
      %v4130 = vpop.permute.xlu0 %4129
      %4131 = vrot.lane.b32.xlu0 %v4104, 19
      %v4132 = vpop.permute.xlu0 %4131
      %4133 = vrot.lane.b32.xlu0 %v4105, 19
      %v4134 = vpop.permute.xlu0 %4133
      %4135 = vrot.lane.b32.xlu0 %v4106, 19
      %v4136 = vpop.permute.xlu0 %4135
      %4137 = vrot.lane.b32.xlu0 %v4107, 19
      %v4138 = vpop.permute.xlu0 %4137
      %4139 = vrot.lane.b32.xlu0 %v4108, 19
      %v4140 = vpop.permute.xlu0 %4139
      %4141 = vrot.lane.b32.xlu0 %v4109, 19
      %v4142 = vpop.permute.xlu0 %4141
      %4143 = vrot.lane.b32.xlu0 %v4110, 19
      %v4144 = vpop.permute.xlu0 %4143
      %4145 = vrot.lane.b32.xlu0 %v4111, 19
      %v4146 = vpop.permute.xlu0 %4145
      %4147 = vrot.lane.b32.xlu0 %v4112, 19
      %v4148 = vpop.permute.xlu0 %4147
      %v4149 = vrot.slane %v4126, 4
      %v4150 = vrot.slane %v4128, 4
      %v4151 = vrot.slane %v4130, 4
      %v4152 = vrot.slane %v4132, 4
      %v4153 = vrot.slane %v4134, 4
      %v4154 = vrot.slane %v4136, 4
      %v4155 = vrot.slane %v4138, 4
      %v4156 = vrot.slane %v4140, 4
      %v4157 = vrot.slane %v4142, 4
      %v4158 = vrot.slane %v4144, 4
      %v4159 = vrot.slane %v4146, 4
      %v4160 = vrot.slane %v4148, 4
      %v4161 = vsel %vm940, %v4149, %v4150
      %v4162 = vsel %vm1318, %v4126, %v4161
      %v4163 = vsel %vm940, %v4150, %v4151
      %v4164 = vsel %vm1318, %v4128, %v4163
      %v4165 = vsel %vm940, %v4152, %v4153
      %v4166 = vsel %vm1318, %v4132, %v4165
      %v4167 = vsel %vm940, %v4153, %v4154
      %v4168 = vsel %vm1318, %v4134, %v4167
      %v4169 = vsel %vm940, %v4155, %v4156
      %v4170 = vsel %vm1318, %v4138, %v4169
      %v4171 = vsel %vm940, %v4156, %v4157
      %v4172 = vsel %vm1318, %v4140, %v4171
      %v4173 = vsel %vm940, %v4158, %v4159
      %v4174 = vsel %vm1318, %v4144, %v4173
      %v4175 = vsel %vm940, %v4159, %v4160
      %v4176 = vsel %vm1318, %v4146, %v4175
      %4185 = vst [vmem:[#allocation5 + $0x80] sm:$0xff] %v4162
      %4186 = vst [vmem:[#allocation5 + $0x88] sm:$0xff] %v4164
      %4187 = vst [vmem:[#allocation5 + $0x90] sm:$0xff] %v4166
      %4188 = vst [vmem:[#allocation5 + $0x98] sm:$0xff] %v4168
      %4189 = vst [vmem:[#allocation5 + $0xa0] sm:$0xff] %v4170
      %4190 = vst [vmem:[#allocation5 + $0xa8] sm:$0xff] %v4172
      %4191 = vst [vmem:[#allocation5 + $0xb0] sm:$0xff] %v4174
      %4192 = vst [vmem:[#allocation5 + $0xb8] sm:$0xff] %v4176
      %v4193 = vld [vmem:[#allocation4] sm:$0xff]
      %v4194 = vld [vmem:[#allocation4 + $0x8] sm:$0xff]
      %v4195 = vld [vmem:[#allocation4 + $0x10] sm:$0xf]
      %v4196 = vld [vmem:[#allocation4 + $0x18] sm:$0xff]
      %v4197 = vld [vmem:[#allocation4 + $0x20] sm:$0xff]
      %v4198 = vld [vmem:[#allocation4 + $0x28] sm:$0xf]
      %v4199 = vld [vmem:[#allocation4 + $0x30] sm:$0xff]
      %v4200 = vld [vmem:[#allocation4 + $0x38] sm:$0xff]
      %v4201 = vld [vmem:[#allocation4 + $0x40] sm:$0xf]
      %v4202 = vld [vmem:[#allocation4 + $0x48] sm:$0xff]
      %v4203 = vld [vmem:[#allocation4 + $0x50] sm:$0xff]
      %v4204 = vld [vmem:[#allocation4 + $0x58] sm:$0xf]
      %4217 = vrot.lane.b32.xlu0 %v4193, 1
      %v4218 = vpop.permute.xlu0 %4217
      %4219 = vrot.lane.b32.xlu0 %v4194, 1
      %v4220 = vpop.permute.xlu0 %4219
      %4221 = vrot.lane.b32.xlu0 %v4195, 1
      %v4222 = vpop.permute.xlu0 %4221
      %4223 = vrot.lane.b32.xlu0 %v4196, 1
      %v4224 = vpop.permute.xlu0 %4223
      %4225 = vrot.lane.b32.xlu0 %v4197, 1
      %v4226 = vpop.permute.xlu0 %4225
      %4227 = vrot.lane.b32.xlu0 %v4198, 1
      %v4228 = vpop.permute.xlu0 %4227
      %4229 = vrot.lane.b32.xlu0 %v4199, 1
      %v4230 = vpop.permute.xlu0 %4229
      %4231 = vrot.lane.b32.xlu0 %v4200, 1
      %v4232 = vpop.permute.xlu0 %4231
      %4233 = vrot.lane.b32.xlu0 %v4201, 1
      %v4234 = vpop.permute.xlu0 %4233
      %4235 = vrot.lane.b32.xlu0 %v4202, 1
      %v4236 = vpop.permute.xlu0 %4235
      %4237 = vrot.lane.b32.xlu0 %v4203, 1
      %v4238 = vpop.permute.xlu0 %4237
      %4239 = vrot.lane.b32.xlu0 %v4204, 1
      %v4240 = vpop.permute.xlu0 %4239
      %v4241 = vrot.slane %v4218, 4
      %v4242 = vrot.slane %v4220, 4
      %v4243 = vrot.slane %v4222, 4
      %v4244 = vrot.slane %v4224, 4
      %v4245 = vrot.slane %v4226, 4
      %v4246 = vrot.slane %v4228, 4
      %v4247 = vrot.slane %v4230, 4
      %v4248 = vrot.slane %v4232, 4
      %v4249 = vrot.slane %v4234, 4
      %v4250 = vrot.slane %v4236, 4
      %v4251 = vrot.slane %v4238, 4
      %v4252 = vrot.slane %v4240, 4
      %v4253 = vsel %vm940, %v4241, %v4242
      %v4254 = vsel %vm1459, %v4218, %v4253
      %v4255 = vsel %vm940, %v4242, %v4243
      %v4256 = vsel %vm1459, %v4220, %v4255
      %v4257 = vsel %vm940, %v4244, %v4245
      %v4258 = vsel %vm1459, %v4224, %v4257
      %v4259 = vsel %vm940, %v4245, %v4246
      %v4260 = vsel %vm1459, %v4226, %v4259
      %v4261 = vsel %vm940, %v4247, %v4248
      %v4262 = vsel %vm1459, %v4230, %v4261
      %v4263 = vsel %vm940, %v4248, %v4249
      %v4264 = vsel %vm1459, %v4232, %v4263
      %v4265 = vsel %vm940, %v4250, %v4251
      %v4266 = vsel %vm1459, %v4236, %v4265
      %v4267 = vsel %vm940, %v4251, %v4252
      %v4268 = vsel %vm1459, %v4238, %v4267
      %4277 = vst [vmem:[#allocation5 + $0xc0] sm:$0xff] %v4254
      %4278 = vst [vmem:[#allocation5 + $0xc8] sm:$0xff] %v4256
      %4279 = vst [vmem:[#allocation5 + $0xd0] sm:$0xff] %v4258
      %4280 = vst [vmem:[#allocation5 + $0xd8] sm:$0xff] %v4260
      %4281 = vst [vmem:[#allocation5 + $0xe0] sm:$0xff] %v4262
      %4282 = vst [vmem:[#allocation5 + $0xe8] sm:$0xff] %v4264
      %4283 = vst [vmem:[#allocation5 + $0xf0] sm:$0xff] %v4266
      %4284 = vst [vmem:[#allocation5 + $0xf8] sm:$0xff] %v4268
      %v4285 = vld [vmem:[#allocation4 + $0x4] sm:$0xff]
      %v4286 = vld [vmem:[#allocation4 + $0xc] sm:$0xff]
      %v4287 = vld [vmem:[#allocation4 + $0x1c] sm:$0xff]
      %v4288 = vld [vmem:[#allocation4 + $0x24] sm:$0xff]
      %v4289 = vld [vmem:[#allocation4 + $0x34] sm:$0xff]
      %v4290 = vld [vmem:[#allocation4 + $0x3c] sm:$0xff]
      %v4291 = vld [vmem:[#allocation4 + $0x4c] sm:$0xff]
      %v4292 = vld [vmem:[#allocation4 + $0x54] sm:$0xff]
      %4293 = vst [vmem:[#allocation5 + $0x100] sm:$0xff] %v4285
      %4294 = vst [vmem:[#allocation5 + $0x108] sm:$0xff] %v4286
      %4295 = vst [vmem:[#allocation5 + $0x110] sm:$0xff] %v4287
      %4296 = vst [vmem:[#allocation5 + $0x118] sm:$0xff] %v4288
      %4297 = vst [vmem:[#allocation5 + $0x120] sm:$0xff] %v4289
      %4298 = vst [vmem:[#allocation5 + $0x128] sm:$0xff] %v4290
      %4299 = vst [vmem:[#allocation5 + $0x130] sm:$0xff] %v4291
      %4300 = vst [vmem:[#allocation5 + $0x138] sm:$0xff] %v4292
      %v4301 = vld [vmem:[#allocation4 + $0x4] sm:$0xff]
      %v4302 = vld [vmem:[#allocation4 + $0xc] sm:$0xff]
      %v4303 = vld [vmem:[#allocation4 + $0x14] sm:$0xf]
      %v4304 = vld [vmem:[#allocation4 + $0x1c] sm:$0xff]
      %v4305 = vld [vmem:[#allocation4 + $0x24] sm:$0xff]
      %v4306 = vld [vmem:[#allocation4 + $0x2c] sm:$0xf]
      %v4307 = vld [vmem:[#allocation4 + $0x34] sm:$0xff]
      %v4308 = vld [vmem:[#allocation4 + $0x3c] sm:$0xff]
      %v4309 = vld [vmem:[#allocation4 + $0x44] sm:$0xf]
      %v4310 = vld [vmem:[#allocation4 + $0x4c] sm:$0xff]
      %v4311 = vld [vmem:[#allocation4 + $0x54] sm:$0xff]
      %v4312 = vld [vmem:[#allocation4 + $0x5c] sm:$0xf]
      %4325 = vrot.lane.b32.xlu0 %v4301, 127
      %v4326 = vpop.permute.xlu0 %4325
      %4327 = vrot.lane.b32.xlu0 %v4302, 127
      %v4328 = vpop.permute.xlu0 %4327
      %4329 = vrot.lane.b32.xlu0 %v4303, 127
      %v4330 = vpop.permute.xlu0 %4329
      %4331 = vrot.lane.b32.xlu0 %v4304, 127
      %v4332 = vpop.permute.xlu0 %4331
      %4333 = vrot.lane.b32.xlu0 %v4305, 127
      %v4334 = vpop.permute.xlu0 %4333
      %4335 = vrot.lane.b32.xlu0 %v4306, 127
      %v4336 = vpop.permute.xlu0 %4335
      %4337 = vrot.lane.b32.xlu0 %v4307, 127
      %v4338 = vpop.permute.xlu0 %4337
      %4339 = vrot.lane.b32.xlu0 %v4308, 127
      %v4340 = vpop.permute.xlu0 %4339
      %4341 = vrot.lane.b32.xlu0 %v4309, 127
      %v4342 = vpop.permute.xlu0 %4341
      %4343 = vrot.lane.b32.xlu0 %v4310, 127
      %v4344 = vpop.permute.xlu0 %4343
      %4345 = vrot.lane.b32.xlu0 %v4311, 127
      %v4346 = vpop.permute.xlu0 %4345
      %4347 = vrot.lane.b32.xlu0 %v4312, 127
      %v4348 = vpop.permute.xlu0 %4347
      %v4349 = vrot.slane %v4326, 4
      %v4350 = vrot.slane %v4328, 4
      %v4351 = vrot.slane %v4330, 4
      %v4352 = vrot.slane %v4332, 4
      %v4353 = vrot.slane %v4334, 4
      %v4354 = vrot.slane %v4336, 4
      %v4355 = vrot.slane %v4338, 4
      %v4356 = vrot.slane %v4340, 4
      %v4357 = vrot.slane %v4342, 4
      %v4358 = vrot.slane %v4344, 4
      %v4359 = vrot.slane %v4346, 4
      %v4360 = vrot.slane %v4348, 4
      %v4361 = vsel %vm940, %v4349, %v4350
      %v4362 = vsel %vm1514, %v4326, %v4361
      %v4363 = vsel %vm940, %v4350, %v4351
      %v4364 = vsel %vm1514, %v4328, %v4363
      %v4365 = vsel %vm940, %v4352, %v4353
      %v4366 = vsel %vm1514, %v4332, %v4365
      %v4367 = vsel %vm940, %v4353, %v4354
      %v4368 = vsel %vm1514, %v4334, %v4367
      %v4369 = vsel %vm940, %v4355, %v4356
      %v4370 = vsel %vm1514, %v4338, %v4369
      %v4371 = vsel %vm940, %v4356, %v4357
      %v4372 = vsel %vm1514, %v4340, %v4371
      %v4373 = vsel %vm940, %v4358, %v4359
      %v4374 = vsel %vm1514, %v4344, %v4373
      %v4375 = vsel %vm940, %v4359, %v4360
      %v4376 = vsel %vm1514, %v4346, %v4375
      %4385 = vst [vmem:[#allocation5 + $0x140] sm:$0xff] %v4362
      %4386 = vst [vmem:[#allocation5 + $0x148] sm:$0xff] %v4364
      %4387 = vst [vmem:[#allocation5 + $0x150] sm:$0xff] %v4366
      %4388 = vst [vmem:[#allocation5 + $0x158] sm:$0xff] %v4368
      %4389 = vst [vmem:[#allocation5 + $0x160] sm:$0xff] %v4370
      %4390 = vst [vmem:[#allocation5 + $0x168] sm:$0xff] %v4372
      %4391 = vst [vmem:[#allocation5 + $0x170] sm:$0xff] %v4374
      %4392 = vst [vmem:[#allocation5 + $0x178] sm:$0xff] %v4376
      %v4393 = vld [vmem:[#allocation4 + $0x4] sm:$0xff]
      %v4394 = vld [vmem:[#allocation4 + $0xc] sm:$0xff]
      %v4395 = vld [vmem:[#allocation4 + $0x14] sm:$0xf]
      %v4396 = vld [vmem:[#allocation4 + $0x1c] sm:$0xff]
      %v4397 = vld [vmem:[#allocation4 + $0x24] sm:$0xff]
      %v4398 = vld [vmem:[#allocation4 + $0x2c] sm:$0xf]
      %v4399 = vld [vmem:[#allocation4 + $0x34] sm:$0xff]
      %v4400 = vld [vmem:[#allocation4 + $0x3c] sm:$0xff]
      %v4401 = vld [vmem:[#allocation4 + $0x44] sm:$0xf]
      %v4402 = vld [vmem:[#allocation4 + $0x4c] sm:$0xff]
      %v4403 = vld [vmem:[#allocation4 + $0x54] sm:$0xff]
      %v4404 = vld [vmem:[#allocation4 + $0x5c] sm:$0xf]
      %4417 = vrot.lane.b32.xlu0 %v4393, 109
      %v4418 = vpop.permute.xlu0 %4417
      %4419 = vrot.lane.b32.xlu0 %v4394, 109
      %v4420 = vpop.permute.xlu0 %4419
      %4421 = vrot.lane.b32.xlu0 %v4395, 109
      %v4422 = vpop.permute.xlu0 %4421
      %4423 = vrot.lane.b32.xlu0 %v4396, 109
      %v4424 = vpop.permute.xlu0 %4423
      %4425 = vrot.lane.b32.xlu0 %v4397, 109
      %v4426 = vpop.permute.xlu0 %4425
      %4427 = vrot.lane.b32.xlu0 %v4398, 109
      %v4428 = vpop.permute.xlu0 %4427
      %4429 = vrot.lane.b32.xlu0 %v4399, 109
      %v4430 = vpop.permute.xlu0 %4429
      %4431 = vrot.lane.b32.xlu0 %v4400, 109
      %v4432 = vpop.permute.xlu0 %4431
      %4433 = vrot.lane.b32.xlu0 %v4401, 109
      %v4434 = vpop.permute.xlu0 %4433
      %4435 = vrot.lane.b32.xlu0 %v4402, 109
      %v4436 = vpop.permute.xlu0 %4435
      %4437 = vrot.lane.b32.xlu0 %v4403, 109
      %v4438 = vpop.permute.xlu0 %4437
      %4439 = vrot.lane.b32.xlu0 %v4404, 109
      %v4440 = vpop.permute.xlu0 %4439
      %v4441 = vrot.slane %v4418, 4
      %v4442 = vrot.slane %v4420, 4
      %v4443 = vrot.slane %v4422, 4
      %v4444 = vrot.slane %v4424, 4
      %v4445 = vrot.slane %v4426, 4
      %v4446 = vrot.slane %v4428, 4
      %v4447 = vrot.slane %v4430, 4
      %v4448 = vrot.slane %v4432, 4
      %v4449 = vrot.slane %v4434, 4
      %v4450 = vrot.slane %v4436, 4
      %v4451 = vrot.slane %v4438, 4
      %v4452 = vrot.slane %v4440, 4
      %v4453 = vsel %vm940, %v4441, %v4442
      %v4454 = vsel %vm1655, %v4418, %v4453
      %v4455 = vsel %vm940, %v4442, %v4443
      %v4456 = vsel %vm1655, %v4420, %v4455
      %v4457 = vsel %vm940, %v4444, %v4445
      %v4458 = vsel %vm1655, %v4424, %v4457
      %v4459 = vsel %vm940, %v4445, %v4446
      %v4460 = vsel %vm1655, %v4426, %v4459
      %v4461 = vsel %vm940, %v4447, %v4448
      %v4462 = vsel %vm1655, %v4430, %v4461
      %v4463 = vsel %vm940, %v4448, %v4449
      %v4464 = vsel %vm1655, %v4432, %v4463
      %v4465 = vsel %vm940, %v4450, %v4451
      %v4466 = vsel %vm1655, %v4436, %v4465
      %v4467 = vsel %vm940, %v4451, %v4452
      %v4468 = vsel %vm1655, %v4438, %v4467
      %4477 = vst [vmem:[#allocation5 + $0x180] sm:$0xff] %v4454
      %4478 = vst [vmem:[#allocation5 + $0x188] sm:$0xff] %v4456
      %4479 = vst [vmem:[#allocation5 + $0x190] sm:$0xff] %v4458
      %4480 = vst [vmem:[#allocation5 + $0x198] sm:$0xff] %v4460
      %4481 = vst [vmem:[#allocation5 + $0x1a0] sm:$0xff] %v4462
      %4482 = vst [vmem:[#allocation5 + $0x1a8] sm:$0xff] %v4464
      %4483 = vst [vmem:[#allocation5 + $0x1b0] sm:$0xff] %v4466
      %4484 = vst [vmem:[#allocation5 + $0x1b8] sm:$0xff] %v4468
      %v4485 = vld [vmem:[#allocation4 + $0x4] sm:$0xff]
      %v4486 = vld [vmem:[#allocation4 + $0xc] sm:$0xff]
      %v4487 = vld [vmem:[#allocation4 + $0x14] sm:$0xf]
      %v4488 = vld [vmem:[#allocation4 + $0x1c] sm:$0xff]
      %v4489 = vld [vmem:[#allocation4 + $0x24] sm:$0xff]
      %v4490 = vld [vmem:[#allocation4 + $0x2c] sm:$0xf]
      %v4491 = vld [vmem:[#allocation4 + $0x34] sm:$0xff]
      %v4492 = vld [vmem:[#allocation4 + $0x3c] sm:$0xff]
      %v4493 = vld [vmem:[#allocation4 + $0x44] sm:$0xf]
      %v4494 = vld [vmem:[#allocation4 + $0x4c] sm:$0xff]
      %v4495 = vld [vmem:[#allocation4 + $0x54] sm:$0xff]
      %v4496 = vld [vmem:[#allocation4 + $0x5c] sm:$0xf]
      %4509 = vrot.lane.b32.xlu0 %v4485, 108
      %v4510 = vpop.permute.xlu0 %4509
      %4511 = vrot.lane.b32.xlu0 %v4486, 108
      %v4512 = vpop.permute.xlu0 %4511
      %4513 = vrot.lane.b32.xlu0 %v4487, 108
      %v4514 = vpop.permute.xlu0 %4513
      %4515 = vrot.lane.b32.xlu0 %v4488, 108
      %v4516 = vpop.permute.xlu0 %4515
      %4517 = vrot.lane.b32.xlu0 %v4489, 108
      %v4518 = vpop.permute.xlu0 %4517
      %4519 = vrot.lane.b32.xlu0 %v4490, 108
      %v4520 = vpop.permute.xlu0 %4519
      %4521 = vrot.lane.b32.xlu0 %v4491, 108
      %v4522 = vpop.permute.xlu0 %4521
      %4523 = vrot.lane.b32.xlu0 %v4492, 108
      %v4524 = vpop.permute.xlu0 %4523
      %4525 = vrot.lane.b32.xlu0 %v4493, 108
      %v4526 = vpop.permute.xlu0 %4525
      %4527 = vrot.lane.b32.xlu0 %v4494, 108
      %v4528 = vpop.permute.xlu0 %4527
      %4529 = vrot.lane.b32.xlu0 %v4495, 108
      %v4530 = vpop.permute.xlu0 %4529
      %4531 = vrot.lane.b32.xlu0 %v4496, 108
      %v4532 = vpop.permute.xlu0 %4531
      %v4533 = vrot.slane %v4510, 4
      %v4534 = vrot.slane %v4512, 4
      %v4535 = vrot.slane %v4514, 4
      %v4536 = vrot.slane %v4516, 4
      %v4537 = vrot.slane %v4518, 4
      %v4538 = vrot.slane %v4520, 4
      %v4539 = vrot.slane %v4522, 4
      %v4540 = vrot.slane %v4524, 4
      %v4541 = vrot.slane %v4526, 4
      %v4542 = vrot.slane %v4528, 4
      %v4543 = vrot.slane %v4530, 4
      %v4544 = vrot.slane %v4532, 4
      %v4545 = vsel %vm940, %v4533, %v4534
      %v4546 = vsel %vm1702, %v4510, %v4545
      %v4547 = vsel %vm940, %v4534, %v4535
      %v4548 = vsel %vm1702, %v4512, %v4547
      %v4549 = vsel %vm940, %v4536, %v4537
      %v4550 = vsel %vm1702, %v4516, %v4549
      %v4551 = vsel %vm940, %v4537, %v4538
      %v4552 = vsel %vm1702, %v4518, %v4551
      %v4553 = vsel %vm940, %v4539, %v4540
      %v4554 = vsel %vm1702, %v4522, %v4553
      %v4555 = vsel %vm940, %v4540, %v4541
      %v4556 = vsel %vm1702, %v4524, %v4555
      %v4557 = vsel %vm940, %v4542, %v4543
      %v4558 = vsel %vm1702, %v4528, %v4557
      %v4559 = vsel %vm940, %v4543, %v4544
      %v4560 = vsel %vm1702, %v4530, %v4559
      %4569 = vst [vmem:[#allocation5 + $0x1c0] sm:$0xff] %v4546
      %4570 = vst [vmem:[#allocation5 + $0x1c8] sm:$0xff] %v4548
      %4571 = vst [vmem:[#allocation5 + $0x1d0] sm:$0xff] %v4550
      %4572 = vst [vmem:[#allocation5 + $0x1d8] sm:$0xff] %v4552
      %4573 = vst [vmem:[#allocation5 + $0x1e0] sm:$0xff] %v4554
      %4574 = vst [vmem:[#allocation5 + $0x1e8] sm:$0xff] %v4556
      %4575 = vst [vmem:[#allocation5 + $0x1f0] sm:$0xff] %v4558
      %4576 = vst [vmem:[#allocation5 + $0x1f8] sm:$0xff] %v4560
      %v4577 = vld [vmem:[#allocation4 + $0x4] sm:$0xff]
      %v4578 = vld [vmem:[#allocation4 + $0xc] sm:$0xff]
      %v4579 = vld [vmem:[#allocation4 + $0x14] sm:$0xf]
      %v4580 = vld [vmem:[#allocation4 + $0x1c] sm:$0xff]
      %v4581 = vld [vmem:[#allocation4 + $0x24] sm:$0xff]
      %v4582 = vld [vmem:[#allocation4 + $0x2c] sm:$0xf]
      %v4583 = vld [vmem:[#allocation4 + $0x34] sm:$0xff]
      %v4584 = vld [vmem:[#allocation4 + $0x3c] sm:$0xff]
      %v4585 = vld [vmem:[#allocation4 + $0x44] sm:$0xf]
      %v4586 = vld [vmem:[#allocation4 + $0x4c] sm:$0xff]
      %v4587 = vld [vmem:[#allocation4 + $0x54] sm:$0xff]
      %v4588 = vld [vmem:[#allocation4 + $0x5c] sm:$0xf]
      %4601 = vrot.lane.b32.xlu0 %v4577, 107
      %v4602 = vpop.permute.xlu0 %4601
      %4603 = vrot.lane.b32.xlu0 %v4578, 107
      %v4604 = vpop.permute.xlu0 %4603
      %4605 = vrot.lane.b32.xlu0 %v4579, 107
      %v4606 = vpop.permute.xlu0 %4605
      %4607 = vrot.lane.b32.xlu0 %v4580, 107
      %v4608 = vpop.permute.xlu0 %4607
      %4609 = vrot.lane.b32.xlu0 %v4581, 107
      %v4610 = vpop.permute.xlu0 %4609
      %4611 = vrot.lane.b32.xlu0 %v4582, 107
      %v4612 = vpop.permute.xlu0 %4611
      %4613 = vrot.lane.b32.xlu0 %v4583, 107
      %v4614 = vpop.permute.xlu0 %4613
      %4615 = vrot.lane.b32.xlu0 %v4584, 107
      %v4616 = vpop.permute.xlu0 %4615
      %4617 = vrot.lane.b32.xlu0 %v4585, 107
      %v4618 = vpop.permute.xlu0 %4617
      %4619 = vrot.lane.b32.xlu0 %v4586, 107
      %v4620 = vpop.permute.xlu0 %4619
      %4621 = vrot.lane.b32.xlu0 %v4587, 107
      %v4622 = vpop.permute.xlu0 %4621
      %4623 = vrot.lane.b32.xlu0 %v4588, 107
      %v4624 = vpop.permute.xlu0 %4623
      %v4625 = vrot.slane %v4602, 4
      %v4626 = vrot.slane %v4604, 4
      %v4627 = vrot.slane %v4606, 4
      %v4628 = vrot.slane %v4608, 4
      %v4629 = vrot.slane %v4610, 4
      %v4630 = vrot.slane %v4612, 4
      %v4631 = vrot.slane %v4614, 4
      %v4632 = vrot.slane %v4616, 4
      %v4633 = vrot.slane %v4618, 4
      %v4634 = vrot.slane %v4620, 4
      %v4635 = vrot.slane %v4622, 4
      %v4636 = vrot.slane %v4624, 4
      %v4637 = vsel %vm940, %v4625, %v4626
      %v4638 = vsel %vm1749, %v4602, %v4637
      %v4639 = vsel %vm940, %v4626, %v4627
      %v4640 = vsel %vm1749, %v4604, %v4639
      %v4641 = vsel %vm940, %v4628, %v4629
      %v4642 = vsel %vm1749, %v4608, %v4641
      %v4643 = vsel %vm940, %v4629, %v4630
      %v4644 = vsel %vm1749, %v4610, %v4643
      %v4645 = vsel %vm940, %v4631, %v4632
      %v4646 = vsel %vm1749, %v4614, %v4645
      %v4647 = vsel %vm940, %v4632, %v4633
      %v4648 = vsel %vm1749, %v4616, %v4647
      %v4649 = vsel %vm940, %v4634, %v4635
      %v4650 = vsel %vm1749, %v4620, %v4649
      %v4651 = vsel %vm940, %v4635, %v4636
      %v4652 = vsel %vm1749, %v4622, %v4651
      %4661 = vst [vmem:[#allocation5 + $0x200] sm:$0xff] %v4638
      %4662 = vst [vmem:[#allocation5 + $0x208] sm:$0xff] %v4640
      %4663 = vst [vmem:[#allocation5 + $0x210] sm:$0xff] %v4642
      %4664 = vst [vmem:[#allocation5 + $0x218] sm:$0xff] %v4644
      %4665 = vst [vmem:[#allocation5 + $0x220] sm:$0xff] %v4646
      %4666 = vst [vmem:[#allocation5 + $0x228] sm:$0xff] %v4648
      %4667 = vst [vmem:[#allocation5 + $0x230] sm:$0xff] %v4650
      %4668 = vst [vmem:[#allocation5 + $0x238] sm:$0xff] %v4652
      %v4669 = vld [vmem:[%s6] sm:$0xff]
      %v4670 = vld [vmem:[%s6 + $0x8] sm:$0xf]
      %v4671 = vld [vmem:[%s6 + $0xc] sm:$0xff]
      %v4672 = vld [vmem:[%s6 + $0x14] sm:$0xf]
      %v4673 = vld [vmem:[%s6 + $0x18] sm:$0xff]
      %v4674 = vld [vmem:[%s6 + $0x20] sm:$0xf]
      %v4675 = vld [vmem:[#allocation5] sm:$0xff]
      %v4676 = vld [vmem:[#allocation5 + $0x8] sm:$0xff]
      %v4677 = vld [vmem:[#allocation5 + $0x10] sm:$0xff]
      %v4678 = vld [vmem:[#allocation5 + $0x18] sm:$0xff]
      %v4679 = vld [vmem:[#allocation5 + $0x20] sm:$0xff]
      %v4680 = vld [vmem:[#allocation5 + $0x28] sm:$0xff]
      %v4681 = vld [vmem:[#allocation5 + $0x30] sm:$0xff]
      %v4682 = vld [vmem:[#allocation5 + $0x38] sm:$0xff]
      %v4683 = vld [vmem:[#allocation5 + $0x40] sm:$0xff]
      %v4684 = vld [vmem:[#allocation5 + $0x48] sm:$0xff]
      %v4685 = vld [vmem:[#allocation5 + $0x50] sm:$0xff]
      %v4686 = vld [vmem:[#allocation5 + $0x58] sm:$0xff]
      %v4687 = vld [vmem:[#allocation5 + $0x60] sm:$0xff]
      %v4688 = vld [vmem:[#allocation5 + $0x68] sm:$0xff]
      %v4689 = vld [vmem:[#allocation5 + $0x70] sm:$0xff]
      %v4690 = vld [vmem:[#allocation5 + $0x78] sm:$0xff]
      %v4691 = vld [vmem:[#allocation5 + $0x80] sm:$0xff]
      %v4692 = vld [vmem:[#allocation5 + $0x88] sm:$0xff]
      %v4693 = vld [vmem:[#allocation5 + $0x90] sm:$0xff]
      %v4694 = vld [vmem:[#allocation5 + $0x98] sm:$0xff]
      %v4695 = vld [vmem:[#allocation5 + $0xa0] sm:$0xff]
      %v4696 = vld [vmem:[#allocation5 + $0xa8] sm:$0xff]
      %v4697 = vld [vmem:[#allocation5 + $0xb0] sm:$0xff]
      %v4698 = vld [vmem:[#allocation5 + $0xb8] sm:$0xff]
      %v4699 = vld [vmem:[#allocation5 + $0xc0] sm:$0xff]
      %v4700 = vld [vmem:[#allocation5 + $0xc8] sm:$0xff]
      %v4701 = vld [vmem:[#allocation5 + $0xd0] sm:$0xff]
      %v4702 = vld [vmem:[#allocation5 + $0xd8] sm:$0xff]
      %v4703 = vld [vmem:[#allocation5 + $0xe0] sm:$0xff]
      %v4704 = vld [vmem:[#allocation5 + $0xe8] sm:$0xff]
      %v4705 = vld [vmem:[#allocation5 + $0xf0] sm:$0xff]
      %v4706 = vld [vmem:[#allocation5 + $0xf8] sm:$0xff]
      %v4707 = vld [vmem:[#allocation5 + $0x100] sm:$0xff]
      %v4708 = vld [vmem:[#allocation5 + $0x108] sm:$0xff]
      %v4709 = vld [vmem:[#allocation5 + $0x110] sm:$0xff]
      %v4710 = vld [vmem:[#allocation5 + $0x118] sm:$0xff]
      %v4711 = vld [vmem:[#allocation5 + $0x120] sm:$0xff]
      %v4712 = vld [vmem:[#allocation5 + $0x128] sm:$0xff]
      %v4713 = vld [vmem:[#allocation5 + $0x130] sm:$0xff]
      %v4714 = vld [vmem:[#allocation5 + $0x138] sm:$0xff]
      %v4715 = vld [vmem:[#allocation5 + $0x140] sm:$0xff]
      %v4716 = vld [vmem:[#allocation5 + $0x148] sm:$0xff]
      %v4717 = vld [vmem:[#allocation5 + $0x150] sm:$0xff]
      %v4718 = vld [vmem:[#allocation5 + $0x158] sm:$0xff]
      %v4719 = vld [vmem:[#allocation5 + $0x160] sm:$0xff]
      %v4720 = vld [vmem:[#allocation5 + $0x168] sm:$0xff]
      %v4721 = vld [vmem:[#allocation5 + $0x170] sm:$0xff]
      %v4722 = vld [vmem:[#allocation5 + $0x178] sm:$0xff]
      %v4723 = vld [vmem:[#allocation5 + $0x180] sm:$0xff]
      %v4724 = vld [vmem:[#allocation5 + $0x188] sm:$0xff]
      %v4725 = vld [vmem:[#allocation5 + $0x190] sm:$0xff]
      %v4726 = vld [vmem:[#allocation5 + $0x198] sm:$0xff]
      %v4727 = vld [vmem:[#allocation5 + $0x1a0] sm:$0xff]
      %v4728 = vld [vmem:[#allocation5 + $0x1a8] sm:$0xff]
      %v4729 = vld [vmem:[#allocation5 + $0x1b0] sm:$0xff]
      %v4730 = vld [vmem:[#allocation5 + $0x1b8] sm:$0xff]
      %v4731 = vld [vmem:[#allocation5 + $0x1c0] sm:$0xff]
      %v4732 = vld [vmem:[#allocation5 + $0x1c8] sm:$0xff]
      %v4733 = vld [vmem:[#allocation5 + $0x1d0] sm:$0xff]
      %v4734 = vld [vmem:[#allocation5 + $0x1d8] sm:$0xff]
      %v4735 = vld [vmem:[#allocation5 + $0x1e0] sm:$0xff]
      %v4736 = vld [vmem:[#allocation5 + $0x1e8] sm:$0xff]
      %v4737 = vld [vmem:[#allocation5 + $0x1f0] sm:$0xff]
      %v4738 = vld [vmem:[#allocation5 + $0x1f8] sm:$0xff]
      %v4739 = vld [vmem:[#allocation5 + $0x200] sm:$0xff]
      %v4740 = vld [vmem:[#allocation5 + $0x208] sm:$0xff]
      %v4741 = vld [vmem:[#allocation5 + $0x210] sm:$0xff]
      %v4742 = vld [vmem:[#allocation5 + $0x218] sm:$0xff]
      %v4743 = vld [vmem:[#allocation5 + $0x220] sm:$0xff]
      %v4744 = vld [vmem:[#allocation5 + $0x228] sm:$0xff]
      %v4745 = vld [vmem:[#allocation5 + $0x230] sm:$0xff]
      %v4746 = vld [vmem:[#allocation5 + $0x238] sm:$0xff]
      %v4747 = vld [vmem:[%s7] sm:$0xff]
      %v4748 = vld [vmem:[%s7 + $0x8] sm:$0xff]
      %v4749 = vld [vmem:[%s7 + $0x10] sm:$0xff]
      %4751 = vset.pattern.permute.xlu0 0
      %4752 = vperm.xlu0 %4751, %v4747
      %v4753 = vpop.permute.xlu0 %4752
      %4756 = vset.pattern.permute.xlu0 0
      %4757 = vperm.xlu0 %4756, %v4748
      %v4758 = vpop.permute.xlu0 %4757
      %4761 = vset.pattern.permute.xlu0 0
      %4762 = vperm.xlu0 %4761, %v4749
      %v4763 = vpop.permute.xlu0 %4762
      %v4771 = vunpack.c.l.b16 %v4669
      %v4772 = vunpack.c.h.b16 %v4669
      %v4773 = vunpack.c.l.b16 %v4670
      %v4774 = vunpack.c.l.b16 %v4671
      %v4775 = vunpack.c.h.b16 %v4671
      %v4776 = vunpack.c.l.b16 %v4672
      %v4777 = vunpack.c.l.b16 %v4673
      %v4778 = vunpack.c.h.b16 %v4673
      %v4779 = vunpack.c.l.b16 %v4674
      %v4780 = vpack.c.b16 %v4774, %v4771
      %v4781 = vpack.c.b16 %v4775, %v4772
      %v4782 = vpack.c.b16 %v4776, %v4773
      %v4783 = vpack.c.b16 %v4777, %v4777
      %v4784 = vpack.c.b16 %v4778, %v4778
      %v4785 = vpack.c.b16 %v4779, %v4779
      %v4862 = vunpack.c.l.b16 %v4675
      %v4863 = vunpack.c.h.b16 %v4675
      %v4864 = vunpack.c.l.b16 %v4676
      %v4865 = vunpack.c.h.b16 %v4676
      %v4866 = vunpack.c.l.b16 %v4677
      %v4867 = vunpack.c.h.b16 %v4677
      %v4868 = vunpack.c.l.b16 %v4678
      %v4869 = vunpack.c.h.b16 %v4678
      %v4870 = vunpack.c.l.b16 %v4679
      %v4871 = vunpack.c.h.b16 %v4679
      %v4872 = vunpack.c.l.b16 %v4680
      %v4873 = vunpack.c.h.b16 %v4680
      %v4874 = vunpack.c.l.b16 %v4681
      %v4875 = vunpack.c.h.b16 %v4681
      %v4876 = vunpack.c.l.b16 %v4682
      %v4877 = vunpack.c.h.b16 %v4682
      %v4878 = vunpack.c.l.b16 %v4683
      %v4879 = vunpack.c.h.b16 %v4683
      %v4880 = vunpack.c.l.b16 %v4684
      %v4881 = vunpack.c.h.b16 %v4684
      %v4882 = vunpack.c.l.b16 %v4685
      %v4883 = vunpack.c.h.b16 %v4685
      %v4884 = vunpack.c.l.b16 %v4686
      %v4885 = vunpack.c.h.b16 %v4686
      %v4886 = vunpack.c.l.b16 %v4687
      %v4887 = vunpack.c.h.b16 %v4687
      %v4888 = vunpack.c.l.b16 %v4688
      %v4889 = vunpack.c.h.b16 %v4688
      %v4890 = vunpack.c.l.b16 %v4689
      %v4891 = vunpack.c.h.b16 %v4689
      %v4892 = vunpack.c.l.b16 %v4690
      %v4893 = vunpack.c.h.b16 %v4690
      %v4894 = vunpack.c.l.b16 %v4691
      %v4895 = vunpack.c.h.b16 %v4691
      %v4896 = vunpack.c.l.b16 %v4692
      %v4897 = vunpack.c.h.b16 %v4692
      %v4898 = vunpack.c.l.b16 %v4693
      %v4899 = vunpack.c.h.b16 %v4693
      %v4900 = vunpack.c.l.b16 %v4694
      %v4901 = vunpack.c.h.b16 %v4694
      %v4902 = vunpack.c.l.b16 %v4695
      %v4903 = vunpack.c.h.b16 %v4695
      %v4904 = vunpack.c.l.b16 %v4696
      %v4905 = vunpack.c.h.b16 %v4696
      %v4906 = vunpack.c.l.b16 %v4697
      %v4907 = vunpack.c.h.b16 %v4697
      %v4908 = vunpack.c.l.b16 %v4698
      %v4909 = vunpack.c.h.b16 %v4698
      %v4910 = vunpack.c.l.b16 %v4699
      %v4911 = vunpack.c.h.b16 %v4699
      %v4912 = vunpack.c.l.b16 %v4700
      %v4913 = vunpack.c.h.b16 %v4700
      %v4914 = vunpack.c.l.b16 %v4701
      %v4915 = vunpack.c.h.b16 %v4701
      %v4916 = vunpack.c.l.b16 %v4702
      %v4917 = vunpack.c.h.b16 %v4702
      %v4918 = vunpack.c.l.b16 %v4703
      %v4919 = vunpack.c.h.b16 %v4703
      %v4920 = vunpack.c.l.b16 %v4704
      %v4921 = vunpack.c.h.b16 %v4704
      %v4922 = vunpack.c.l.b16 %v4705
      %v4923 = vunpack.c.h.b16 %v4705
      %v4924 = vunpack.c.l.b16 %v4706
      %v4925 = vunpack.c.h.b16 %v4706
      %v4926 = vunpack.c.l.b16 %v4707
      %v4927 = vunpack.c.h.b16 %v4707
      %v4928 = vunpack.c.l.b16 %v4708
      %v4929 = vunpack.c.h.b16 %v4708
      %v4930 = vunpack.c.l.b16 %v4709
      %v4931 = vunpack.c.h.b16 %v4709
      %v4932 = vunpack.c.l.b16 %v4710
      %v4933 = vunpack.c.h.b16 %v4710
      %v4934 = vunpack.c.l.b16 %v4711
      %v4935 = vunpack.c.h.b16 %v4711
      %v4936 = vunpack.c.l.b16 %v4712
      %v4937 = vunpack.c.h.b16 %v4712
      %v4938 = vunpack.c.l.b16 %v4713
      %v4939 = vunpack.c.h.b16 %v4713
      %v4940 = vunpack.c.l.b16 %v4714
      %v4941 = vunpack.c.h.b16 %v4714
      %v4942 = vunpack.c.l.b16 %v4715
      %v4943 = vunpack.c.h.b16 %v4715
      %v4944 = vunpack.c.l.b16 %v4716
      %v4945 = vunpack.c.h.b16 %v4716
      %v4946 = vunpack.c.l.b16 %v4717
      %v4947 = vunpack.c.h.b16 %v4717
      %v4948 = vunpack.c.l.b16 %v4718
      %v4949 = vunpack.c.h.b16 %v4718
      %v4950 = vunpack.c.l.b16 %v4719
      %v4951 = vunpack.c.h.b16 %v4719
      %v4952 = vunpack.c.l.b16 %v4720
      %v4953 = vunpack.c.h.b16 %v4720
      %v4954 = vunpack.c.l.b16 %v4721
      %v4955 = vunpack.c.h.b16 %v4721
      %v4956 = vunpack.c.l.b16 %v4722
      %v4957 = vunpack.c.h.b16 %v4722
      %v4958 = vunpack.c.l.b16 %v4723
      %v4959 = vunpack.c.h.b16 %v4723
      %v4960 = vunpack.c.l.b16 %v4724
      %v4961 = vunpack.c.h.b16 %v4724
      %v4962 = vunpack.c.l.b16 %v4725
      %v4963 = vunpack.c.h.b16 %v4725
      %v4964 = vunpack.c.l.b16 %v4726
      %v4965 = vunpack.c.h.b16 %v4726
      %v4966 = vunpack.c.l.b16 %v4727
      %v4967 = vunpack.c.h.b16 %v4727
      %v4968 = vunpack.c.l.b16 %v4728
      %v4969 = vunpack.c.h.b16 %v4728
      %v4970 = vunpack.c.l.b16 %v4729
      %v4971 = vunpack.c.h.b16 %v4729
      %v4972 = vunpack.c.l.b16 %v4730
      %v4973 = vunpack.c.h.b16 %v4730
      %v4974 = vunpack.c.l.b16 %v4731
      %v4975 = vunpack.c.h.b16 %v4731
      %v4976 = vunpack.c.l.b16 %v4732
      %v4977 = vunpack.c.h.b16 %v4732
      %v4978 = vunpack.c.l.b16 %v4733
      %v4979 = vunpack.c.h.b16 %v4733
      %v4980 = vunpack.c.l.b16 %v4734
      %v4981 = vunpack.c.h.b16 %v4734
      %v4982 = vunpack.c.l.b16 %v4735
      %v4983 = vunpack.c.h.b16 %v4735
      %v4984 = vunpack.c.l.b16 %v4736
      %v4985 = vunpack.c.h.b16 %v4736
      %v4986 = vunpack.c.l.b16 %v4737
      %v4987 = vunpack.c.h.b16 %v4737
      %v4988 = vunpack.c.l.b16 %v4738
      %v4989 = vunpack.c.h.b16 %v4738
      %v4990 = vunpack.c.l.b16 %v4739
      %v4991 = vunpack.c.h.b16 %v4739
      %v4992 = vunpack.c.l.b16 %v4740
      %v4993 = vunpack.c.h.b16 %v4740
      %v4994 = vunpack.c.l.b16 %v4741
      %v4995 = vunpack.c.h.b16 %v4741
      %v4996 = vunpack.c.l.b16 %v4742
      %v4997 = vunpack.c.h.b16 %v4742
      %v4998 = vunpack.c.l.b16 %v4743
      %v4999 = vunpack.c.h.b16 %v4743
      %v5000 = vunpack.c.l.b16 %v4744
      %v5001 = vunpack.c.h.b16 %v4744
      %v5002 = vunpack.c.l.b16 %v4745
      %v5003 = vunpack.c.h.b16 %v4745
      %v5004 = vunpack.c.l.b16 %v4746
      %v5005 = vunpack.c.h.b16 %v4746
      %v5006 = vpack.c.b16 %v4866, %v4862
      %v5007 = vpack.c.b16 %v4867, %v4863
      %v5008 = vpack.c.b16 %v4868, %v4864
      %v5009 = vpack.c.b16 %v4869, %v4865
      %v5010 = vpack.c.b16 %v4874, %v4870
      %v5011 = vpack.c.b16 %v4875, %v4871
      %v5012 = vpack.c.b16 %v4876, %v4872
      %v5013 = vpack.c.b16 %v4877, %v4873
      %v5014 = vpack.c.b16 %v4882, %v4878
      %v5015 = vpack.c.b16 %v4883, %v4879
      %v5016 = vpack.c.b16 %v4884, %v4880
      %v5017 = vpack.c.b16 %v4885, %v4881
      %v5018 = vpack.c.b16 %v4890, %v4886
      %v5019 = vpack.c.b16 %v4891, %v4887
      %v5020 = vpack.c.b16 %v4892, %v4888
      %v5021 = vpack.c.b16 %v4893, %v4889
      %v5022 = vpack.c.b16 %v4898, %v4894
      %v5023 = vpack.c.b16 %v4899, %v4895
      %v5024 = vpack.c.b16 %v4900, %v4896
      %v5025 = vpack.c.b16 %v4901, %v4897
      %v5026 = vpack.c.b16 %v4906, %v4902
      %v5027 = vpack.c.b16 %v4907, %v4903
      %v5028 = vpack.c.b16 %v4908, %v4904
      %v5029 = vpack.c.b16 %v4909, %v4905
      %v5030 = vpack.c.b16 %v4914, %v4910
      %v5031 = vpack.c.b16 %v4915, %v4911
      %v5032 = vpack.c.b16 %v4916, %v4912
      %v5033 = vpack.c.b16 %v4917, %v4913
      %v5034 = vpack.c.b16 %v4922, %v4918
      %v5035 = vpack.c.b16 %v4923, %v4919
      %v5036 = vpack.c.b16 %v4924, %v4920
      %v5037 = vpack.c.b16 %v4925, %v4921
      %v5038 = vpack.c.b16 %v4930, %v4926
      %v5039 = vpack.c.b16 %v4931, %v4927
      %v5040 = vpack.c.b16 %v4932, %v4928
      %v5041 = vpack.c.b16 %v4933, %v4929
      %v5042 = vpack.c.b16 %v4938, %v4934
      %v5043 = vpack.c.b16 %v4939, %v4935
      %v5044 = vpack.c.b16 %v4940, %v4936
      %v5045 = vpack.c.b16 %v4941, %v4937
      %v5046 = vpack.c.b16 %v4946, %v4942
      %v5047 = vpack.c.b16 %v4947, %v4943
      %v5048 = vpack.c.b16 %v4948, %v4944
      %v5049 = vpack.c.b16 %v4949, %v4945
      %v5050 = vpack.c.b16 %v4954, %v4950
      %v5051 = vpack.c.b16 %v4955, %v4951
      %v5052 = vpack.c.b16 %v4956, %v4952
      %v5053 = vpack.c.b16 %v4957, %v4953
      %v5054 = vpack.c.b16 %v4962, %v4958
      %v5055 = vpack.c.b16 %v4963, %v4959
      %v5056 = vpack.c.b16 %v4964, %v4960
      %v5057 = vpack.c.b16 %v4965, %v4961
      %v5058 = vpack.c.b16 %v4970, %v4966
      %v5059 = vpack.c.b16 %v4971, %v4967
      %v5060 = vpack.c.b16 %v4972, %v4968
      %v5061 = vpack.c.b16 %v4973, %v4969
      %v5062 = vpack.c.b16 %v4978, %v4974
      %v5063 = vpack.c.b16 %v4979, %v4975
      %v5064 = vpack.c.b16 %v4980, %v4976
      %v5065 = vpack.c.b16 %v4981, %v4977
      %v5066 = vpack.c.b16 %v4986, %v4982
      %v5067 = vpack.c.b16 %v4987, %v4983
      %v5068 = vpack.c.b16 %v4988, %v4984
      %v5069 = vpack.c.b16 %v4989, %v4985
      %v5070 = vpack.c.b16 %v4994, %v4990
      %v5071 = vpack.c.b16 %v4995, %v4991
      %v5072 = vpack.c.b16 %v4996, %v4992
      %v5073 = vpack.c.b16 %v4997, %v4993
      %v5074 = vpack.c.b16 %v5002, %v4998
      %v5075 = vpack.c.b16 %v5003, %v4999
      %v5076 = vpack.c.b16 %v5004, %v5000
      %v5077 = vpack.c.b16 %v5005, %v5001
      %v5151 = vsel %vm3394, %v4782, 0
      %v5154 = vsel %vm3394, %v4785, 0
      %5156 = vmatprep.subr.bf16.mxu0 %v5035
      %5157 = vmatpush1.bf16.msra.mxu0 %v5034
      %5158 = vmatprep.subr.bf16.mxu0 %v5031
      %5159 = vmatpush1.bf16.msra.mxu0 %v5030
      %5160 = vmatprep.subr.bf16.mxu0 %v5027
      %5161 = vmatpush1.bf16.msra.mxu0 %v5026
      %5162 = vmatprep.subr.bf16.mxu0 %v5023
      %5163 = vmatpush1.bf16.msra.mxu0 %v5022
      %5164 = vmatprep.subr.bf16.mxu0 %v5019
      %5165 = vmatpush1.bf16.msra.mxu0 %v5018
      %5166 = vmatprep.subr.bf16.mxu0 %v5015
      %5167 = vmatpush1.bf16.msra.mxu0 %v5014
      %5168 = vmatprep.subr.bf16.mxu0 %v5011
      %5169 = vmatpush1.bf16.msra.mxu0 %v5010
      %5170 = vmatprep.subr.bf16.mxu0 %v5007
      %5171 = vmatpush1.bf16.msra.mxu0 %v5006
      %5172 = vmatprep.subr.bf16.mxu0 %v5067
      %5173 = vmatpush2.bf16.msra.mxu0 %v5066
      %5174 = vmatprep.subr.bf16.mxu0 %v5063
      %5175 = vmatpush2.bf16.msra.mxu0 %v5062
      %5176 = vmatprep.subr.bf16.mxu0 %v5059
      %5177 = vmatpush2.bf16.msra.mxu0 %v5058
      %5178 = vmatprep.subr.bf16.mxu0 %v5055
      %5179 = vmatpush2.bf16.msra.mxu0 %v5054
      %5180 = vmatprep.subr.bf16.mxu0 %v5051
      %5181 = vmatpush2.bf16.msra.mxu0 %v5050
      %5182 = vmatprep.subr.bf16.mxu0 %v5047
      %5183 = vmatpush2.bf16.msra.mxu0 %v5046
      %5184 = vmatprep.subr.bf16.mxu0 %v5043
      %5185 = vmatpush2.bf16.msra.mxu0 %v5042
      %5186 = vmatprep.subr.bf16.mxu0 %v5039
      %5187 = vmatpush2.bf16.msra.mxu0 %v5038
      %5188 = vmatprep.mubr.bf16.mxu0 %v4781
      %5189 = vmatmul.mubr.bf16.gmra.mxu0 %v4780
      %v5190 = vpop.f32.mrf.mxu0
      %v5191 = vadd.f32 %v4753, %v5190
      %v5192 = vpop.f32.mrf.mxu0
      %v5193 = vadd.f32 %v4753, %v5192
      %v5194 = vpop.f32.mrf.mxu0
      %v5195 = vadd.f32 %v4758, %v5194
      %v5196 = vpop.f32.mrf.mxu0
      %v5197 = vadd.f32 %v4758, %v5196
      %5198 = vmatprep.mubr.bf16.mxu0 %v4784
      %5199 = vmatmul.mubr.bf16.gmra.mxu0 %v4783
      %v5200 = vpop.f32.mrf.mxu0
      %v5201 = vadd.f32 %v4763, %v5200
      %v5202 = vpop.f32.mrf.mxu0
      %v5203 = vadd.f32 %v4763, %v5202
      %v5204 = vpop.f32.mrf.mxu0
      %v5205 = vpop.f32.mrf.mxu0
      %5206 = vdwg.mxu0
      %5207 = vmatprep.subr.bf16.mxu0 0
      %5208 = vmatpush1.bf16.msra.mxu0 0
      %5209 = vmatprep.subr.bf16.mxu0 0
      %5210 = vmatpush1.bf16.msra.mxu0 0
      %5211 = vmatprep.subr.bf16.mxu0 0
      %5212 = vmatpush1.bf16.msra.mxu0 0
      %5213 = vmatprep.subr.bf16.mxu0 0
      %5214 = vmatpush1.bf16.msra.mxu0 0
      %5215 = vmatprep.subr.bf16.mxu0 0
      %5216 = vmatpush1.bf16.msra.mxu0 0
      %5217 = vmatprep.subr.bf16.mxu0 0
      %5218 = vmatpush1.bf16.msra.mxu0 0
      %5219 = vmatprep.subr.bf16.mxu0 %v5075
      %5220 = vmatpush1.bf16.msra.mxu0 %v5074
      %5221 = vmatprep.subr.bf16.mxu0 %v5071
      %5222 = vmatpush1.bf16.msra.mxu0 %v5070
      %5223 = vmatprep.subr.bf16.mxu0 0
      %5224 = vmatpush2.bf16.msra.mxu0 0
      %5225 = vmatprep.subr.bf16.mxu0 0
      %5226 = vmatpush2.bf16.msra.mxu0 0
      %5227 = vmatprep.subr.bf16.mxu0 0
      %5228 = vmatpush2.bf16.msra.mxu0 0
      %5229 = vmatprep.subr.bf16.mxu0 0
      %5230 = vmatpush2.bf16.msra.mxu0 0
      %5231 = vmatprep.subr.bf16.mxu0 0
      %5232 = vmatpush2.bf16.msra.mxu0 0
      %5233 = vmatprep.subr.bf16.mxu0 0
      %5234 = vmatpush2.bf16.msra.mxu0 0
      %5235 = vmatprep.subr.bf16.mxu0 0
      %5236 = vmatpush2.bf16.msra.mxu0 0
      %5237 = vmatprep.subr.bf16.mxu0 0
      %5238 = vmatpush2.bf16.msra.mxu0 0
      %5239 = vmatprep.mubr.bf16.mxu0 0
      %5240 = vmatmul.mubr.bf16.gmra.mxu0 %v5151
      %v5241 = vpop.f32.mrf.mxu0
      %v5242 = vadd.f32 %v5191, %v5241
      %v5243 = vpop.f32.mrf.mxu0
      %v5244 = vadd.f32 %v5193, %v5243
      %v5245 = vpop.f32.mrf.mxu0
      %v5246 = vadd.f32 %v5195, %v5245
      %v5247 = vpop.f32.mrf.mxu0
      %v5248 = vadd.f32 %v5197, %v5247
      %5249 = vmatprep.mubr.bf16.mxu0 0
      %5250 = vmatmul.mubr.bf16.gmra.mxu0 %v5154
      %v5251 = vpop.f32.mrf.mxu0
      %v5252 = vadd.f32 %v5201, %v5251
      %v5253 = vpop.f32.mrf.mxu0
      %v5254 = vadd.f32 %v5203, %v5253
      %v5255 = vpop.f32.mrf.mxu0
      %v5256 = vpop.f32.mrf.mxu0
      %5257 = vdwg.mxu0
      %5258 = vmatprep.subr.bf16.mxu0 %v5037
      %5259 = vmatpush1.bf16.msra.mxu0 %v5036
      %5260 = vmatprep.subr.bf16.mxu0 %v5033
      %5261 = vmatpush1.bf16.msra.mxu0 %v5032
      %5262 = vmatprep.subr.bf16.mxu0 %v5029
      %5263 = vmatpush1.bf16.msra.mxu0 %v5028
      %5264 = vmatprep.subr.bf16.mxu0 %v5025
      %5265 = vmatpush1.bf16.msra.mxu0 %v5024
      %5266 = vmatprep.subr.bf16.mxu0 %v5021
      %5267 = vmatpush1.bf16.msra.mxu0 %v5020
      %5268 = vmatprep.subr.bf16.mxu0 %v5017
      %5269 = vmatpush1.bf16.msra.mxu0 %v5016
      %5270 = vmatprep.subr.bf16.mxu0 %v5013
      %5271 = vmatpush1.bf16.msra.mxu0 %v5012
      %5272 = vmatprep.subr.bf16.mxu0 %v5009
      %5273 = vmatpush1.bf16.msra.mxu0 %v5008
      %5274 = vmatprep.subr.bf16.mxu0 %v5069
      %5275 = vmatpush2.bf16.msra.mxu0 %v5068
      %5276 = vmatprep.subr.bf16.mxu0 %v5065
      %5277 = vmatpush2.bf16.msra.mxu0 %v5064
      %5278 = vmatprep.subr.bf16.mxu0 %v5061
      %5279 = vmatpush2.bf16.msra.mxu0 %v5060
      %5280 = vmatprep.subr.bf16.mxu0 %v5057
      %5281 = vmatpush2.bf16.msra.mxu0 %v5056
      %5282 = vmatprep.subr.bf16.mxu0 %v5053
      %5283 = vmatpush2.bf16.msra.mxu0 %v5052
      %5284 = vmatprep.subr.bf16.mxu0 %v5049
      %5285 = vmatpush2.bf16.msra.mxu0 %v5048
      %5286 = vmatprep.subr.bf16.mxu0 %v5045
      %5287 = vmatpush2.bf16.msra.mxu0 %v5044
      %5288 = vmatprep.subr.bf16.mxu0 %v5041
      %5289 = vmatpush2.bf16.msra.mxu0 %v5040
      %5290 = vmatprep.mubr.bf16.mxu0 %v4781
      %5291 = vmatmul.mubr.bf16.gmra.mxu0 %v4780
      %v5292 = vpop.f32.mrf.mxu0
      %v5293 = vadd.f32 %v4753, %v5292
      %v5294 = vpop.f32.mrf.mxu0
      %v5295 = vadd.f32 %v4753, %v5294
      %v5296 = vpop.f32.mrf.mxu0
      %v5297 = vadd.f32 %v4758, %v5296
      %v5298 = vpop.f32.mrf.mxu0
      %v5299 = vadd.f32 %v4758, %v5298
      %5300 = vmatprep.mubr.bf16.mxu0 %v4784
      %5301 = vmatmul.mubr.bf16.gmra.mxu0 %v4783
      %v5302 = vpop.f32.mrf.mxu0
      %v5303 = vadd.f32 %v4763, %v5302
      %v5304 = vpop.f32.mrf.mxu0
      %v5305 = vadd.f32 %v4763, %v5304
      %v5306 = vpop.f32.mrf.mxu0
      %v5307 = vpop.f32.mrf.mxu0
      %5308 = vdwg.mxu0
      %5309 = vmatprep.subr.bf16.mxu0 0
      %5310 = vmatpush1.bf16.msra.mxu0 0
      %5311 = vmatprep.subr.bf16.mxu0 0
      %5312 = vmatpush1.bf16.msra.mxu0 0
      %5313 = vmatprep.subr.bf16.mxu0 0
      %5314 = vmatpush1.bf16.msra.mxu0 0
      %5315 = vmatprep.subr.bf16.mxu0 0
      %5316 = vmatpush1.bf16.msra.mxu0 0
      %5317 = vmatprep.subr.bf16.mxu0 0
      %5318 = vmatpush1.bf16.msra.mxu0 0
      %5319 = vmatprep.subr.bf16.mxu0 0
      %5320 = vmatpush1.bf16.msra.mxu0 0
      %5321 = vmatprep.subr.bf16.mxu0 %v5077
      %5322 = vmatpush1.bf16.msra.mxu0 %v5076
      %5323 = vmatprep.subr.bf16.mxu0 %v5073
      %5324 = vmatpush1.bf16.msra.mxu0 %v5072
      %5325 = vmatprep.subr.bf16.mxu0 0
      %5326 = vmatpush2.bf16.msra.mxu0 0
      %5327 = vmatprep.subr.bf16.mxu0 0
      %5328 = vmatpush2.bf16.msra.mxu0 0
      %5329 = vmatprep.subr.bf16.mxu0 0
      %5330 = vmatpush2.bf16.msra.mxu0 0
      %5331 = vmatprep.subr.bf16.mxu0 0
      %5332 = vmatpush2.bf16.msra.mxu0 0
      %5333 = vmatprep.subr.bf16.mxu0 0
      %5334 = vmatpush2.bf16.msra.mxu0 0
      %5335 = vmatprep.subr.bf16.mxu0 0
      %5336 = vmatpush2.bf16.msra.mxu0 0
      %5337 = vmatprep.subr.bf16.mxu0 0
      %5338 = vmatpush2.bf16.msra.mxu0 0
      %5339 = vmatprep.subr.bf16.mxu0 0
      %5340 = vmatpush2.bf16.msra.mxu0 0
      %5341 = vmatprep.mubr.bf16.mxu0 0
      %5342 = vmatmul.mubr.bf16.gmra.mxu0 %v5151
      %v5343 = vpop.f32.mrf.mxu0
      %v5344 = vadd.f32 %v5293, %v5343
      %v5345 = vpop.f32.mrf.mxu0
      %v5346 = vadd.f32 %v5295, %v5345
      %v5347 = vpop.f32.mrf.mxu0
      %v5348 = vadd.f32 %v5297, %v5347
      %v5349 = vpop.f32.mrf.mxu0
      %v5350 = vadd.f32 %v5299, %v5349
      %5351 = vmatprep.mubr.bf16.mxu0 0
      %5352 = vmatmul.mubr.bf16.gmra.mxu0 %v5154
      %v5353 = vpop.f32.mrf.mxu0
      %v5354 = vadd.f32 %v5303, %v5353
      %v5355 = vpop.f32.mrf.mxu0
      %v5356 = vadd.f32 %v5305, %v5355
      %v5357 = vpop.f32.mrf.mxu0
      %v5358 = vpop.f32.mrf.mxu0
      %5359 = vdwg.mxu0
      %5360 = vst [vmem:[%s305 + $0xa0] sm:$0xff] %v5242
      %5361 = vst [vmem:[%s305 + $0xa8] sm:$0xff] %v5244
      %5362 = vst [vmem:[%s305 + $0xb0] sm:$0xff] %v5344
      %5363 = vst [vmem:[%s305 + $0xb8] sm:$0xff] %v5346
      %5364 = vst [vmem:[%s305 + $0xc0] sm:$0xff] %v5246
      %5365 = vst [vmem:[%s305 + $0xc8] sm:$0xff] %v5248
      %5366 = vst [vmem:[%s305 + $0xd0] sm:$0xff] %v5348
      %5367 = vst [vmem:[%s305 + $0xd8] sm:$0xff] %v5350
      %5368 = vst [vmem:[%s305 + $0xe0] sm:$0xff] %v5252
      %5369 = vst [vmem:[%s305 + $0xe8] sm:$0xff] %v5254
      %5370 = vst [vmem:[%s305 + $0xf0] sm:$0xff] %v5354
      %5371 = vst [vmem:[%s305 + $0xf8] sm:$0xff] %v5356
      %p5372 = scmp.lt.s32.totalorder %s19, 1
      %s5373 = scalar_select %p5372, %s19, 1
      %s5374 = smul.addr %s5373, 44
      %s5375 = smul.addr %s5374, 8
      %s5376 = scalar_lea.vmem %s8, %s5375
      // Predicated region
      $region53: #{inception_a_pallas.1} parent=51 // pred_check
        %p5377 = pneg %p210
      $region54: #{inception_a_pallas.1} parent=51 // pred_check_branch
        %5379 = sbr.rel (%p5377) target = $region56
      $region55: #{inception_a_pallas.1} parent=51 // pred_region
        _
      $region56: #{inception_a_pallas.1} parent=51 // pred_fallthru
        _
    $region52: #{inception_a_pallas.1} parent=5 // pred_fallthru
      _
    %p5380 = scmp.le.s32.totalorder 2, %s14
    // Predicated region
    $region57: #{inception_a_pallas.1} parent=5 // pred_check
      %p5381 = pneg %p5380
    $region58: #{inception_a_pallas.1} parent=5 // pred_check_branch
      %5383 = sbr.rel (%p5381) target = $region60
    $region59: #{inception_a_pallas.1} parent=5 // pred_region
      %s5384 = ssub.s32 %s14, 2
      // Predicated region
      $region61: #{inception_a_pallas.1} parent=59 // pred_check
        %p5385 = pneg %p216
      $region62: #{inception_a_pallas.1} parent=59 // pred_check_branch
        %5387 = sbr.rel (%p5385) target = $region64
      $region63: #{inception_a_pallas.1} parent=59 // pred_region
        %p5388 = scmp.lt.s32.totalorder %s20, 1
        %s5389 = scalar_select %p5388, %s20, 1
        %s5390 = smul.addr %s5389, 44
        %s5391 = smul.addr %s5390, 8
        %s5392 = scalar_lea.vmem %s8, %s5391
      $region64: #{inception_a_pallas.1} parent=59 // pred_fallthru
        _
    $region60: #{inception_a_pallas.1} parent=5 // pred_fallthru
      _
  $region6: #{inception_a_pallas.1} parent=0 // loop_footer
    %s18 = sadd.s32 1, %s14
  $region7: #{inception_a_pallas.1} parent=0 // loop_footer_branch
    %13 = sbr.rel target = $region3
  $region8: #{inception_a_pallas.1} parent=0 // loop_exit
    _

</llo_original>
